<compile_context>
chip_gen: v7x
topology: tpu7x:2x2x1
jax: 0.10.0
libtpu: 0.0.40
codegen_flags: <defaults>
</compile_context>

<pallas_src>
import math
import jax
import jax.numpy as jnp
from jax.experimental import pallas as pl
from jax.experimental.pallas import tpu as pltpu

# ---------------- small deterministic config ----------------
INPUT_SIZE = 4           # c_in
D_MODEL    = 32
NUM_HEADS  = 4
NUM_LAYERS = 2
SEQ_LEN    = 8
PRED_LEN   = 8
WIN_SIZE   = 4
BATCH      = 2
S_TOTAL    = SEQ_LEN + PRED_LEN      # 16
BS         = BATCH * S_TOTAL         # 32  (batch folded onto sublanes)
BL         = BATCH * SEQ_LEN         # 16
BP         = BATCH * PRED_LEN        # 16  (rows actually emitted)
HEAD_DIM   = D_MODEL // NUM_HEADS    # 8
D_FF       = 2 * D_MODEL             # FeedForward(d_model, d_ff=2*d_model)
LN_EPS     = 1e-5
ATT_SCALE  = 1.0 / math.sqrt(HEAD_DIM)
MASK_VAL   = -1e9                    # finite additive mask (avoids -inf NaN hazards)
OUT_PAD    = 128                     # padded projection width -> lane-dense store


# ---------------- in-kernel helpers ----------------
def _layernorm(x, gamma, beta):
    mu = jnp.mean(x, axis=-1, keepdims=True)
    var = jnp.mean((x - mu) ** 2, axis=-1, keepdims=True)
    return (x - mu) * jax.lax.rsqrt(var + LN_EPS) * gamma + beta


# ---------------- fused kernel (no grid, everything VMEM-resident) ----------------
def transformer_kernel(xraw_ref, wtap_ref, atap_ref, pe_pl_ref, base_mask_ref,
                       hmaskT_ref, hmask_ref,
                       g1_ref, b1_ref, wq_ref, bq_ref, wk_ref, bk_ref, wv_ref, bv_ref,
                       wo_ref, bo_ref, g2_ref, b2_ref, w1_ref, bf1_ref, w2_ref, bf2_ref,
                       gf_ref, bf_ref, wp_ref, bp_ref, out_ref):
    """Whole Transformer forward in one kernel invocation."""
    f32 = jnp.float32

    # ---- DataEmbedding (circular conv k=3) + predict_linear, fully folded ----
    # x_pl = sum_k A_k_blk @ (x_raw @ W_k) + (wpl @ pe + bpl)   (constants precomputed)
    xraw = xraw_ref[...]                                         # (BL, C)
    x = pe_pl_ref[...]                                           # (BS, D) constant term
    for k in range(3):
        e_k = jnp.dot(xraw, wtap_ref[k], preferred_element_type=f32)      # (BL, D)
        x = x + jnp.dot(atap_ref[k], e_k, preferred_element_type=f32)     # (BS, D)

    # ---- constants hoisted out of the layer loop ----
    maskc  = jnp.concatenate([base_mask_ref[...]] * NUM_HEADS, axis=1)    # (BS, H*BS)
    hmaskT = hmaskT_ref[...]                                              # (D, H*BS)
    hmask  = hmask_ref[...]                                               # (H*BS, D)

    for li in range(NUM_LAYERS):
        # ---- multi-head self attention (pre-norm), eval mode ----
        h = _layernorm(x, g1_ref[li], b1_ref[li])
        # three tile-aligned (32,32) projections; 1/sqrt(head_dim) folded into Q
        q  = jnp.dot(h, wq_ref[li], preferred_element_type=f32) + bq_ref[li]
        k_ = jnp.dot(h, wk_ref[li], preferred_element_type=f32) + bk_ref[li]
        v  = jnp.dot(h, wv_ref[li], preferred_element_type=f32) + bv_ref[li]

        # lane-dense stacked K: one explicit 32x32 transpose, then tile+mask on lanes
        k_hT = jnp.concatenate([k_.T] * NUM_HEADS, axis=1) * hmaskT       # (D, H*BS)
        s = jnp.dot(q, k_hT, preferred_element_type=f32) + maskc          # (BS, H*BS)

        # softmax: shared row max is mathematically exact (per-head denominators below);
        # per-head max only matters if head logits differ by >~88 (not at these scales).
        m = jnp.max(s, axis=-1, keepdims=True)
        p = jnp.exp(s - m)

        # fused PV + per-head denominator matmul: RHS = [V_h | hmask]  (H*BS, 2D)
        v_h = jnp.concatenate([v] * NUM_HEADS, axis=0) * hmask            # (H*BS, D)
        pv_rhs = jnp.concatenate([v_h, hmask], axis=1)                    # (H*BS, 2D)
        fused = jnp.dot(p, pv_rhs, preferred_element_type=f32)            # (BS, 2D)
        o_raw = fused[:, :D_MODEL]
        denom = jnp.maximum(fused[:, D_MODEL:], 1e-30)                    # guard
        o = o_raw / denom                                                 # exact division
        att = jnp.dot(o, wo_ref[li], preferred_element_type=f32) + bo_ref[li]
        x = x + att

        # ---- FeedForward: Linear -> ReLU -> (Dropout=id) -> Linear, pre-norm ----
        # TODO(synk): FeedForward class body not given in the reference; standard
        # Linear/ReLU/Dropout/Linear with d_ff = 2*d_model assumed.
        h2 = _layernorm(x, g2_ref[li], b2_ref[li])
        f = jnp.dot(h2, w1_ref[li], preferred_element_type=f32) + bf1_ref[li]
        f = jnp.maximum(f, 0.0)
        f = jnp.dot(f, w2_ref[li], preferred_element_type=f32) + bf2_ref[li]
        x = x + f

    # ---- head applied only to the last PRED_LEN rows of each batch element ----
    tail = jnp.concatenate(
        [x[b * S_TOTAL + SEQ_LEN:(b + 1) * S_TOTAL, :] for b in range(BATCH)], axis=0)  # (BP, D)
    xf = _layernorm(tail, gf_ref[...], bf_ref[...])
    out_ref[...] = (jnp.dot(xf, wp_ref[...], preferred_element_type=f32)
                    + bp_ref[...]).astype(out_ref.dtype)


# ---------------- wrapper ----------------
def transformer_forward(x, P):
    """x: (B, seq_len, input_size) -> (B, pred_len, input_size). revin=False."""
    # TODO(synk): revin=False in this config; RevIN class was not provided, so it is skipped.
    xraw = x.reshape(BL, INPUT_SIZE)   # contiguous reshape only, no wrapper-side stacking

    vmem = pl.BlockSpec(memory_space=pltpu.MemorySpace.VMEM)
    args = (xraw, P['wtap'], P['atap'], P['pe_pl'], P['base_mask'], P['hmaskT'], P['hmask'],
            P['g1'], P['b1'], P['wq'], P['bq'], P['wk'], P['bk'], P['wv'], P['bv'],
            P['wo'], P['bo'], P['g2'], P['b2'], P['w1'], P['bf1'], P['w2'], P['bf2'],
            P['gf'], P['bf'], P['wp'], P['bp'])

    out = pl.pallas_call(
        transformer_kernel,
        out_shape=jax.ShapeDtypeStruct((BP, OUT_PAD), jnp.float32),
        in_specs=[vmem] * len(args),
        out_specs=vmem,
    )(*args)

    return out[:, :INPUT_SIZE].reshape(BATCH, PRED_LEN, INPUT_SIZE)


# ---------------- constant buffers & parameters ----------------
def positional_embedding(seq_len, d_model):
    position = jnp.arange(seq_len, dtype=jnp.float32)[:, None]
    div_term = jnp.exp(jnp.arange(0, d_model, 2, dtype=jnp.float32)
                       * (-math.log(10000.0) / d_model))
    pe = jnp.zeros((seq_len, d_model), jnp.float32)
    pe = pe.at[:, 0::2].set(jnp.sin(position * div_term))
    pe = pe.at[:, 1::2].set(jnp.cos(position * div_term))
    return pe


def build_masks():
    # additive (BS, BS) base mask over the batch-folded score block:
    # causal window of WIN_SIZE within a batch element, MASK_VAL across batch elements.
    r = jnp.arange(BS)
    b_id, t_id = r // S_TOTAL, r % S_TOTAL
    same_batch = b_id[:, None] == b_id[None, :]
    in_window = (t_id[None, :] <= t_id[:, None]) & (t_id[None, :] > t_id[:, None] - WIN_SIZE)
    base = jnp.where(same_batch & in_window, 0.0, MASK_VAL).astype(jnp.float32)   # (BS, BS)
    # head block masks: hmask (H*BS, D) keys-on-sublanes / heads-on-lanes (V path + denom),
    # hmaskT (D, H*BS) the lane-dense K path version.
    row_head = jnp.arange(NUM_HEADS * BS) // BS
    lane_head = jnp.arange(D_MODEL) // HEAD_DIM
    hmask = (row_head[:, None] == lane_head[None, :]).astype(jnp.float32)          # (H*BS, D)
    hmaskT = hmask.T                                                                # (D, H*BS)
    return base, hmask, hmaskT


def init_params(key):
    keys = iter(jax.random.split(key, 64))
    nrm = lambda k, shape, scale: scale * jax.random.normal(k, shape, jnp.float32)
    P = {}

    # ---- TokenEmbedding conv weight: PyTorch (d_model, c_in, 3) -> per-tap (c_in, d_model)
    wconv_pt = nrm(next(keys), (D_MODEL, INPUT_SIZE, 3), 1.0 / math.sqrt(3 * INPUT_SIZE))
    P['wtap'] = jnp.transpose(wconv_pt, (2, 1, 0))                                  # (3, C, D)

    # ---- predict_linear: Linear(seq_len -> seq_len+pred_len) on the time axis ----
    wpl = nrm(next(keys), (S_TOTAL, SEQ_LEN), 1.0 / math.sqrt(SEQ_LEN))
    bpl = nrm(next(keys), (S_TOTAL,), 0.02)

    # circular-conv taps folded through predict_linear:
    # A_k[s, t'] = wpl[s, (t' - k + 1) mod L], block-diagonal over the folded batch.
    t_idx = jnp.arange(SEQ_LEN)
    eyeB = jnp.eye(BATCH, dtype=jnp.float32)
    ataps = []
    for k in range(3):
        a_k = wpl[:, (t_idx - k + 1) % SEQ_LEN]                                     # (S_TOTAL, L)
        ataps.append(jnp.kron(eyeB, a_k))                                           # (BS, BL)
    P['atap'] = jnp.stack(ataps, axis=0)                                            # (3, BS, BL)

    # positional embedding + predict_linear bias, pushed through wpl and tiled over batch
    pe = positional_embedding(SEQ_LEN, D_MODEL)                                     # (L, D)
    pe_b = jnp.dot(wpl, pe) + bpl[:, None]                                          # (S_TOTAL, D)
    P['pe_pl'] = jnp.tile(pe_b, (BATCH, 1))                                         # (BS, D)

    # ---- encoder layers (stacked along a leading layer axis) ----
    names = ('g1', 'b1', 'wq', 'bq', 'wk', 'bk', 'wv', 'bv', 'wo', 'bo',
             'g2', 'b2', 'w1', 'bf1', 'w2', 'bf2')
    stacks = {n: [] for n in names}
    for _ in range(NUM_LAYERS):
        # MHA in_proj split into Q/K/V; fold the 1/sqrt(head_dim) scale into Q
        stacks['wq'].append(nrm(next(keys), (D_MODEL, D_MODEL), 1.0 / math.sqrt(D_MODEL)).T
                            * ATT_SCALE)
        stacks['bq'].append(nrm(next(keys), (1, D_MODEL), 0.02) * ATT_SCALE)
        stacks['wk'].append(nrm(next(keys), (D_MODEL, D_MODEL), 1.0 / math.sqrt(D_MODEL)).T)
        stacks['bk'].append(nrm(next(keys), (1, D_MODEL), 0.02))
        stacks['wv'].append(nrm(next(keys), (D_MODEL, D_MODEL), 1.0 / math.sqrt(D_MODEL)).T)
        stacks['bv'].append(nrm(next(keys), (1, D_MODEL), 0.02))
        stacks['wo'].append(nrm(next(keys), (D_MODEL, D_MODEL), 1.0 / math.sqrt(D_MODEL)).T)
        stacks['bo'].append(nrm(next(keys), (1, D_MODEL), 0.02))
        stacks['g1'].append(jnp.ones((1, D_MODEL), jnp.float32))
        stacks['b1'].append(jnp.zeros((1, D_MODEL), jnp.float32))
        stacks['g2'].append(jnp.ones((1, D_MODEL), jnp.float32))
        stacks['b2'].append(jnp.zeros((1, D_MODEL), jnp.float32))
        stacks['w1'].append(nrm(next(keys), (D_FF, D_MODEL), 1.0 / math.sqrt(D_MODEL)).T)
        stacks['bf1'].append(nrm(next(keys), (1, D_FF), 0.02))
        stacks['w2'].append(nrm(next(keys), (D_MODEL, D_FF), 1.0 / math.sqrt(D_FF)).T)
        stacks['bf2'].append(nrm(next(keys), (1, D_MODEL), 0.02))
    for n in names:
        P[n] = jnp.stack(stacks[n], axis=0)

    # ---- final norm + projection; projection padded to OUT_PAD lanes for a dense store ----
    P['gf'] = jnp.ones((1, D_MODEL), jnp.float32)
    P['bf'] = jnp.zeros((1, D_MODEL), jnp.float32)
    wp = nrm(next(keys), (INPUT_SIZE, D_MODEL), 1.0 / math.sqrt(D_MODEL)).T          # (D, C)
    bp = nrm(next(keys), (1, INPUT_SIZE), 0.02)
    P['wp'] = jnp.concatenate(
        [wp, jnp.zeros((D_MODEL, OUT_PAD - INPUT_SIZE), jnp.float32)], axis=1)
    P['bp'] = jnp.concatenate(
        [bp, jnp.zeros((1, OUT_PAD - INPUT_SIZE), jnp.float32)], axis=1)

    P['base_mask'], P['hmask'], P['hmaskT'] = build_masks()
    return P


if __name__ == "__main__":
    key = jax.random.PRNGKey(0)
    k_x, k_p = jax.random.split(key)
    x = jax.random.normal(k_x, (BATCH, SEQ_LEN, INPUT_SIZE), jnp.float32)
    P = init_params(k_p)

    fwd = jax.jit(lambda xx: transformer_forward(xx, P))
    out = jax.block_until_ready(fwd(x))

    assert out.shape == (BATCH, PRED_LEN, INPUT_SIZE), out.shape
    assert bool(jnp.all(jnp.isfinite(out)))
    print("KERNEL_OK")
</pallas_src>

<mosaic_0001>
module attributes {stable_mosaic.version = 11 : i64} {
  func.func @transformer_kernel(%arg0: memref<16x4xf32, #tpu.memory_space<vmem>>, %arg1: memref<3x4x32xf32, #tpu.memory_space<vmem>>, %arg2: memref<3x32x16xf32, #tpu.memory_space<vmem>>, %arg3: memref<32x32xf32, #tpu.memory_space<vmem>>, %arg4: memref<32x32xf32, #tpu.memory_space<vmem>>, %arg5: memref<32x128xf32, #tpu.memory_space<vmem>>, %arg6: memref<128x32xf32, #tpu.memory_space<vmem>>, %arg7: memref<2x1x32xf32, #tpu.memory_space<vmem>>, %arg8: memref<2x1x32xf32, #tpu.memory_space<vmem>>, %arg9: memref<2x32x32xf32, #tpu.memory_space<vmem>>, %arg10: memref<2x1x32xf32, #tpu.memory_space<vmem>>, %arg11: memref<2x32x32xf32, #tpu.memory_space<vmem>>, %arg12: memref<2x1x32xf32, #tpu.memory_space<vmem>>, %arg13: memref<2x32x32xf32, #tpu.memory_space<vmem>>, %arg14: memref<2x1x32xf32, #tpu.memory_space<vmem>>, %arg15: memref<2x32x32xf32, #tpu.memory_space<vmem>>, %arg16: memref<2x1x32xf32, #tpu.memory_space<vmem>>, %arg17: memref<2x1x32xf32, #tpu.memory_space<vmem>>, %arg18: memref<2x1x32xf32, #tpu.memory_space<vmem>>, %arg19: memref<2x32x64xf32, #tpu.memory_space<vmem>>, %arg20: memref<2x1x64xf32, #tpu.memory_space<vmem>>, %arg21: memref<2x64x32xf32, #tpu.memory_space<vmem>>, %arg22: memref<2x1x32xf32, #tpu.memory_space<vmem>>, %arg23: memref<1x32xf32, #tpu.memory_space<vmem>>, %arg24: memref<1x32xf32, #tpu.memory_space<vmem>>, %arg25: memref<32x128xf32, #tpu.memory_space<vmem>>, %arg26: memref<1x128xf32, #tpu.memory_space<vmem>>, %arg27: memref<16x128xf32, #tpu.memory_space<vmem>>) attributes {dimension_semantics = [], scalar_prefetch = 0 : i64, scratch_operands = 0 : i64, tpu.core_type = #tpu.core_type<tc>} {
    %c0 = arith.constant 0 : index
    %c0_0 = arith.constant 0 : index
    %0 = vector.load %arg0[%c0, %c0_0] : memref<16x4xf32, #tpu.memory_space<vmem>>, vector<16x4xf32>
    %c0_1 = arith.constant 0 : index
    %c0_2 = arith.constant 0 : index
    %1 = vector.load %arg3[%c0_1, %c0_2] : memref<32x32xf32, #tpu.memory_space<vmem>>, vector<32x32xf32>
    %c0_3 = arith.constant 0 : index
    %c0_4 = arith.constant 0 : index
    %c0_5 = arith.constant 0 : index
    %2 = vector.load %arg1[%c0_3, %c0_4, %c0_5] : memref<3x4x32xf32, #tpu.memory_space<vmem>>, vector<1x4x32xf32>
    %3 = vector.shape_cast %2 : vector<1x4x32xf32> to vector<4x32xf32>
    %cst = arith.constant dense<0.000000e+00> : vector<16x32xf32>
    %4 = tpu.matmul %0, %3, %cst {dimension_numbers = #tpu.dot_dimension_numbers<[1], [0], [0], [1], [0, 0, 1, 1], [], []>} : vector<16x4xf32>, vector<4x32xf32>, vector<16x32xf32> -> vector<16x32xf32>
    %c0_6 = arith.constant 0 : index
    %c0_7 = arith.constant 0 : index
    %c0_8 = arith.constant 0 : index
    %5 = vector.load %arg2[%c0_6, %c0_7, %c0_8] : memref<3x32x16xf32, #tpu.memory_space<vmem>>, vector<1x32x16xf32>
    %6 = vector.shape_cast %5 : vector<1x32x16xf32> to vector<32x16xf32>
    %cst_9 = arith.constant dense<0.000000e+00> : vector<32x32xf32>
    %7 = tpu.matmul %6, %4, %cst_9 {dimension_numbers = #tpu.dot_dimension_numbers<[1], [0], [0], [1], [0, 0, 1, 1], [], []>} : vector<32x16xf32>, vector<16x32xf32>, vector<32x32xf32> -> vector<32x32xf32>
    %8 = arith.addf %1, %7 : vector<32x32xf32>
    %c1 = arith.constant 1 : index
    %c0_10 = arith.constant 0 : index
    %c0_11 = arith.constant 0 : index
    %9 = vector.load %arg1[%c1, %c0_10, %c0_11] : memref<3x4x32xf32, #tpu.memory_space<vmem>>, vector<1x4x32xf32>
    %10 = vector.shape_cast %9 : vector<1x4x32xf32> to vector<4x32xf32>
    %cst_12 = arith.constant dense<0.000000e+00> : vector<16x32xf32>
    %11 = tpu.matmul %0, %10, %cst_12 {dimension_numbers = #tpu.dot_dimension_numbers<[1], [0], [0], [1], [0, 0, 1, 1], [], []>} : vector<16x4xf32>, vector<4x32xf32>, vector<16x32xf32> -> vector<16x32xf32>
    %c1_13 = arith.constant 1 : index
    %c0_14 = arith.constant 0 : index
    %c0_15 = arith.constant 0 : index
    %12 = vector.load %arg2[%c1_13, %c0_14, %c0_15] : memref<3x32x16xf32, #tpu.memory_space<vmem>>, vector<1x32x16xf32>
    %13 = vector.shape_cast %12 : vector<1x32x16xf32> to vector<32x16xf32>
    %cst_16 = arith.constant dense<0.000000e+00> : vector<32x32xf32>
    %14 = tpu.matmul %13, %11, %cst_16 {dimension_numbers = #tpu.dot_dimension_numbers<[1], [0], [0], [1], [0, 0, 1, 1], [], []>} : vector<32x16xf32>, vector<16x32xf32>, vector<32x32xf32> -> vector<32x32xf32>
    %15 = arith.addf %8, %14 : vector<32x32xf32>
    %c2 = arith.constant 2 : index
    %c0_17 = arith.constant 0 : index
    %c0_18 = arith.constant 0 : index
    %16 = vector.load %arg1[%c2, %c0_17, %c0_18] : memref<3x4x32xf32, #tpu.memory_space<vmem>>, vector<1x4x32xf32>
    %17 = vector.shape_cast %16 : vector<1x4x32xf32> to vector<4x32xf32>
    %cst_19 = arith.constant dense<0.000000e+00> : vector<16x32xf32>
    %18 = tpu.matmul %0, %17, %cst_19 {dimension_numbers = #tpu.dot_dimension_numbers<[1], [0], [0], [1], [0, 0, 1, 1], [], []>} : vector<16x4xf32>, vector<4x32xf32>, vector<16x32xf32> -> vector<16x32xf32>
    %c2_20 = arith.constant 2 : index
    %c0_21 = arith.constant 0 : index
    %c0_22 = arith.constant 0 : index
    %19 = vector.load %arg2[%c2_20, %c0_21, %c0_22] : memref<3x32x16xf32, #tpu.memory_space<vmem>>, vector<1x32x16xf32>
    %20 = vector.shape_cast %19 : vector<1x32x16xf32> to vector<32x16xf32>
    %cst_23 = arith.constant dense<0.000000e+00> : vector<32x32xf32>
    %21 = tpu.matmul %20, %18, %cst_23 {dimension_numbers = #tpu.dot_dimension_numbers<[1], [0], [0], [1], [0, 0, 1, 1], [], []>} : vector<32x16xf32>, vector<16x32xf32>, vector<32x32xf32> -> vector<32x32xf32>
    %22 = arith.addf %15, %21 : vector<32x32xf32>
    %c0_24 = arith.constant 0 : index
    %c0_25 = arith.constant 0 : index
    %23 = vector.load %arg4[%c0_24, %c0_25] : memref<32x32xf32, #tpu.memory_space<vmem>>, vector<32x32xf32>
    %24 = tpu.concatenate %23, %23, %23, %23 in 1 : vector<32x32xf32>, vector<32x32xf32>, vector<32x32xf32>, vector<32x32xf32> -> vector<32x128xf32>
    %c0_26 = arith.constant 0 : index
    %c0_27 = arith.constant 0 : index
    %25 = vector.load %arg5[%c0_26, %c0_27] : memref<32x128xf32, #tpu.memory_space<vmem>>, vector<32x128xf32>
    %c0_28 = arith.constant 0 : index
    %c0_29 = arith.constant 0 : index
    %26 = vector.load %arg6[%c0_28, %c0_29] : memref<128x32xf32, #tpu.memory_space<vmem>>, vector<128x32xf32>
    %c0_30 = arith.constant 0 : index
    %c0_31 = arith.constant 0 : index
    %c0_32 = arith.constant 0 : index
    %27 = vector.load %arg7[%c0_30, %c0_31, %c0_32] : memref<2x1x32xf32, #tpu.memory_space<vmem>>, vector<1x1x32xf32>
    %28 = vector.shape_cast %27 : vector<1x1x32xf32> to vector<1x32xf32>
    %c0_33 = arith.constant 0 : index
    %c0_34 = arith.constant 0 : index
    %c0_35 = arith.constant 0 : index
    %29 = vector.load %arg8[%c0_33, %c0_34, %c0_35] : memref<2x1x32xf32, #tpu.memory_space<vmem>>, vector<1x1x32xf32>
    %30 = vector.shape_cast %29 : vector<1x1x32xf32> to vector<1x32xf32>
    %cst_36 = arith.constant dense<0.000000e+00> : vector<32xf32>
    %31 = vector.multi_reduction <add>, %22, %cst_36 [1] : vector<32x32xf32> to vector<32xf32>
    %32 = vector.shape_cast %31 : vector<32xf32> to vector<32x1xf32>
    %cst_37 = arith.constant 3.200000e+01 : f32
    %33 = vector.broadcast %cst_37 : f32 to vector<32x1xf32>
    %34 = arith.divf %32, %33 : vector<32x1xf32>
    %35 = vector.broadcast %34 : vector<32x1xf32> to vector<32x32xf32>
    %36 = arith.subf %22, %35 : vector<32x32xf32>
    %37 = arith.mulf %36, %36 : vector<32x32xf32>
    %cst_38 = arith.constant dense<0.000000e+00> : vector<32xf32>
    %38 = vector.multi_reduction <add>, %37, %cst_38 [1] : vector<32x32xf32> to vector<32xf32>
    %39 = vector.shape_cast %38 : vector<32xf32> to vector<32x1xf32>
    %cst_39 = arith.constant 3.200000e+01 : f32
    %40 = vector.broadcast %cst_39 : f32 to vector<32x1xf32>
    %41 = arith.divf %39, %40 : vector<32x1xf32>
    %42 = vector.broadcast %34 : vector<32x1xf32> to vector<32x32xf32>
    %43 = arith.subf %22, %42 : vector<32x32xf32>
    %cst_40 = arith.constant 9.99999974E-6 : f32
    %44 = vector.broadcast %cst_40 : f32 to vector<32x1xf32>
    %45 = arith.addf %41, %44 : vector<32x1xf32>
    %46 = math.rsqrt %45 : vector<32x1xf32>
    %47 = vector.broadcast %46 : vector<32x1xf32> to vector<32x32xf32>
    %48 = arith.mulf %43, %47 : vector<32x32xf32>
    %49 = vector.broadcast %28 : vector<1x32xf32> to vector<32x32xf32>
    %50 = arith.mulf %48, %49 : vector<32x32xf32>
    %51 = vector.broadcast %30 : vector<1x32xf32> to vector<32x32xf32>
    %52 = arith.addf %50, %51 : vector<32x32xf32>
    %c0_41 = arith.constant 0 : index
    %c0_42 = arith.constant 0 : index
    %c0_43 = arith.constant 0 : index
    %53 = vector.load %arg9[%c0_41, %c0_42, %c0_43] : memref<2x32x32xf32, #tpu.memory_space<vmem>>, vector<1x32x32xf32>
    %54 = vector.shape_cast %53 : vector<1x32x32xf32> to vector<32x32xf32>
    %cst_44 = arith.constant dense<0.000000e+00> : vector<32x32xf32>
    %55 = tpu.matmul %52, %54, %cst_44 {dimension_numbers = #tpu.dot_dimension_numbers<[1], [0], [0], [1], [0, 0, 1, 1], [], []>} : vector<32x32xf32>, vector<32x32xf32>, vector<32x32xf32> -> vector<32x32xf32>
    %c0_45 = arith.constant 0 : index
    %c0_46 = arith.constant 0 : index
    %c0_47 = arith.constant 0 : index
    %56 = vector.load %arg10[%c0_45, %c0_46, %c0_47] : memref<2x1x32xf32, #tpu.memory_space<vmem>>, vector<1x1x32xf32>
    %57 = vector.shape_cast %56 : vector<1x1x32xf32> to vector<1x32xf32>
    %58 = vector.broadcast %57 : vector<1x32xf32> to vector<32x32xf32>
    %59 = arith.addf %55, %58 : vector<32x32xf32>
    %c0_48 = arith.constant 0 : index
    %c0_49 = arith.constant 0 : index
    %c0_50 = arith.constant 0 : index
    %60 = vector.load %arg11[%c0_48, %c0_49, %c0_50] : memref<2x32x32xf32, #tpu.memory_space<vmem>>, vector<1x32x32xf32>
    %61 = vector.shape_cast %60 : vector<1x32x32xf32> to vector<32x32xf32>
    %cst_51 = arith.constant dense<0.000000e+00> : vector<32x32xf32>
    %62 = tpu.matmul %52, %61, %cst_51 {dimension_numbers = #tpu.dot_dimension_numbers<[1], [0], [0], [1], [0, 0, 1, 1], [], []>} : vector<32x32xf32>, vector<32x32xf32>, vector<32x32xf32> -> vector<32x32xf32>
    %c0_52 = arith.constant 0 : index
    %c0_53 = arith.constant 0 : index
    %c0_54 = arith.constant 0 : index
    %63 = vector.load %arg12[%c0_52, %c0_53, %c0_54] : memref<2x1x32xf32, #tpu.memory_space<vmem>>, vector<1x1x32xf32>
    %64 = vector.shape_cast %63 : vector<1x1x32xf32> to vector<1x32xf32>
    %65 = vector.broadcast %64 : vector<1x32xf32> to vector<32x32xf32>
    %66 = arith.addf %62, %65 : vector<32x32xf32>
    %c0_55 = arith.constant 0 : index
    %c0_56 = arith.constant 0 : index
    %c0_57 = arith.constant 0 : index
    %67 = vector.load %arg13[%c0_55, %c0_56, %c0_57] : memref<2x32x32xf32, #tpu.memory_space<vmem>>, vector<1x32x32xf32>
    %68 = vector.shape_cast %67 : vector<1x32x32xf32> to vector<32x32xf32>
    %cst_58 = arith.constant dense<0.000000e+00> : vector<32x32xf32>
    %69 = tpu.matmul %52, %68, %cst_58 {dimension_numbers = #tpu.dot_dimension_numbers<[1], [0], [0], [1], [0, 0, 1, 1], [], []>} : vector<32x32xf32>, vector<32x32xf32>, vector<32x32xf32> -> vector<32x32xf32>
    %c0_59 = arith.constant 0 : index
    %c0_60 = arith.constant 0 : index
    %c0_61 = arith.constant 0 : index
    %70 = vector.load %arg14[%c0_59, %c0_60, %c0_61] : memref<2x1x32xf32, #tpu.memory_space<vmem>>, vector<1x1x32xf32>
    %71 = vector.shape_cast %70 : vector<1x1x32xf32> to vector<1x32xf32>
    %72 = vector.broadcast %71 : vector<1x32xf32> to vector<32x32xf32>
    %73 = arith.addf %69, %72 : vector<32x32xf32>
    %74 = tpu.transpose %66, [1, 0] : vector<32x32xf32> -> vector<32x32xf32>
    %75 = tpu.concatenate %74, %74, %74, %74 in 1 : vector<32x32xf32>, vector<32x32xf32>, vector<32x32xf32>, vector<32x32xf32> -> vector<32x128xf32>
    %76 = arith.mulf %75, %25 : vector<32x128xf32>
    %cst_62 = arith.constant dense<0.000000e+00> : vector<32x128xf32>
    %77 = tpu.matmul %59, %76, %cst_62 {dimension_numbers = #tpu.dot_dimension_numbers<[1], [0], [0], [1], [0, 0, 1, 1], [], []>} : vector<32x32xf32>, vector<32x128xf32>, vector<32x128xf32> -> vector<32x128xf32>
    %78 = arith.addf %77, %24 : vector<32x128xf32>
    %cst_63 = arith.constant dense<0xFF800000> : vector<32xf32>
    %79 = vector.multi_reduction <maximumf>, %78, %cst_63 [1] : vector<32x128xf32> to vector<32xf32>
    %80 = vector.shape_cast %79 : vector<32xf32> to vector<32x1xf32>
    %81 = vector.broadcast %80 : vector<32x1xf32> to vector<32x128xf32>
    %82 = arith.subf %78, %81 : vector<32x128xf32>
    %83 = math.exp %82 : vector<32x128xf32>
    %84 = tpu.concatenate %73, %73, %73, %73 in 0 : vector<32x32xf32>, vector<32x32xf32>, vector<32x32xf32>, vector<32x32xf32> -> vector<128x32xf32>
    %85 = arith.mulf %84, %26 : vector<128x32xf32>
    %86 = tpu.concatenate %85, %26 in 1 : vector<128x32xf32>, vector<128x32xf32> -> vector<128x64xf32>
    %cst_64 = arith.constant dense<0.000000e+00> : vector<32x64xf32>
    %87 = tpu.matmul %83, %86, %cst_64 {dimension_numbers = #tpu.dot_dimension_numbers<[1], [0], [0], [1], [0, 0, 1, 1], [], []>} : vector<32x128xf32>, vector<128x64xf32>, vector<32x64xf32> -> vector<32x64xf32>
    %88 = vector.extract_strided_slice %87 {offsets = [0, 0], sizes = [32, 32], strides = [1, 1]} : vector<32x64xf32> to vector<32x32xf32>
    %89 = vector.extract_strided_slice %87 {offsets = [0, 32], sizes = [32, 32], strides = [1, 1]} : vector<32x64xf32> to vector<32x32xf32>
    %cst_65 = arith.constant 1.000000e-30 : f32
    %90 = vector.broadcast %cst_65 : f32 to vector<32x32xf32>
    %91 = arith.maximumf %89, %90 : vector<32x32xf32>
    %92 = arith.divf %88, %91 : vector<32x32xf32>
    %c0_66 = arith.constant 0 : index
    %c0_67 = arith.constant 0 : index
    %c0_68 = arith.constant 0 : index
    %93 = vector.load %arg15[%c0_66, %c0_67, %c0_68] : memref<2x32x32xf32, #tpu.memory_space<vmem>>, vector<1x32x32xf32>
    %94 = vector.shape_cast %93 : vector<1x32x32xf32> to vector<32x32xf32>
    %cst_69 = arith.constant dense<0.000000e+00> : vector<32x32xf32>
    %95 = tpu.matmul %92, %94, %cst_69 {dimension_numbers = #tpu.dot_dimension_numbers<[1], [0], [0], [1], [0, 0, 1, 1], [], []>} : vector<32x32xf32>, vector<32x32xf32>, vector<32x32xf32> -> vector<32x32xf32>
    %c0_70 = arith.constant 0 : index
    %c0_71 = arith.constant 0 : index
    %c0_72 = arith.constant 0 : index
    %96 = vector.load %arg16[%c0_70, %c0_71, %c0_72] : memref<2x1x32xf32, #tpu.memory_space<vmem>>, vector<1x1x32xf32>
    %97 = vector.shape_cast %96 : vector<1x1x32xf32> to vector<1x32xf32>
    %98 = vector.broadcast %97 : vector<1x32xf32> to vector<32x32xf32>
    %99 = arith.addf %95, %98 : vector<32x32xf32>
    %100 = arith.addf %22, %99 : vector<32x32xf32>
    %c0_73 = arith.constant 0 : index
    %c0_74 = arith.constant 0 : index
    %c0_75 = arith.constant 0 : index
    %101 = vector.load %arg17[%c0_73, %c0_74, %c0_75] : memref<2x1x32xf32, #tpu.memory_space<vmem>>, vector<1x1x32xf32>
    %102 = vector.shape_cast %101 : vector<1x1x32xf32> to vector<1x32xf32>
    %c0_76 = arith.constant 0 : index
    %c0_77 = arith.constant 0 : index
    %c0_78 = arith.constant 0 : index
    %103 = vector.load %arg18[%c0_76, %c0_77, %c0_78] : memref<2x1x32xf32, #tpu.memory_space<vmem>>, vector<1x1x32xf32>
    %104 = vector.shape_cast %103 : vector<1x1x32xf32> to vector<1x32xf32>
    %cst_79 = arith.constant dense<0.000000e+00> : vector<32xf32>
    %105 = vector.multi_reduction <add>, %100, %cst_79 [1] : vector<32x32xf32> to vector<32xf32>
    %106 = vector.shape_cast %105 : vector<32xf32> to vector<32x1xf32>
    %cst_80 = arith.constant 3.200000e+01 : f32
    %107 = vector.broadcast %cst_80 : f32 to vector<32x1xf32>
    %108 = arith.divf %106, %107 : vector<32x1xf32>
    %109 = vector.broadcast %108 : vector<32x1xf32> to vector<32x32xf32>
    %110 = arith.subf %100, %109 : vector<32x32xf32>
    %111 = arith.mulf %110, %110 : vector<32x32xf32>
    %cst_81 = arith.constant dense<0.000000e+00> : vector<32xf32>
    %112 = vector.multi_reduction <add>, %111, %cst_81 [1] : vector<32x32xf32> to vector<32xf32>
    %113 = vector.shape_cast %112 : vector<32xf32> to vector<32x1xf32>
    %cst_82 = arith.constant 3.200000e+01 : f32
    %114 = vector.broadcast %cst_82 : f32 to vector<32x1xf32>
    %115 = arith.divf %113, %114 : vector<32x1xf32>
    %116 = vector.broadcast %108 : vector<32x1xf32> to vector<32x32xf32>
    %117 = arith.subf %100, %116 : vector<32x32xf32>
    %cst_83 = arith.constant 9.99999974E-6 : f32
    %118 = vector.broadcast %cst_83 : f32 to vector<32x1xf32>
    %119 = arith.addf %115, %118 : vector<32x1xf32>
    %120 = math.rsqrt %119 : vector<32x1xf32>
    %121 = vector.broadcast %120 : vector<32x1xf32> to vector<32x32xf32>
    %122 = arith.mulf %117, %121 : vector<32x32xf32>
    %123 = vector.broadcast %102 : vector<1x32xf32> to vector<32x32xf32>
    %124 = arith.mulf %122, %123 : vector<32x32xf32>
    %125 = vector.broadcast %104 : vector<1x32xf32> to vector<32x32xf32>
    %126 = arith.addf %124, %125 : vector<32x32xf32>
    %c0_84 = arith.constant 0 : index
    %c0_85 = arith.constant 0 : index
    %c0_86 = arith.constant 0 : index
    %127 = vector.load %arg19[%c0_84, %c0_85, %c0_86] : memref<2x32x64xf32, #tpu.memory_space<vmem>>, vector<1x32x64xf32>
    %128 = vector.shape_cast %127 : vector<1x32x64xf32> to vector<32x64xf32>
    %cst_87 = arith.constant dense<0.000000e+00> : vector<32x64xf32>
    %129 = tpu.matmul %126, %128, %cst_87 {dimension_numbers = #tpu.dot_dimension_numbers<[1], [0], [0], [1], [0, 0, 1, 1], [], []>} : vector<32x32xf32>, vector<32x64xf32>, vector<32x64xf32> -> vector<32x64xf32>
    %c0_88 = arith.constant 0 : index
    %c0_89 = arith.constant 0 : index
    %c0_90 = arith.constant 0 : index
    %130 = vector.load %arg20[%c0_88, %c0_89, %c0_90] : memref<2x1x64xf32, #tpu.memory_space<vmem>>, vector<1x1x64xf32>
    %131 = vector.shape_cast %130 : vector<1x1x64xf32> to vector<1x64xf32>
    %132 = vector.broadcast %131 : vector<1x64xf32> to vector<32x64xf32>
    %133 = arith.addf %129, %132 : vector<32x64xf32>
    %cst_91 = arith.constant 0.000000e+00 : f32
    %134 = vector.broadcast %cst_91 : f32 to vector<32x64xf32>
    %135 = arith.maximumf %133, %134 : vector<32x64xf32>
    %c0_92 = arith.constant 0 : index
    %c0_93 = arith.constant 0 : index
    %c0_94 = arith.constant 0 : index
    %136 = vector.load %arg21[%c0_92, %c0_93, %c0_94] : memref<2x64x32xf32, #tpu.memory_space<vmem>>, vector<1x64x32xf32>
    %137 = vector.shape_cast %136 : vector<1x64x32xf32> to vector<64x32xf32>
    %cst_95 = arith.constant dense<0.000000e+00> : vector<32x32xf32>
    %138 = tpu.matmul %135, %137, %cst_95 {dimension_numbers = #tpu.dot_dimension_numbers<[1], [0], [0], [1], [0, 0, 1, 1], [], []>} : vector<32x64xf32>, vector<64x32xf32>, vector<32x32xf32> -> vector<32x32xf32>
    %c0_96 = arith.constant 0 : index
    %c0_97 = arith.constant 0 : index
    %c0_98 = arith.constant 0 : index
    %139 = vector.load %arg22[%c0_96, %c0_97, %c0_98] : memref<2x1x32xf32, #tpu.memory_space<vmem>>, vector<1x1x32xf32>
    %140 = vector.shape_cast %139 : vector<1x1x32xf32> to vector<1x32xf32>
    %141 = vector.broadcast %140 : vector<1x32xf32> to vector<32x32xf32>
    %142 = arith.addf %138, %141 : vector<32x32xf32>
    %143 = arith.addf %100, %142 : vector<32x32xf32>
    %c1_99 = arith.constant 1 : index
    %c0_100 = arith.constant 0 : index
    %c0_101 = arith.constant 0 : index
    %144 = vector.load %arg7[%c1_99, %c0_100, %c0_101] : memref<2x1x32xf32, #tpu.memory_space<vmem>>, vector<1x1x32xf32>
    %145 = vector.shape_cast %144 : vector<1x1x32xf32> to vector<1x32xf32>
    %c1_102 = arith.constant 1 : index
    %c0_103 = arith.constant 0 : index
    %c0_104 = arith.constant 0 : index
    %146 = vector.load %arg8[%c1_102, %c0_103, %c0_104] : memref<2x1x32xf32, #tpu.memory_space<vmem>>, vector<1x1x32xf32>
    %147 = vector.shape_cast %146 : vector<1x1x32xf32> to vector<1x32xf32>
    %cst_105 = arith.constant dense<0.000000e+00> : vector<32xf32>
    %148 = vector.multi_reduction <add>, %143, %cst_105 [1] : vector<32x32xf32> to vector<32xf32>
    %149 = vector.shape_cast %148 : vector<32xf32> to vector<32x1xf32>
    %cst_106 = arith.constant 3.200000e+01 : f32
    %150 = vector.broadcast %cst_106 : f32 to vector<32x1xf32>
    %151 = arith.divf %149, %150 : vector<32x1xf32>
    %152 = vector.broadcast %151 : vector<32x1xf32> to vector<32x32xf32>
    %153 = arith.subf %143, %152 : vector<32x32xf32>
    %154 = arith.mulf %153, %153 : vector<32x32xf32>
    %cst_107 = arith.constant dense<0.000000e+00> : vector<32xf32>
    %155 = vector.multi_reduction <add>, %154, %cst_107 [1] : vector<32x32xf32> to vector<32xf32>
    %156 = vector.shape_cast %155 : vector<32xf32> to vector<32x1xf32>
    %cst_108 = arith.constant 3.200000e+01 : f32
    %157 = vector.broadcast %cst_108 : f32 to vector<32x1xf32>
    %158 = arith.divf %156, %157 : vector<32x1xf32>
    %159 = vector.broadcast %151 : vector<32x1xf32> to vector<32x32xf32>
    %160 = arith.subf %143, %159 : vector<32x32xf32>
    %cst_109 = arith.constant 9.99999974E-6 : f32
    %161 = vector.broadcast %cst_109 : f32 to vector<32x1xf32>
    %162 = arith.addf %158, %161 : vector<32x1xf32>
    %163 = math.rsqrt %162 : vector<32x1xf32>
    %164 = vector.broadcast %163 : vector<32x1xf32> to vector<32x32xf32>
    %165 = arith.mulf %160, %164 : vector<32x32xf32>
    %166 = vector.broadcast %145 : vector<1x32xf32> to vector<32x32xf32>
    %167 = arith.mulf %165, %166 : vector<32x32xf32>
    %168 = vector.broadcast %147 : vector<1x32xf32> to vector<32x32xf32>
    %169 = arith.addf %167, %168 : vector<32x32xf32>
    %c1_110 = arith.constant 1 : index
    %c0_111 = arith.constant 0 : index
    %c0_112 = arith.constant 0 : index
    %170 = vector.load %arg9[%c1_110, %c0_111, %c0_112] : memref<2x32x32xf32, #tpu.memory_space<vmem>>, vector<1x32x32xf32>
    %171 = vector.shape_cast %170 : vector<1x32x32xf32> to vector<32x32xf32>
    %cst_113 = arith.constant dense<0.000000e+00> : vector<32x32xf32>
    %172 = tpu.matmul %169, %171, %cst_113 {dimension_numbers = #tpu.dot_dimension_numbers<[1], [0], [0], [1], [0, 0, 1, 1], [], []>} : vector<32x32xf32>, vector<32x32xf32>, vector<32x32xf32> -> vector<32x32xf32>
    %c1_114 = arith.constant 1 : index
    %c0_115 = arith.constant 0 : index
    %c0_116 = arith.constant 0 : index
    %173 = vector.load %arg10[%c1_114, %c0_115, %c0_116] : memref<2x1x32xf32, #tpu.memory_space<vmem>>, vector<1x1x32xf32>
    %174 = vector.shape_cast %173 : vector<1x1x32xf32> to vector<1x32xf32>
    %175 = vector.broadcast %174 : vector<1x32xf32> to vector<32x32xf32>
    %176 = arith.addf %172, %175 : vector<32x32xf32>
    %c1_117 = arith.constant 1 : index
    %c0_118 = arith.constant 0 : index
    %c0_119 = arith.constant 0 : index
    %177 = vector.load %arg11[%c1_117, %c0_118, %c0_119] : memref<2x32x32xf32, #tpu.memory_space<vmem>>, vector<1x32x32xf32>
    %178 = vector.shape_cast %177 : vector<1x32x32xf32> to vector<32x32xf32>
    %cst_120 = arith.constant dense<0.000000e+00> : vector<32x32xf32>
    %179 = tpu.matmul %169, %178, %cst_120 {dimension_numbers = #tpu.dot_dimension_numbers<[1], [0], [0], [1], [0, 0, 1, 1], [], []>} : vector<32x32xf32>, vector<32x32xf32>, vector<32x32xf32> -> vector<32x32xf32>
    %c1_121 = arith.constant 1 : index
    %c0_122 = arith.constant 0 : index
    %c0_123 = arith.constant 0 : index
    %180 = vector.load %arg12[%c1_121, %c0_122, %c0_123] : memref<2x1x32xf32, #tpu.memory_space<vmem>>, vector<1x1x32xf32>
    %181 = vector.shape_cast %180 : vector<1x1x32xf32> to vector<1x32xf32>
    %182 = vector.broadcast %181 : vector<1x32xf32> to vector<32x32xf32>
    %183 = arith.addf %179, %182 : vector<32x32xf32>
    %c1_124 = arith.constant 1 : index
    %c0_125 = arith.constant 0 : index
    %c0_126 = arith.constant 0 : index
    %184 = vector.load %arg13[%c1_124, %c0_125, %c0_126] : memref<2x32x32xf32, #tpu.memory_space<vmem>>, vector<1x32x32xf32>
    %185 = vector.shape_cast %184 : vector<1x32x32xf32> to vector<32x32xf32>
    %cst_127 = arith.constant dense<0.000000e+00> : vector<32x32xf32>
    %186 = tpu.matmul %169, %185, %cst_127 {dimension_numbers = #tpu.dot_dimension_numbers<[1], [0], [0], [1], [0, 0, 1, 1], [], []>} : vector<32x32xf32>, vector<32x32xf32>, vector<32x32xf32> -> vector<32x32xf32>
    %c1_128 = arith.constant 1 : index
    %c0_129 = arith.constant 0 : index
    %c0_130 = arith.constant 0 : index
    %187 = vector.load %arg14[%c1_128, %c0_129, %c0_130] : memref<2x1x32xf32, #tpu.memory_space<vmem>>, vector<1x1x32xf32>
    %188 = vector.shape_cast %187 : vector<1x1x32xf32> to vector<1x32xf32>
    %189 = vector.broadcast %188 : vector<1x32xf32> to vector<32x32xf32>
    %190 = arith.addf %186, %189 : vector<32x32xf32>
    %191 = tpu.transpose %183, [1, 0] : vector<32x32xf32> -> vector<32x32xf32>
    %192 = tpu.concatenate %191, %191, %191, %191 in 1 : vector<32x32xf32>, vector<32x32xf32>, vector<32x32xf32>, vector<32x32xf32> -> vector<32x128xf32>
    %193 = arith.mulf %192, %25 : vector<32x128xf32>
    %cst_131 = arith.constant dense<0.000000e+00> : vector<32x128xf32>
    %194 = tpu.matmul %176, %193, %cst_131 {dimension_numbers = #tpu.dot_dimension_numbers<[1], [0], [0], [1], [0, 0, 1, 1], [], []>} : vector<32x32xf32>, vector<32x128xf32>, vector<32x128xf32> -> vector<32x128xf32>
    %195 = arith.addf %194, %24 : vector<32x128xf32>
    %cst_132 = arith.constant dense<0xFF800000> : vector<32xf32>
    %196 = vector.multi_reduction <maximumf>, %195, %cst_132 [1] : vector<32x128xf32> to vector<32xf32>
    %197 = vector.shape_cast %196 : vector<32xf32> to vector<32x1xf32>
    %198 = vector.broadcast %197 : vector<32x1xf32> to vector<32x128xf32>
    %199 = arith.subf %195, %198 : vector<32x128xf32>
    %200 = math.exp %199 : vector<32x128xf32>
    %201 = tpu.concatenate %190, %190, %190, %190 in 0 : vector<32x32xf32>, vector<32x32xf32>, vector<32x32xf32>, vector<32x32xf32> -> vector<128x32xf32>
    %202 = arith.mulf %201, %26 : vector<128x32xf32>
    %203 = tpu.concatenate %202, %26 in 1 : vector<128x32xf32>, vector<128x32xf32> -> vector<128x64xf32>
    %cst_133 = arith.constant dense<0.000000e+00> : vector<32x64xf32>
    %204 = tpu.matmul %200, %203, %cst_133 {dimension_numbers = #tpu.dot_dimension_numbers<[1], [0], [0], [1], [0, 0, 1, 1], [], []>} : vector<32x128xf32>, vector<128x64xf32>, vector<32x64xf32> -> vector<32x64xf32>
    %205 = vector.extract_strided_slice %204 {offsets = [0, 0], sizes = [32, 32], strides = [1, 1]} : vector<32x64xf32> to vector<32x32xf32>
    %206 = vector.extract_strided_slice %204 {offsets = [0, 32], sizes = [32, 32], strides = [1, 1]} : vector<32x64xf32> to vector<32x32xf32>
    %cst_134 = arith.constant 1.000000e-30 : f32
    %207 = vector.broadcast %cst_134 : f32 to vector<32x32xf32>
    %208 = arith.maximumf %206, %207 : vector<32x32xf32>
    %209 = arith.divf %205, %208 : vector<32x32xf32>
    %c1_135 = arith.constant 1 : index
    %c0_136 = arith.constant 0 : index
    %c0_137 = arith.constant 0 : index
    %210 = vector.load %arg15[%c1_135, %c0_136, %c0_137] : memref<2x32x32xf32, #tpu.memory_space<vmem>>, vector<1x32x32xf32>
    %211 = vector.shape_cast %210 : vector<1x32x32xf32> to vector<32x32xf32>
    %cst_138 = arith.constant dense<0.000000e+00> : vector<32x32xf32>
    %212 = tpu.matmul %209, %211, %cst_138 {dimension_numbers = #tpu.dot_dimension_numbers<[1], [0], [0], [1], [0, 0, 1, 1], [], []>} : vector<32x32xf32>, vector<32x32xf32>, vector<32x32xf32> -> vector<32x32xf32>
    %c1_139 = arith.constant 1 : index
    %c0_140 = arith.constant 0 : index
    %c0_141 = arith.constant 0 : index
    %213 = vector.load %arg16[%c1_139, %c0_140, %c0_141] : memref<2x1x32xf32, #tpu.memory_space<vmem>>, vector<1x1x32xf32>
    %214 = vector.shape_cast %213 : vector<1x1x32xf32> to vector<1x32xf32>
    %215 = vector.broadcast %214 : vector<1x32xf32> to vector<32x32xf32>
    %216 = arith.addf %212, %215 : vector<32x32xf32>
    %217 = arith.addf %143, %216 : vector<32x32xf32>
    %c1_142 = arith.constant 1 : index
    %c0_143 = arith.constant 0 : index
    %c0_144 = arith.constant 0 : index
    %218 = vector.load %arg17[%c1_142, %c0_143, %c0_144] : memref<2x1x32xf32, #tpu.memory_space<vmem>>, vector<1x1x32xf32>
    %219 = vector.shape_cast %218 : vector<1x1x32xf32> to vector<1x32xf32>
    %c1_145 = arith.constant 1 : index
    %c0_146 = arith.constant 0 : index
    %c0_147 = arith.constant 0 : index
    %220 = vector.load %arg18[%c1_145, %c0_146, %c0_147] : memref<2x1x32xf32, #tpu.memory_space<vmem>>, vector<1x1x32xf32>
    %221 = vector.shape_cast %220 : vector<1x1x32xf32> to vector<1x32xf32>
    %cst_148 = arith.constant dense<0.000000e+00> : vector<32xf32>
    %222 = vector.multi_reduction <add>, %217, %cst_148 [1] : vector<32x32xf32> to vector<32xf32>
    %223 = vector.shape_cast %222 : vector<32xf32> to vector<32x1xf32>
    %cst_149 = arith.constant 3.200000e+01 : f32
    %224 = vector.broadcast %cst_149 : f32 to vector<32x1xf32>
    %225 = arith.divf %223, %224 : vector<32x1xf32>
    %226 = vector.broadcast %225 : vector<32x1xf32> to vector<32x32xf32>
    %227 = arith.subf %217, %226 : vector<32x32xf32>
    %228 = arith.mulf %227, %227 : vector<32x32xf32>
    %cst_150 = arith.constant dense<0.000000e+00> : vector<32xf32>
    %229 = vector.multi_reduction <add>, %228, %cst_150 [1] : vector<32x32xf32> to vector<32xf32>
    %230 = vector.shape_cast %229 : vector<32xf32> to vector<32x1xf32>
    %cst_151 = arith.constant 3.200000e+01 : f32
    %231 = vector.broadcast %cst_151 : f32 to vector<32x1xf32>
    %232 = arith.divf %230, %231 : vector<32x1xf32>
    %233 = vector.broadcast %225 : vector<32x1xf32> to vector<32x32xf32>
    %234 = arith.subf %217, %233 : vector<32x32xf32>
    %cst_152 = arith.constant 9.99999974E-6 : f32
    %235 = vector.broadcast %cst_152 : f32 to vector<32x1xf32>
    %236 = arith.addf %232, %235 : vector<32x1xf32>
    %237 = math.rsqrt %236 : vector<32x1xf32>
    %238 = vector.broadcast %237 : vector<32x1xf32> to vector<32x32xf32>
    %239 = arith.mulf %234, %238 : vector<32x32xf32>
    %240 = vector.broadcast %219 : vector<1x32xf32> to vector<32x32xf32>
    %241 = arith.mulf %239, %240 : vector<32x32xf32>
    %242 = vector.broadcast %221 : vector<1x32xf32> to vector<32x32xf32>
    %243 = arith.addf %241, %242 : vector<32x32xf32>
    %c1_153 = arith.constant 1 : index
    %c0_154 = arith.constant 0 : index
    %c0_155 = arith.constant 0 : index
    %244 = vector.load %arg19[%c1_153, %c0_154, %c0_155] : memref<2x32x64xf32, #tpu.memory_space<vmem>>, vector<1x32x64xf32>
    %245 = vector.shape_cast %244 : vector<1x32x64xf32> to vector<32x64xf32>
    %cst_156 = arith.constant dense<0.000000e+00> : vector<32x64xf32>
    %246 = tpu.matmul %243, %245, %cst_156 {dimension_numbers = #tpu.dot_dimension_numbers<[1], [0], [0], [1], [0, 0, 1, 1], [], []>} : vector<32x32xf32>, vector<32x64xf32>, vector<32x64xf32> -> vector<32x64xf32>
    %c1_157 = arith.constant 1 : index
    %c0_158 = arith.constant 0 : index
    %c0_159 = arith.constant 0 : index
    %247 = vector.load %arg20[%c1_157, %c0_158, %c0_159] : memref<2x1x64xf32, #tpu.memory_space<vmem>>, vector<1x1x64xf32>
    %248 = vector.shape_cast %247 : vector<1x1x64xf32> to vector<1x64xf32>
    %249 = vector.broadcast %248 : vector<1x64xf32> to vector<32x64xf32>
    %250 = arith.addf %246, %249 : vector<32x64xf32>
    %cst_160 = arith.constant 0.000000e+00 : f32
    %251 = vector.broadcast %cst_160 : f32 to vector<32x64xf32>
    %252 = arith.maximumf %250, %251 : vector<32x64xf32>
    %c1_161 = arith.constant 1 : index
    %c0_162 = arith.constant 0 : index
    %c0_163 = arith.constant 0 : index
    %253 = vector.load %arg21[%c1_161, %c0_162, %c0_163] : memref<2x64x32xf32, #tpu.memory_space<vmem>>, vector<1x64x32xf32>
    %254 = vector.shape_cast %253 : vector<1x64x32xf32> to vector<64x32xf32>
    %cst_164 = arith.constant dense<0.000000e+00> : vector<32x32xf32>
    %255 = tpu.matmul %252, %254, %cst_164 {dimension_numbers = #tpu.dot_dimension_numbers<[1], [0], [0], [1], [0, 0, 1, 1], [], []>} : vector<32x64xf32>, vector<64x32xf32>, vector<32x32xf32> -> vector<32x32xf32>
    %c1_165 = arith.constant 1 : index
    %c0_166 = arith.constant 0 : index
    %c0_167 = arith.constant 0 : index
    %256 = vector.load %arg22[%c1_165, %c0_166, %c0_167] : memref<2x1x32xf32, #tpu.memory_space<vmem>>, vector<1x1x32xf32>
    %257 = vector.shape_cast %256 : vector<1x1x32xf32> to vector<1x32xf32>
    %258 = vector.broadcast %257 : vector<1x32xf32> to vector<32x32xf32>
    %259 = arith.addf %255, %258 : vector<32x32xf32>
    %260 = arith.addf %217, %259 : vector<32x32xf32>
    %261 = vector.extract_strided_slice %260 {offsets = [8, 0], sizes = [8, 32], strides = [1, 1]} : vector<32x32xf32> to vector<8x32xf32>
    %262 = vector.extract_strided_slice %260 {offsets = [24, 0], sizes = [8, 32], strides = [1, 1]} : vector<32x32xf32> to vector<8x32xf32>
    %263 = tpu.concatenate %261, %262 in 0 : vector<8x32xf32>, vector<8x32xf32> -> vector<16x32xf32>
    %c0_168 = arith.constant 0 : index
    %c0_169 = arith.constant 0 : index
    %264 = vector.load %arg23[%c0_168, %c0_169] : memref<1x32xf32, #tpu.memory_space<vmem>>, vector<1x32xf32>
    %c0_170 = arith.constant 0 : index
    %c0_171 = arith.constant 0 : index
    %265 = vector.load %arg24[%c0_170, %c0_171] : memref<1x32xf32, #tpu.memory_space<vmem>>, vector<1x32xf32>
    %cst_172 = arith.constant dense<0.000000e+00> : vector<16xf32>
    %266 = vector.multi_reduction <add>, %263, %cst_172 [1] : vector<16x32xf32> to vector<16xf32>
    %267 = vector.shape_cast %266 : vector<16xf32> to vector<16x1xf32>
    %cst_173 = arith.constant 3.200000e+01 : f32
    %268 = vector.broadcast %cst_173 : f32 to vector<16x1xf32>
    %269 = arith.divf %267, %268 : vector<16x1xf32>
    %270 = vector.broadcast %269 : vector<16x1xf32> to vector<16x32xf32>
    %271 = arith.subf %263, %270 : vector<16x32xf32>
    %272 = arith.mulf %271, %271 : vector<16x32xf32>
    %cst_174 = arith.constant dense<0.000000e+00> : vector<16xf32>
    %273 = vector.multi_reduction <add>, %272, %cst_174 [1] : vector<16x32xf32> to vector<16xf32>
    %274 = vector.shape_cast %273 : vector<16xf32> to vector<16x1xf32>
    %cst_175 = arith.constant 3.200000e+01 : f32
    %275 = vector.broadcast %cst_175 : f32 to vector<16x1xf32>
    %276 = arith.divf %274, %275 : vector<16x1xf32>
    %277 = vector.broadcast %269 : vector<16x1xf32> to vector<16x32xf32>
    %278 = arith.subf %263, %277 : vector<16x32xf32>
    %cst_176 = arith.constant 9.99999974E-6 : f32
    %279 = vector.broadcast %cst_176 : f32 to vector<16x1xf32>
    %280 = arith.addf %276, %279 : vector<16x1xf32>
    %281 = math.rsqrt %280 : vector<16x1xf32>
    %282 = vector.broadcast %281 : vector<16x1xf32> to vector<16x32xf32>
    %283 = arith.mulf %278, %282 : vector<16x32xf32>
    %284 = vector.broadcast %264 : vector<1x32xf32> to vector<16x32xf32>
    %285 = arith.mulf %283, %284 : vector<16x32xf32>
    %286 = vector.broadcast %265 : vector<1x32xf32> to vector<16x32xf32>
    %287 = arith.addf %285, %286 : vector<16x32xf32>
    %c0_177 = arith.constant 0 : index
    %c0_178 = arith.constant 0 : index
    %288 = vector.load %arg25[%c0_177, %c0_178] : memref<32x128xf32, #tpu.memory_space<vmem>>, vector<32x128xf32>
    %cst_179 = arith.constant dense<0.000000e+00> : vector<16x128xf32>
    %289 = tpu.matmul %287, %288, %cst_179 {dimension_numbers = #tpu.dot_dimension_numbers<[1], [0], [0], [1], [0, 0, 1, 1], [], []>} : vector<16x32xf32>, vector<32x128xf32>, vector<16x128xf32> -> vector<16x128xf32>
    %c0_180 = arith.constant 0 : index
    %c0_181 = arith.constant 0 : index
    %290 = vector.load %arg26[%c0_180, %c0_181] : memref<1x128xf32, #tpu.memory_space<vmem>>, vector<1x128xf32>
    %291 = vector.broadcast %290 : vector<1x128xf32> to vector<16x128xf32>
    %292 = arith.addf %289, %291 : vector<16x128xf32>
    %c0_182 = arith.constant 0 : index
    %c0_183 = arith.constant 0 : index
    %293 = vector.load %arg27[%c0_182, %c0_183] : memref<16x128xf32, #tpu.memory_space<vmem>>, vector<16x128xf32>
    tpu.vector_store %arg27[%c0_182, %c0_183], %292 {strides = array<i32>} : memref<16x128xf32, #tpu.memory_space<vmem>>, vector<16x128xf32>,
    return
  }
}

</mosaic_0001>

<llo_original>
// kernel: _lambda_.1
$region0: #{_lambda_.1}
  #allocation0 [shape = 'u32[]', space=smem, size = 0x4, offset = 0x4, fixed_abs, tag = 'smem constant byte address 0x4 - core index']
  #allocation1 [shape = 'u32[144,128]{1,0:T(1,128)}', space=vmem, size = 0x12000, scoped, tag = 'internal scratch']
  %s0 = inlined_call_operand.vmem [shape: f32[16,4], index: 0, kind: input, shape index: {}]
  %s1 = inlined_call_operand.hbm [shape: f32[3,4,32], index: 1, kind: input, shape index: {}]
  %s2 = inlined_call_operand.hbm [shape: f32[3,32,16], index: 2, kind: input, shape index: {}]
  %s3 = inlined_call_operand.hbm [shape: f32[32,32], index: 3, kind: input, shape index: {}]
  %s4 = inlined_call_operand.hbm [shape: f32[32,32], index: 4, kind: input, shape index: {}]
  %s5 = inlined_call_operand.hbm [shape: f32[32,128], index: 5, kind: input, shape index: {}]
  %s6 = inlined_call_operand.hbm [shape: f32[128,32], index: 6, kind: input, shape index: {}]
  %s7 = inlined_call_operand.vmem [shape: f32[2,1,32], index: 7, kind: input, shape index: {}, may-alias: {7,17}]
  %s8 = inlined_call_operand.vmem [shape: f32[2,1,32], index: 8, kind: input, shape index: {}, may-alias: {8,18}]
  %s9 = inlined_call_operand.hbm [shape: f32[2,32,32], index: 9, kind: input, shape index: {}]
  %s10 = inlined_call_operand.hbm [shape: f32[2,1,32], index: 10, kind: input, shape index: {}]
  %s11 = inlined_call_operand.hbm [shape: f32[2,32,32], index: 11, kind: input, shape index: {}]
  %s12 = inlined_call_operand.vmem [shape: f32[2,1,32], index: 12, kind: input, shape index: {}]
  %s13 = inlined_call_operand.hbm [shape: f32[2,32,32], index: 13, kind: input, shape index: {}]
  %s14 = inlined_call_operand.vmem [shape: f32[2,1,32], index: 14, kind: input, shape index: {}]
  %s15 = inlined_call_operand.hbm [shape: f32[2,32,32], index: 15, kind: input, shape index: {}]
  %s16 = inlined_call_operand.vmem [shape: f32[2,1,32], index: 16, kind: input, shape index: {}]
  %s17 = inlined_call_operand.vmem [shape: f32[2,1,32], index: 17, kind: input, shape index: {}, may-alias: {7,17}]
  %s18 = inlined_call_operand.vmem [shape: f32[2,1,32], index: 18, kind: input, shape index: {}, may-alias: {8,18}]
  %s19 = inlined_call_operand.vmem [shape: f32[2,32,64], index: 19, kind: input, shape index: {}]
  %s20 = inlined_call_operand.vmem [shape: f32[2,1,64], index: 20, kind: input, shape index: {}]
  %s21 = inlined_call_operand.hbm [shape: f32[2,64,32], index: 21, kind: input, shape index: {}]
  %s22 = inlined_call_operand.vmem [shape: f32[2,1,32], index: 22, kind: input, shape index: {}]
  %s23 = inlined_call_operand.vmem [shape: f32[1,32], index: 23, kind: input, shape index: {}]
  %s24 = inlined_call_operand.vmem [shape: f32[1,32], index: 24, kind: input, shape index: {}]
  %s25 = inlined_call_operand.vmem [shape: f32[32,128], index: 25, kind: input, shape index: {}]
  %s26 = inlined_call_operand.vmem [shape: f32[1,128], index: 26, kind: input, shape index: {}]
  %s27 = inlined_call_operand.vmem [shape: f32[16,128], index: 27, kind: output, shape index: {}]
  %s28 = sld [smem:[#allocation0]]
  $region166: #{_lambda_.1} parent=0
    _
  %s30 = ssub.s32 1, %s28
  %s31 = scalar_select 0, %s30, %s28
  $region1: #{_lambda_.1} parent=0
    #allocation2 [shape = 'u8[6144]{0}', space=vmem, size = 0x1800, scoped, tag = 'input window, operand 1, single buffered']
    #allocation3 [shape = 's32[1]{0}', space=sflag, size = 0x4, scoped, tag = 'scoped memory for _lambda_.1']
    #allocation4 [shape = 'u8[49152]{0}', space=vmem, size = 0xc000, scoped, tag = 'input window, operand 2, single buffered']
    #allocation5 [shape = 's32[1]{0}', space=sflag, size = 0x4, scoped, tag = 'scoped memory for _lambda_.1']
    #allocation6 [shape = 'u8[16384]{0}', space=vmem, size = 0x4000, scoped, tag = 'input window, operand 3, single buffered']
    #allocation7 [shape = 'u8[16384]{0}', space=vmem, size = 0x4000, scoped, tag = 'input window, operand 4, single buffered']
    #allocation8 [shape = 's32[1]{0}', space=sflag, size = 0x4, scoped, tag = 'scoped memory for _lambda_.1']
    #allocation9 [shape = 'u8[16384]{0}', space=vmem, size = 0x4000, scoped, tag = 'input window, operand 5, single buffered']
    #allocation10 [shape = 'u8[65536]{0}', space=vmem, size = 0x10000, scoped, tag = 'input window, operand 6, single buffered']
    #allocation11 [shape = 's32[1]{0}', space=sflag, size = 0x4, scoped, tag = 'scoped memory for _lambda_.1']
    #allocation12 [shape = 'u8[32768]{0}', space=vmem, size = 0x8000, scoped, tag = 'input window, operand 9, single buffered']
    #allocation13 [shape = 'u8[1024]{0}', space=vmem, size = 0x400, scoped, tag = 'input window, operand 10, single buffered']
    #allocation14 [shape = 's32[1]{0}', space=sflag, size = 0x4, scoped, tag = 'scoped memory for _lambda_.1']
    #allocation15 [shape = 'u8[32768]{0}', space=vmem, size = 0x8000, scoped, tag = 'input window, operand 11, single buffered']
    #allocation16 [shape = 'u8[32768]{0}', space=vmem, size = 0x8000, scoped, tag = 'input window, operand 13, single buffered']
    #allocation17 [shape = 's32[1]{0}', space=sflag, size = 0x4, scoped, tag = 'scoped memory for _lambda_.1']
    #allocation18 [shape = 'u8[32768]{0}', space=vmem, size = 0x8000, scoped, tag = 'input window, operand 15, single buffered']
    #allocation19 [shape = 'u8[65536]{0}', space=vmem, size = 0x10000, scoped, tag = 'input window, operand 21, single buffered']
    #allocation20 [shape = 's32[1]{0}', space=sflag, size = 0x4, scoped, tag = 'scoped memory for _lambda_.1']
    %32 = vsyncpa [#allocation3], 0
    %33 = vsyncpa [#allocation5], 0
    %34 = vsyncpa [#allocation8], 0
    %35 = vsyncpa [#allocation11], 0
    %36 = vsyncpa [#allocation14], 0
    %37 = vsyncpa [#allocation17], 0
    %38 = vsyncpa [#allocation20], 0
    // Predicated region
    $region2: #{_lambda_.1} parent=1 // pred_check
      _
    $region3: #{_lambda_.1} parent=1 // pred_check_branch
      %40 = sbr.rel (0) target = $region5
    $region4: #{_lambda_.1} parent=1 // pred_region
      _
    $region5: #{_lambda_.1} parent=1 // pred_fallthru
      _
    // Predicated region
    $region6: #{_lambda_.1} parent=1 // pred_check
      _
    $region7: #{_lambda_.1} parent=1 // pred_check_branch
      %42 = sbr.rel (0) target = $region9
    $region8: #{_lambda_.1} parent=1 // pred_region
      %s44 = ssub.s32 192, 192
      %45 = vsyncadd [#allocation3], %s44
      %s46 = sshll.u32 [#allocation2], 4
      %s47 = int_to_ptr.vmem [resolvable:$true] %s46
      %52 = dma.hbm_to_vmem [thread:$0]  %s1, 192, %s47, [#allocation3], 64, 64, 4
    $region9: #{_lambda_.1} parent=1 // pred_fallthru
      _
    // Predicated region
    $region10: #{_lambda_.1} parent=1 // pred_check
      _
    $region11: #{_lambda_.1} parent=1 // pred_check_branch
      %54 = sbr.rel (0) target = $region13
    $region12: #{_lambda_.1} parent=1 // pred_region
      %s56 = ssub.s32 1536, 1536
      %57 = vsyncadd [#allocation5], %s56
      %s58 = sshll.u32 [#allocation4], 4
      %s59 = int_to_ptr.vmem [resolvable:$true] %s58
      %64 = dma.hbm_to_vmem [thread:$0]  %s2, 1536, %s59, [#allocation5], 128, 128, 8
    $region13: #{_lambda_.1} parent=1 // pred_fallthru
      _
    // Predicated region
    $region14: #{_lambda_.1} parent=1 // pred_check
      _
    $region15: #{_lambda_.1} parent=1 // pred_check_branch
      %66 = sbr.rel (0) target = $region17
    $region16: #{_lambda_.1} parent=1 // pred_region
      %s68 = ssub.s32 512, 512
      %69 = vsyncadd [#allocation5], %s68
      %s70 = sshll.u32 [#allocation6], 4
      %s71 = int_to_ptr.vmem [resolvable:$true] %s70
      %76 = dma.hbm_to_vmem [thread:$0]  %s3, 512, %s71, [#allocation5], 128, 128, 8
    $region17: #{_lambda_.1} parent=1 // pred_fallthru
      _
    // Predicated region
    $region18: #{_lambda_.1} parent=1 // pred_check
      _
    $region19: #{_lambda_.1} parent=1 // pred_check_branch
      %78 = sbr.rel (0) target = $region21
    $region20: #{_lambda_.1} parent=1 // pred_region
      %s80 = ssub.s32 512, 512
      %81 = vsyncadd [#allocation8], %s80
      %s82 = sshll.u32 [#allocation7], 4
      %s83 = int_to_ptr.vmem [resolvable:$true] %s82
      %88 = dma.hbm_to_vmem [thread:$0]  %s4, 512, %s83, [#allocation8], 128, 128, 8
    $region21: #{_lambda_.1} parent=1 // pred_fallthru
      _
    // Predicated region
    $region22: #{_lambda_.1} parent=1 // pred_check
      _
    $region23: #{_lambda_.1} parent=1 // pred_check_branch
      %90 = sbr.rel (0) target = $region25
    $region24: #{_lambda_.1} parent=1 // pred_region
      %s92 = ssub.s32 512, 512
      %93 = vsyncadd [#allocation8], %s92
      %s94 = sshll.u32 [#allocation9], 4
      %s95 = int_to_ptr.vmem [resolvable:$true] %s94
      %100 = dma.hbm_to_vmem [thread:$0]  %s5, 512, %s95, [#allocation8], 128, 128, 8
    $region25: #{_lambda_.1} parent=1 // pred_fallthru
      _
    // Predicated region
    $region26: #{_lambda_.1} parent=1 // pred_check
      _
    $region27: #{_lambda_.1} parent=1 // pred_check_branch
      %102 = sbr.rel (0) target = $region29
    $region28: #{_lambda_.1} parent=1 // pred_region
      %s104 = ssub.s32 2048, 2048
      %105 = vsyncadd [#allocation11], %s104
      %s106 = sshll.u32 [#allocation10], 4
      %s107 = int_to_ptr.vmem [resolvable:$true] %s106
      %112 = dma.hbm_to_vmem [thread:$0]  %s6, 2048, %s107, [#allocation11], 128, 128, 8
    $region29: #{_lambda_.1} parent=1 // pred_fallthru
      _
    // Predicated region
    $region30: #{_lambda_.1} parent=1 // pred_check
      _
    $region31: #{_lambda_.1} parent=1 // pred_check_branch
      %114 = sbr.rel (0) target = $region33
    $region32: #{_lambda_.1} parent=1 // pred_region
      _
    $region33: #{_lambda_.1} parent=1 // pred_fallthru
      _
    // Predicated region
    $region34: #{_lambda_.1} parent=1 // pred_check
      _
    $region35: #{_lambda_.1} parent=1 // pred_check_branch
      %116 = sbr.rel (0) target = $region37
    $region36: #{_lambda_.1} parent=1 // pred_region
      _
    $region37: #{_lambda_.1} parent=1 // pred_fallthru
      _
    // Predicated region
    $region38: #{_lambda_.1} parent=1 // pred_check
      _
    $region39: #{_lambda_.1} parent=1 // pred_check_branch
      %118 = sbr.rel (0) target = $region41
    $region40: #{_lambda_.1} parent=1 // pred_region
      %s120 = ssub.s32 1024, 1024
      %121 = vsyncadd [#allocation11], %s120
      %s122 = sshll.u32 [#allocation12], 4
      %s123 = int_to_ptr.vmem [resolvable:$true] %s122
      %128 = dma.hbm_to_vmem [thread:$0]  %s9, 1024, %s123, [#allocation11], 128, 128, 8
    $region41: #{_lambda_.1} parent=1 // pred_fallthru
      _
    // Predicated region
    $region42: #{_lambda_.1} parent=1 // pred_check
      _
    $region43: #{_lambda_.1} parent=1 // pred_check_branch
      %130 = sbr.rel (0) target = $region45
    $region44: #{_lambda_.1} parent=1 // pred_region
      %s132 = ssub.s32 32, 32
      %133 = vsyncadd [#allocation14], %s132
      %s134 = sshll.u32 [#allocation13], 4
      %s135 = int_to_ptr.vmem [resolvable:$true] %s134
      %140 = dma.hbm_to_vmem [thread:$0]  %s10, 32, %s135, [#allocation14], 16, 16, 1
    $region45: #{_lambda_.1} parent=1 // pred_fallthru
      _
    // Predicated region
    $region46: #{_lambda_.1} parent=1 // pred_check
      _
    $region47: #{_lambda_.1} parent=1 // pred_check_branch
      %142 = sbr.rel (0) target = $region49
    $region48: #{_lambda_.1} parent=1 // pred_region
      %s144 = ssub.s32 1024, 1024
      %145 = vsyncadd [#allocation14], %s144
      %s146 = sshll.u32 [#allocation15], 4
      %s147 = int_to_ptr.vmem [resolvable:$true] %s146
      %152 = dma.hbm_to_vmem [thread:$0]  %s11, 1024, %s147, [#allocation14], 128, 128, 8
    $region49: #{_lambda_.1} parent=1 // pred_fallthru
      _
    // Predicated region
    $region50: #{_lambda_.1} parent=1 // pred_check
      _
    $region51: #{_lambda_.1} parent=1 // pred_check_branch
      %154 = sbr.rel (0) target = $region53
    $region52: #{_lambda_.1} parent=1 // pred_region
      _
    $region53: #{_lambda_.1} parent=1 // pred_fallthru
      _
    // Predicated region
    $region54: #{_lambda_.1} parent=1 // pred_check
      _
    $region55: #{_lambda_.1} parent=1 // pred_check_branch
      %156 = sbr.rel (0) target = $region57
    $region56: #{_lambda_.1} parent=1 // pred_region
      %s158 = ssub.s32 1024, 1024
      %159 = vsyncadd [#allocation17], %s158
      %s160 = sshll.u32 [#allocation16], 4
      %s161 = int_to_ptr.vmem [resolvable:$true] %s160
      %166 = dma.hbm_to_vmem [thread:$0]  %s13, 1024, %s161, [#allocation17], 128, 128, 8
    $region57: #{_lambda_.1} parent=1 // pred_fallthru
      _
    // Predicated region
    $region58: #{_lambda_.1} parent=1 // pred_check
      _
    $region59: #{_lambda_.1} parent=1 // pred_check_branch
      %168 = sbr.rel (0) target = $region61
    $region60: #{_lambda_.1} parent=1 // pred_region
      _
    $region61: #{_lambda_.1} parent=1 // pred_fallthru
      _
    // Predicated region
    $region62: #{_lambda_.1} parent=1 // pred_check
      _
    $region63: #{_lambda_.1} parent=1 // pred_check_branch
      %170 = sbr.rel (0) target = $region65
    $region64: #{_lambda_.1} parent=1 // pred_region
      %s172 = ssub.s32 1024, 1024
      %173 = vsyncadd [#allocation17], %s172
      %s174 = sshll.u32 [#allocation18], 4
      %s175 = int_to_ptr.vmem [resolvable:$true] %s174
      %180 = dma.hbm_to_vmem [thread:$0]  %s15, 1024, %s175, [#allocation17], 128, 128, 8
    $region65: #{_lambda_.1} parent=1 // pred_fallthru
      _
    // Predicated region
    $region66: #{_lambda_.1} parent=1 // pred_check
      _
    $region67: #{_lambda_.1} parent=1 // pred_check_branch
      %182 = sbr.rel (0) target = $region69
    $region68: #{_lambda_.1} parent=1 // pred_region
      _
    $region69: #{_lambda_.1} parent=1 // pred_fallthru
      _
    // Predicated region
    $region70: #{_lambda_.1} parent=1 // pred_check
      _
    $region71: #{_lambda_.1} parent=1 // pred_check_branch
      %184 = sbr.rel (0) target = $region73
    $region72: #{_lambda_.1} parent=1 // pred_region
      _
    $region73: #{_lambda_.1} parent=1 // pred_fallthru
      _
    // Predicated region
    $region74: #{_lambda_.1} parent=1 // pred_check
      _
    $region75: #{_lambda_.1} parent=1 // pred_check_branch
      %186 = sbr.rel (0) target = $region77
    $region76: #{_lambda_.1} parent=1 // pred_region
      _
    $region77: #{_lambda_.1} parent=1 // pred_fallthru
      _
    // Predicated region
    $region78: #{_lambda_.1} parent=1 // pred_check
      _
    $region79: #{_lambda_.1} parent=1 // pred_check_branch
      %188 = sbr.rel (0) target = $region81
    $region80: #{_lambda_.1} parent=1 // pred_region
      _
    $region81: #{_lambda_.1} parent=1 // pred_fallthru
      _
    // Predicated region
    $region82: #{_lambda_.1} parent=1 // pred_check
      _
    $region83: #{_lambda_.1} parent=1 // pred_check_branch
      %190 = sbr.rel (0) target = $region85
    $region84: #{_lambda_.1} parent=1 // pred_region
      _
    $region85: #{_lambda_.1} parent=1 // pred_fallthru
      _
    // Predicated region
    $region86: #{_lambda_.1} parent=1 // pred_check
      _
    $region87: #{_lambda_.1} parent=1 // pred_check_branch
      %192 = sbr.rel (0) target = $region89
    $region88: #{_lambda_.1} parent=1 // pred_region
      %s194 = ssub.s32 2048, 2048
      %195 = vsyncadd [#allocation20], %s194
      %s196 = sshll.u32 [#allocation19], 4
      %s197 = int_to_ptr.vmem [resolvable:$true] %s196
      %202 = dma.hbm_to_vmem [thread:$0]  %s21, 2048, %s197, [#allocation20], 128, 128, 8
    $region89: #{_lambda_.1} parent=1 // pred_fallthru
      _
    // Predicated region
    $region90: #{_lambda_.1} parent=1 // pred_check
      _
    $region91: #{_lambda_.1} parent=1 // pred_check_branch
      %204 = sbr.rel (0) target = $region93
    $region92: #{_lambda_.1} parent=1 // pred_region
      _
    $region93: #{_lambda_.1} parent=1 // pred_fallthru
      _
    // Predicated region
    $region94: #{_lambda_.1} parent=1 // pred_check
      _
    $region95: #{_lambda_.1} parent=1 // pred_check_branch
      %206 = sbr.rel (0) target = $region97
    $region96: #{_lambda_.1} parent=1 // pred_region
      _
    $region97: #{_lambda_.1} parent=1 // pred_fallthru
      _
    // Predicated region
    $region98: #{_lambda_.1} parent=1 // pred_check
      _
    $region99: #{_lambda_.1} parent=1 // pred_check_branch
      %208 = sbr.rel (0) target = $region101
    $region100: #{_lambda_.1} parent=1 // pred_region
      _
    $region101: #{_lambda_.1} parent=1 // pred_fallthru
      _
    // Predicated region
    $region102: #{_lambda_.1} parent=1 // pred_check
      _
    $region103: #{_lambda_.1} parent=1 // pred_check_branch
      %210 = sbr.rel (0) target = $region105
    $region104: #{_lambda_.1} parent=1 // pred_region
      _
    $region105: #{_lambda_.1} parent=1 // pred_fallthru
      _
    // Predicated region
    $region106: #{_lambda_.1} parent=1 // pred_check
      _
    $region107: #{_lambda_.1} parent=1 // pred_check_branch
      %212 = sbr.rel (0) target = $region109
    $region108: #{_lambda_.1} parent=1 // pred_region
      _
    $region109: #{_lambda_.1} parent=1 // pred_fallthru
      _
    // Predicated region
    $region110: #{_lambda_.1} parent=1 // pred_check
      _
    $region111: #{_lambda_.1} parent=1 // pred_check_branch
      %214 = sbr.rel (0) target = $region113
    $region112: #{_lambda_.1} parent=1 // pred_region
      %215 = dma.done [#allocation3], 192
    $region113: #{_lambda_.1} parent=1 // pred_fallthru
      _
    // Predicated region
    $region114: #{_lambda_.1} parent=1 // pred_check
      _
    $region115: #{_lambda_.1} parent=1 // pred_check_branch
      %217 = sbr.rel (0) target = $region117
    $region116: #{_lambda_.1} parent=1 // pred_region
      %218 = dma.done [#allocation5], 1536
    $region117: #{_lambda_.1} parent=1 // pred_fallthru
      _
    // Predicated region
    $region118: #{_lambda_.1} parent=1 // pred_check
      _
    $region119: #{_lambda_.1} parent=1 // pred_check_branch
      %220 = sbr.rel (0) target = $region121
    $region120: #{_lambda_.1} parent=1 // pred_region
      %221 = dma.done [#allocation5], 512
    $region121: #{_lambda_.1} parent=1 // pred_fallthru
      _
    // Predicated region
    $region122: #{_lambda_.1} parent=1 // pred_check
      _
    $region123: #{_lambda_.1} parent=1 // pred_check_branch
      %223 = sbr.rel (0) target = $region125
    $region124: #{_lambda_.1} parent=1 // pred_region
      %224 = dma.done [#allocation8], 512
    $region125: #{_lambda_.1} parent=1 // pred_fallthru
      _
    // Predicated region
    $region126: #{_lambda_.1} parent=1 // pred_check
      _
    $region127: #{_lambda_.1} parent=1 // pred_check_branch
      %226 = sbr.rel (0) target = $region129
    $region128: #{_lambda_.1} parent=1 // pred_region
      %227 = dma.done [#allocation8], 512
    $region129: #{_lambda_.1} parent=1 // pred_fallthru
      _
    // Predicated region
    $region130: #{_lambda_.1} parent=1 // pred_check
      _
    $region131: #{_lambda_.1} parent=1 // pred_check_branch
      %229 = sbr.rel (0) target = $region133
    $region132: #{_lambda_.1} parent=1 // pred_region
      %230 = dma.done [#allocation11], 2048
    $region133: #{_lambda_.1} parent=1 // pred_fallthru
      _
    // Predicated region
    $region134: #{_lambda_.1} parent=1 // pred_check
      _
    $region135: #{_lambda_.1} parent=1 // pred_check_branch
      %232 = sbr.rel (0) target = $region137
    $region136: #{_lambda_.1} parent=1 // pred_region
      %233 = dma.done [#allocation11], 1024
    $region137: #{_lambda_.1} parent=1 // pred_fallthru
      _
    // Predicated region
    $region138: #{_lambda_.1} parent=1 // pred_check
      _
    $region139: #{_lambda_.1} parent=1 // pred_check_branch
      %235 = sbr.rel (0) target = $region141
    $region140: #{_lambda_.1} parent=1 // pred_region
      %236 = dma.done [#allocation14], 32
    $region141: #{_lambda_.1} parent=1 // pred_fallthru
      _
    // Predicated region
    $region142: #{_lambda_.1} parent=1 // pred_check
      _
    $region143: #{_lambda_.1} parent=1 // pred_check_branch
      %238 = sbr.rel (0) target = $region145
    $region144: #{_lambda_.1} parent=1 // pred_region
      %239 = dma.done [#allocation14], 1024
    $region145: #{_lambda_.1} parent=1 // pred_fallthru
      _
    // Predicated region
    $region146: #{_lambda_.1} parent=1 // pred_check
      _
    $region147: #{_lambda_.1} parent=1 // pred_check_branch
      %241 = sbr.rel (0) target = $region149
    $region148: #{_lambda_.1} parent=1 // pred_region
      %242 = dma.done [#allocation17], 1024
    $region149: #{_lambda_.1} parent=1 // pred_fallthru
      _
    // Predicated region
    $region150: #{_lambda_.1} parent=1 // pred_check
      _
    $region151: #{_lambda_.1} parent=1 // pred_check_branch
      %244 = sbr.rel (0) target = $region153
    $region152: #{_lambda_.1} parent=1 // pred_region
      %245 = dma.done [#allocation17], 1024
    $region153: #{_lambda_.1} parent=1 // pred_fallthru
      _
    // Predicated region
    $region154: #{_lambda_.1} parent=1 // pred_check
      _
    $region155: #{_lambda_.1} parent=1 // pred_check_branch
      %247 = sbr.rel (0) target = $region157
    $region156: #{_lambda_.1} parent=1 // pred_region
      %248 = dma.done [#allocation20], 2048
    $region157: #{_lambda_.1} parent=1 // pred_fallthru
      _
    %v249 = vld [vmem:[%s0] sm:$0xff]
    %v250 = vld [vmem:[%s0 + $0x8] sm:$0xff]
    %v251 = vld [vmem:[#allocation6] sm:$0xff]
    %v252 = vld [vmem:[#allocation6 + $0x8] sm:$0xff]
    %v253 = vld [vmem:[#allocation6 + $0x10] sm:$0xff]
    %v254 = vld [vmem:[#allocation6 + $0x18] sm:$0xff]
    %v255 = vld [vmem:[#allocation2] sm:$0xf]
    %vm256 = vcmask 31744
    %v258 = vsel %vm256, %v249, 0
    %v261 = vsel %vm256, %v250, 0
    %vm263 = vcmask 1043456
    %v265 = vsel %vm263, %v255, 0
    %267 = vmatprep.subr.mxu0 0.0
    %268 = vmatpush1.msra.mxu0 %v265
    %269 = vmatprep.subr.mxu0 0.0
    %270 = vmatpush1.msra.mxu0 0.0
    %271 = vmatprep.subr.mxu0 0.0
    %272 = vmatpush1.msra.mxu0 0.0
    %273 = vmatprep.subr.mxu0 0.0
    %274 = vmatpush1.msra.mxu0 0.0
    %275 = vmatprep.subr.mxu0 0.0
    %276 = vmatpush1.msra.mxu0 0.0
    %277 = vmatprep.subr.mxu0 0.0
    %278 = vmatpush1.msra.mxu0 0.0
    %279 = vmatprep.subr.mxu0 0.0
    %280 = vmatpush1.msra.mxu0 0.0
    %281 = vmatprep.subr.mxu0 0.0
    %282 = vmatpush1.msra.mxu0 0.0
    %283 = vmatprep.subr.mxu0 0.0
    %284 = vmatpush1.msra.mxu0 0.0
    %285 = vmatprep.subr.mxu0 0.0
    %286 = vmatpush1.msra.mxu0 0.0
    %287 = vmatprep.subr.mxu0 0.0
    %288 = vmatpush1.msra.mxu0 0.0
    %289 = vmatprep.subr.mxu0 0.0
    %290 = vmatpush1.msra.mxu0 0.0
    %291 = vmatprep.subr.mxu0 0.0
    %292 = vmatpush1.msra.mxu0 0.0
    %293 = vmatprep.subr.mxu0 0.0
    %294 = vmatpush1.msra.mxu0 0.0
    %295 = vmatprep.subr.mxu0 0.0
    %296 = vmatpush1.msra.mxu0 0.0
    %297 = vmatprep.subr.mxu0 0.0
    %298 = vmatpush1.msra.mxu0 0.0
    %299 = vmatprep.subr.mxu0 0.0
    %300 = vmatpush1.msra.mxu0 0.0
    %301 = vmatprep.subr.mxu0 0.0
    %302 = vmatpush1.msra.mxu0 0.0
    %303 = vmatprep.subr.mxu0 0.0
    %304 = vmatpush1.msra.mxu0 0.0
    %305 = vmatprep.subr.mxu0 0.0
    %306 = vmatpush1.msra.mxu0 0.0
    %307 = vmatprep.subr.mxu0 0.0
    %308 = vmatpush1.msra.mxu0 0.0
    %309 = vmatprep.subr.mxu0 0.0
    %310 = vmatpush1.msra.mxu0 0.0
    %311 = vmatprep.subr.mxu0 0.0
    %312 = vmatpush1.msra.mxu0 0.0
    %313 = vmatprep.subr.mxu0 0.0
    %314 = vmatpush1.msra.mxu0 0.0
    %315 = vmatprep.subr.mxu0 0.0
    %316 = vmatpush1.msra.mxu0 0.0
    %317 = vmatprep.subr.mxu0 0.0
    %318 = vmatpush1.msra.mxu0 0.0
    %319 = vmatprep.subr.mxu0 0.0
    %320 = vmatpush1.msra.mxu0 0.0
    %321 = vmatprep.subr.mxu0 0.0
    %322 = vmatpush1.msra.mxu0 0.0
    %323 = vmatprep.subr.mxu0 0.0
    %324 = vmatpush1.msra.mxu0 0.0
    %325 = vmatprep.subr.mxu0 0.0
    %326 = vmatpush1.msra.mxu0 0.0
    %327 = vmatprep.subr.mxu0 0.0
    %328 = vmatpush1.msra.mxu0 0.0
    %329 = vmatprep.subr.mxu0 0.0
    %330 = vmatpush1.msra.mxu0 0.0
    %331 = vmatprep.mubr.f32.mxu0 0.0
    %332 = vmatmul.mubr.f32.gmra.mrb[0].mxu0 %v258
    %v333 = vpop.f32.mrb[0].mxu0
    %v334 = vadd.f32 0.0, %v333
    %v335 = vpop.f32.mrb[0].mxu0
    %336 = vmatprep.mubr.f32.mxu0 0.0
    %337 = vmatmul.mubr.f32.gmra.mrb[0].mxu0 %v261
    %v338 = vpop.f32.mrb[0].mxu0
    %v339 = vadd.f32 0.0, %v338
    %v340 = vpop.f32.mrb[0].mxu0
    %341 = vdwg.mxu0
    %v342 = vld [vmem:[#allocation4] sm:$0xff]
    %v343 = vld [vmem:[#allocation4 + $0x8] sm:$0xff]
    %v344 = vld [vmem:[#allocation4 + $0x10] sm:$0xff]
    %v345 = vld [vmem:[#allocation4 + $0x18] sm:$0xff]
    %vm346 = vcmask 130048
    %v348 = vsel %vm346, %v342, 0
    %v351 = vsel %vm346, %v343, 0
    %v354 = vsel %vm346, %v344, 0
    %v357 = vsel %vm346, %v345, 0
    %359 = vmatprep.subr.mxu0 0.0
    %360 = vmatpush1.msra.mxu0 %v334
    %361 = vmatprep.subr.mxu0 0.0
    %362 = vmatpush1.msra.mxu0 %v339
    %363 = vmatprep.subr.mxu0 0.0
    %364 = vmatpush1.msra.mxu0 0.0
    %365 = vmatprep.subr.mxu0 0.0
    %366 = vmatpush1.msra.mxu0 0.0
    %367 = vmatprep.subr.mxu0 0.0
    %368 = vmatpush1.msra.mxu0 0.0
    %369 = vmatprep.subr.mxu0 0.0
    %370 = vmatpush1.msra.mxu0 0.0
    %371 = vmatprep.subr.mxu0 0.0
    %372 = vmatpush1.msra.mxu0 0.0
    %373 = vmatprep.subr.mxu0 0.0
    %374 = vmatpush1.msra.mxu0 0.0
    %375 = vmatprep.subr.mxu0 0.0
    %376 = vmatpush1.msra.mxu0 0.0
    %377 = vmatprep.subr.mxu0 0.0
    %378 = vmatpush1.msra.mxu0 0.0
    %379 = vmatprep.subr.mxu0 0.0
    %380 = vmatpush1.msra.mxu0 0.0
    %381 = vmatprep.subr.mxu0 0.0
    %382 = vmatpush1.msra.mxu0 0.0
    %383 = vmatprep.subr.mxu0 0.0
    %384 = vmatpush1.msra.mxu0 0.0
    %385 = vmatprep.subr.mxu0 0.0
    %386 = vmatpush1.msra.mxu0 0.0
    %387 = vmatprep.subr.mxu0 0.0
    %388 = vmatpush1.msra.mxu0 0.0
    %389 = vmatprep.subr.mxu0 0.0
    %390 = vmatpush1.msra.mxu0 0.0
    %391 = vmatprep.subr.mxu0 0.0
    %392 = vmatpush1.msra.mxu0 0.0
    %393 = vmatprep.subr.mxu0 0.0
    %394 = vmatpush1.msra.mxu0 0.0
    %395 = vmatprep.subr.mxu0 0.0
    %396 = vmatpush1.msra.mxu0 0.0
    %397 = vmatprep.subr.mxu0 0.0
    %398 = vmatpush1.msra.mxu0 0.0
    %399 = vmatprep.subr.mxu0 0.0
    %400 = vmatpush1.msra.mxu0 0.0
    %401 = vmatprep.subr.mxu0 0.0
    %402 = vmatpush1.msra.mxu0 0.0
    %403 = vmatprep.subr.mxu0 0.0
    %404 = vmatpush1.msra.mxu0 0.0
    %405 = vmatprep.subr.mxu0 0.0
    %406 = vmatpush1.msra.mxu0 0.0
    %407 = vmatprep.subr.mxu0 0.0
    %408 = vmatpush1.msra.mxu0 0.0
    %409 = vmatprep.subr.mxu0 0.0
    %410 = vmatpush1.msra.mxu0 0.0
    %411 = vmatprep.subr.mxu0 0.0
    %412 = vmatpush1.msra.mxu0 0.0
    %413 = vmatprep.subr.mxu0 0.0
    %414 = vmatpush1.msra.mxu0 0.0
    %415 = vmatprep.subr.mxu0 0.0
    %416 = vmatpush1.msra.mxu0 0.0
    %417 = vmatprep.subr.mxu0 0.0
    %418 = vmatpush1.msra.mxu0 0.0
    %419 = vmatprep.subr.mxu0 0.0
    %420 = vmatpush1.msra.mxu0 0.0
    %421 = vmatprep.subr.mxu0 0.0
    %422 = vmatpush1.msra.mxu0 0.0
    %423 = vmatprep.mubr.f32.mxu0 0.0
    %424 = vmatmul.mubr.f32.gmra.mrb[0].mxu0 %v348
    %v425 = vpop.f32.mrb[0].mxu0
    %v426 = vadd.f32 0.0, %v425
    %v427 = vpop.f32.mrb[0].mxu0
    %428 = vmatprep.mubr.f32.mxu0 0.0
    %429 = vmatmul.mubr.f32.gmra.mrb[0].mxu0 %v351
    %v430 = vpop.f32.mrb[0].mxu0
    %v431 = vadd.f32 0.0, %v430
    %v432 = vpop.f32.mrb[0].mxu0
    %433 = vmatprep.mubr.f32.mxu0 0.0
    %434 = vmatmul.mubr.f32.gmra.mrb[0].mxu0 %v354
    %v435 = vpop.f32.mrb[0].mxu0
    %v436 = vadd.f32 0.0, %v435
    %v437 = vpop.f32.mrb[0].mxu0
    %438 = vmatprep.mubr.f32.mxu0 0.0
    %439 = vmatmul.mubr.f32.gmra.mrb[0].mxu0 %v357
    %v440 = vpop.f32.mrb[0].mxu0
    %v441 = vadd.f32 0.0, %v440
    %v442 = vpop.f32.mrb[0].mxu0
    %443 = vdwg.mxu0
    %v444 = vadd.f32 %v251, %v426
    %v445 = vadd.f32 %v252, %v431
    %v446 = vadd.f32 %v253, %v436
    %v447 = vadd.f32 %v254, %v441
    %s448 = scalar_lea.vmem [#allocation2], 4
    %v449 = vld [vmem:[%s448] sm:$0xf]
    %v451 = vsel %vm263, %v449, 0
    %453 = vmatprep.subr.mxu0 0.0
    %454 = vmatpush1.msra.mxu0 %v451
    %455 = vmatprep.subr.mxu0 0.0
    %456 = vmatpush1.msra.mxu0 0.0
    %457 = vmatprep.subr.mxu0 0.0
    %458 = vmatpush1.msra.mxu0 0.0
    %459 = vmatprep.subr.mxu0 0.0
    %460 = vmatpush1.msra.mxu0 0.0
    %461 = vmatprep.subr.mxu0 0.0
    %462 = vmatpush1.msra.mxu0 0.0
    %463 = vmatprep.subr.mxu0 0.0
    %464 = vmatpush1.msra.mxu0 0.0
    %465 = vmatprep.subr.mxu0 0.0
    %466 = vmatpush1.msra.mxu0 0.0
    %467 = vmatprep.subr.mxu0 0.0
    %468 = vmatpush1.msra.mxu0 0.0
    %469 = vmatprep.subr.mxu0 0.0
    %470 = vmatpush1.msra.mxu0 0.0
    %471 = vmatprep.subr.mxu0 0.0
    %472 = vmatpush1.msra.mxu0 0.0
    %473 = vmatprep.subr.mxu0 0.0
    %474 = vmatpush1.msra.mxu0 0.0
    %475 = vmatprep.subr.mxu0 0.0
    %476 = vmatpush1.msra.mxu0 0.0
    %477 = vmatprep.subr.mxu0 0.0
    %478 = vmatpush1.msra.mxu0 0.0
    %479 = vmatprep.subr.mxu0 0.0
    %480 = vmatpush1.msra.mxu0 0.0
    %481 = vmatprep.subr.mxu0 0.0
    %482 = vmatpush1.msra.mxu0 0.0
    %483 = vmatprep.subr.mxu0 0.0
    %484 = vmatpush1.msra.mxu0 0.0
    %485 = vmatprep.subr.mxu0 0.0
    %486 = vmatpush1.msra.mxu0 0.0
    %487 = vmatprep.subr.mxu0 0.0
    %488 = vmatpush1.msra.mxu0 0.0
    %489 = vmatprep.subr.mxu0 0.0
    %490 = vmatpush1.msra.mxu0 0.0
    %491 = vmatprep.subr.mxu0 0.0
    %492 = vmatpush1.msra.mxu0 0.0
    %493 = vmatprep.subr.mxu0 0.0
    %494 = vmatpush1.msra.mxu0 0.0
    %495 = vmatprep.subr.mxu0 0.0
    %496 = vmatpush1.msra.mxu0 0.0
    %497 = vmatprep.subr.mxu0 0.0
    %498 = vmatpush1.msra.mxu0 0.0
    %499 = vmatprep.subr.mxu0 0.0
    %500 = vmatpush1.msra.mxu0 0.0
    %501 = vmatprep.subr.mxu0 0.0
    %502 = vmatpush1.msra.mxu0 0.0
    %503 = vmatprep.subr.mxu0 0.0
    %504 = vmatpush1.msra.mxu0 0.0
    %505 = vmatprep.subr.mxu0 0.0
    %506 = vmatpush1.msra.mxu0 0.0
    %507 = vmatprep.subr.mxu0 0.0
    %508 = vmatpush1.msra.mxu0 0.0
    %509 = vmatprep.subr.mxu0 0.0
    %510 = vmatpush1.msra.mxu0 0.0
    %511 = vmatprep.subr.mxu0 0.0
    %512 = vmatpush1.msra.mxu0 0.0
    %513 = vmatprep.subr.mxu0 0.0
    %514 = vmatpush1.msra.mxu0 0.0
    %515 = vmatprep.subr.mxu0 0.0
    %516 = vmatpush1.msra.mxu0 0.0
    %517 = vmatprep.mubr.f32.mxu0 0.0
    %518 = vmatmul.mubr.f32.gmra.mrb[0].mxu0 %v258
    %v519 = vpop.f32.mrb[0].mxu0
    %v520 = vadd.f32 0.0, %v519
    %v521 = vpop.f32.mrb[0].mxu0
    %522 = vmatprep.mubr.f32.mxu0 0.0
    %523 = vmatmul.mubr.f32.gmra.mrb[0].mxu0 %v261
    %v524 = vpop.f32.mrb[0].mxu0
    %v525 = vadd.f32 0.0, %v524
    %v526 = vpop.f32.mrb[0].mxu0
    %527 = vdwg.mxu0
    %s528 = scalar_lea.vmem [#allocation4], 32
    %v529 = vld [vmem:[%s528] sm:$0xff]
    %v530 = vld [vmem:[%s528 + $0x8] sm:$0xff]
    %v531 = vld [vmem:[%s528 + $0x10] sm:$0xff]
    %v532 = vld [vmem:[%s528 + $0x18] sm:$0xff]
    %v534 = vsel %vm346, %v529, 0
    %v537 = vsel %vm346, %v530, 0
    %v540 = vsel %vm346, %v531, 0
    %v543 = vsel %vm346, %v532, 0
    %545 = vmatprep.subr.mxu0 0.0
    %546 = vmatpush1.msra.mxu0 %v520
    %547 = vmatprep.subr.mxu0 0.0
    %548 = vmatpush1.msra.mxu0 %v525
    %549 = vmatprep.subr.mxu0 0.0
    %550 = vmatpush1.msra.mxu0 0.0
    %551 = vmatprep.subr.mxu0 0.0
    %552 = vmatpush1.msra.mxu0 0.0
    %553 = vmatprep.subr.mxu0 0.0
    %554 = vmatpush1.msra.mxu0 0.0
    %555 = vmatprep.subr.mxu0 0.0
    %556 = vmatpush1.msra.mxu0 0.0
    %557 = vmatprep.subr.mxu0 0.0
    %558 = vmatpush1.msra.mxu0 0.0
    %559 = vmatprep.subr.mxu0 0.0
    %560 = vmatpush1.msra.mxu0 0.0
    %561 = vmatprep.subr.mxu0 0.0
    %562 = vmatpush1.msra.mxu0 0.0
    %563 = vmatprep.subr.mxu0 0.0
    %564 = vmatpush1.msra.mxu0 0.0
    %565 = vmatprep.subr.mxu0 0.0
    %566 = vmatpush1.msra.mxu0 0.0
    %567 = vmatprep.subr.mxu0 0.0
    %568 = vmatpush1.msra.mxu0 0.0
    %569 = vmatprep.subr.mxu0 0.0
    %570 = vmatpush1.msra.mxu0 0.0
    %571 = vmatprep.subr.mxu0 0.0
    %572 = vmatpush1.msra.mxu0 0.0
    %573 = vmatprep.subr.mxu0 0.0
    %574 = vmatpush1.msra.mxu0 0.0
    %575 = vmatprep.subr.mxu0 0.0
    %576 = vmatpush1.msra.mxu0 0.0
    %577 = vmatprep.subr.mxu0 0.0
    %578 = vmatpush1.msra.mxu0 0.0
    %579 = vmatprep.subr.mxu0 0.0
    %580 = vmatpush1.msra.mxu0 0.0
    %581 = vmatprep.subr.mxu0 0.0
    %582 = vmatpush1.msra.mxu0 0.0
    %583 = vmatprep.subr.mxu0 0.0
    %584 = vmatpush1.msra.mxu0 0.0
    %585 = vmatprep.subr.mxu0 0.0
    %586 = vmatpush1.msra.mxu0 0.0
    %587 = vmatprep.subr.mxu0 0.0
    %588 = vmatpush1.msra.mxu0 0.0
    %589 = vmatprep.subr.mxu0 0.0
    %590 = vmatpush1.msra.mxu0 0.0
    %591 = vmatprep.subr.mxu0 0.0
    %592 = vmatpush1.msra.mxu0 0.0
    %593 = vmatprep.subr.mxu0 0.0
    %594 = vmatpush1.msra.mxu0 0.0
    %595 = vmatprep.subr.mxu0 0.0
    %596 = vmatpush1.msra.mxu0 0.0
    %597 = vmatprep.subr.mxu0 0.0
    %598 = vmatpush1.msra.mxu0 0.0
    %599 = vmatprep.subr.mxu0 0.0
    %600 = vmatpush1.msra.mxu0 0.0
    %601 = vmatprep.subr.mxu0 0.0
    %602 = vmatpush1.msra.mxu0 0.0
    %603 = vmatprep.subr.mxu0 0.0
    %604 = vmatpush1.msra.mxu0 0.0
    %605 = vmatprep.subr.mxu0 0.0
    %606 = vmatpush1.msra.mxu0 0.0
    %607 = vmatprep.subr.mxu0 0.0
    %608 = vmatpush1.msra.mxu0 0.0
    %609 = vmatprep.mubr.f32.mxu0 0.0
    %610 = vmatmul.mubr.f32.gmra.mrb[0].mxu0 %v534
    %v611 = vpop.f32.mrb[0].mxu0
    %v612 = vadd.f32 0.0, %v611
    %v613 = vpop.f32.mrb[0].mxu0
    %614 = vmatprep.mubr.f32.mxu0 0.0
    %615 = vmatmul.mubr.f32.gmra.mrb[0].mxu0 %v537
    %v616 = vpop.f32.mrb[0].mxu0
    %v617 = vadd.f32 0.0, %v616
    %v618 = vpop.f32.mrb[0].mxu0
    %619 = vmatprep.mubr.f32.mxu0 0.0
    %620 = vmatmul.mubr.f32.gmra.mrb[0].mxu0 %v540
    %v621 = vpop.f32.mrb[0].mxu0
    %v622 = vadd.f32 0.0, %v621
    %v623 = vpop.f32.mrb[0].mxu0
    %624 = vmatprep.mubr.f32.mxu0 0.0
    %625 = vmatmul.mubr.f32.gmra.mrb[0].mxu0 %v543
    %v626 = vpop.f32.mrb[0].mxu0
    %v627 = vadd.f32 0.0, %v626
    %v628 = vpop.f32.mrb[0].mxu0
    %629 = vdwg.mxu0
    %v630 = vadd.f32 %v444, %v612
    %v631 = vadd.f32 %v445, %v617
    %v632 = vadd.f32 %v446, %v622
    %v633 = vadd.f32 %v447, %v627
    %s634 = scalar_lea.vmem [#allocation2], 8
    %v635 = vld [vmem:[%s634] sm:$0xf]
    %v637 = vsel %vm263, %v635, 0
    %639 = vmatprep.subr.mxu0 0.0
    %640 = vmatpush1.msra.mxu0 %v637
    %641 = vmatprep.subr.mxu0 0.0
    %642 = vmatpush1.msra.mxu0 0.0
    %643 = vmatprep.subr.mxu0 0.0
    %644 = vmatpush1.msra.mxu0 0.0
    %645 = vmatprep.subr.mxu0 0.0
    %646 = vmatpush1.msra.mxu0 0.0
    %647 = vmatprep.subr.mxu0 0.0
    %648 = vmatpush1.msra.mxu0 0.0
    %649 = vmatprep.subr.mxu0 0.0
    %650 = vmatpush1.msra.mxu0 0.0
    %651 = vmatprep.subr.mxu0 0.0
    %652 = vmatpush1.msra.mxu0 0.0
    %653 = vmatprep.subr.mxu0 0.0
    %654 = vmatpush1.msra.mxu0 0.0
    %655 = vmatprep.subr.mxu0 0.0
    %656 = vmatpush1.msra.mxu0 0.0
    %657 = vmatprep.subr.mxu0 0.0
    %658 = vmatpush1.msra.mxu0 0.0
    %659 = vmatprep.subr.mxu0 0.0
    %660 = vmatpush1.msra.mxu0 0.0
    %661 = vmatprep.subr.mxu0 0.0
    %662 = vmatpush1.msra.mxu0 0.0
    %663 = vmatprep.subr.mxu0 0.0
    %664 = vmatpush1.msra.mxu0 0.0
    %665 = vmatprep.subr.mxu0 0.0
    %666 = vmatpush1.msra.mxu0 0.0
    %667 = vmatprep.subr.mxu0 0.0
    %668 = vmatpush1.msra.mxu0 0.0
    %669 = vmatprep.subr.mxu0 0.0
    %670 = vmatpush1.msra.mxu0 0.0
    %671 = vmatprep.subr.mxu0 0.0
    %672 = vmatpush1.msra.mxu0 0.0
    %673 = vmatprep.subr.mxu0 0.0
    %674 = vmatpush1.msra.mxu0 0.0
    %675 = vmatprep.subr.mxu0 0.0
    %676 = vmatpush1.msra.mxu0 0.0
    %677 = vmatprep.subr.mxu0 0.0
    %678 = vmatpush1.msra.mxu0 0.0
    %679 = vmatprep.subr.mxu0 0.0
    %680 = vmatpush1.msra.mxu0 0.0
    %681 = vmatprep.subr.mxu0 0.0
    %682 = vmatpush1.msra.mxu0 0.0
    %683 = vmatprep.subr.mxu0 0.0
    %684 = vmatpush1.msra.mxu0 0.0
    %685 = vmatprep.subr.mxu0 0.0
    %686 = vmatpush1.msra.mxu0 0.0
    %687 = vmatprep.subr.mxu0 0.0
    %688 = vmatpush1.msra.mxu0 0.0
    %689 = vmatprep.subr.mxu0 0.0
    %690 = vmatpush1.msra.mxu0 0.0
    %691 = vmatprep.subr.mxu0 0.0
    %692 = vmatpush1.msra.mxu0 0.0
    %693 = vmatprep.subr.mxu0 0.0
    %694 = vmatpush1.msra.mxu0 0.0
    %695 = vmatprep.subr.mxu0 0.0
    %696 = vmatpush1.msra.mxu0 0.0
    %697 = vmatprep.subr.mxu0 0.0
    %698 = vmatpush1.msra.mxu0 0.0
    %699 = vmatprep.subr.mxu0 0.0
    %700 = vmatpush1.msra.mxu0 0.0
    %701 = vmatprep.subr.mxu0 0.0
    %702 = vmatpush1.msra.mxu0 0.0
    %703 = vmatprep.mubr.f32.mxu0 0.0
    %704 = vmatmul.mubr.f32.gmra.mrb[0].mxu0 %v258
    %v705 = vpop.f32.mrb[0].mxu0
    %v706 = vadd.f32 0.0, %v705
    %v707 = vpop.f32.mrb[0].mxu0
    %708 = vmatprep.mubr.f32.mxu0 0.0
    %709 = vmatmul.mubr.f32.gmra.mrb[0].mxu0 %v261
    %v710 = vpop.f32.mrb[0].mxu0
    %v711 = vadd.f32 0.0, %v710
    %v712 = vpop.f32.mrb[0].mxu0
    %713 = vdwg.mxu0
    %s714 = scalar_lea.vmem [#allocation4], 64
    %v715 = vld [vmem:[%s714] sm:$0xff]
    %v716 = vld [vmem:[%s714 + $0x8] sm:$0xff]
    %v717 = vld [vmem:[%s714 + $0x10] sm:$0xff]
    %v718 = vld [vmem:[%s714 + $0x18] sm:$0xff]
    %v720 = vsel %vm346, %v715, 0
    %v723 = vsel %vm346, %v716, 0
    %v726 = vsel %vm346, %v717, 0
    %v729 = vsel %vm346, %v718, 0
    %731 = vmatprep.subr.mxu0 0.0
    %732 = vmatpush1.msra.mxu0 %v706
    %733 = vmatprep.subr.mxu0 0.0
    %734 = vmatpush1.msra.mxu0 %v711
    %735 = vmatprep.subr.mxu0 0.0
    %736 = vmatpush1.msra.mxu0 0.0
    %737 = vmatprep.subr.mxu0 0.0
    %738 = vmatpush1.msra.mxu0 0.0
    %739 = vmatprep.subr.mxu0 0.0
    %740 = vmatpush1.msra.mxu0 0.0
    %741 = vmatprep.subr.mxu0 0.0
    %742 = vmatpush1.msra.mxu0 0.0
    %743 = vmatprep.subr.mxu0 0.0
    %744 = vmatpush1.msra.mxu0 0.0
    %745 = vmatprep.subr.mxu0 0.0
    %746 = vmatpush1.msra.mxu0 0.0
    %747 = vmatprep.subr.mxu0 0.0
    %748 = vmatpush1.msra.mxu0 0.0
    %749 = vmatprep.subr.mxu0 0.0
    %750 = vmatpush1.msra.mxu0 0.0
    %751 = vmatprep.subr.mxu0 0.0
    %752 = vmatpush1.msra.mxu0 0.0
    %753 = vmatprep.subr.mxu0 0.0
    %754 = vmatpush1.msra.mxu0 0.0
    %755 = vmatprep.subr.mxu0 0.0
    %756 = vmatpush1.msra.mxu0 0.0
    %757 = vmatprep.subr.mxu0 0.0
    %758 = vmatpush1.msra.mxu0 0.0
    %759 = vmatprep.subr.mxu0 0.0
    %760 = vmatpush1.msra.mxu0 0.0
    %761 = vmatprep.subr.mxu0 0.0
    %762 = vmatpush1.msra.mxu0 0.0
    %763 = vmatprep.subr.mxu0 0.0
    %764 = vmatpush1.msra.mxu0 0.0
    %765 = vmatprep.subr.mxu0 0.0
    %766 = vmatpush1.msra.mxu0 0.0
    %767 = vmatprep.subr.mxu0 0.0
    %768 = vmatpush1.msra.mxu0 0.0
    %769 = vmatprep.subr.mxu0 0.0
    %770 = vmatpush1.msra.mxu0 0.0
    %771 = vmatprep.subr.mxu0 0.0
    %772 = vmatpush1.msra.mxu0 0.0
    %773 = vmatprep.subr.mxu0 0.0
    %774 = vmatpush1.msra.mxu0 0.0
    %775 = vmatprep.subr.mxu0 0.0
    %776 = vmatpush1.msra.mxu0 0.0
    %777 = vmatprep.subr.mxu0 0.0
    %778 = vmatpush1.msra.mxu0 0.0
    %779 = vmatprep.subr.mxu0 0.0
    %780 = vmatpush1.msra.mxu0 0.0
    %781 = vmatprep.subr.mxu0 0.0
    %782 = vmatpush1.msra.mxu0 0.0
    %783 = vmatprep.subr.mxu0 0.0
    %784 = vmatpush1.msra.mxu0 0.0
    %785 = vmatprep.subr.mxu0 0.0
    %786 = vmatpush1.msra.mxu0 0.0
    %787 = vmatprep.subr.mxu0 0.0
    %788 = vmatpush1.msra.mxu0 0.0
    %789 = vmatprep.subr.mxu0 0.0
    %790 = vmatpush1.msra.mxu0 0.0
    %791 = vmatprep.subr.mxu0 0.0
    %792 = vmatpush1.msra.mxu0 0.0
    %793 = vmatprep.subr.mxu0 0.0
    %794 = vmatpush1.msra.mxu0 0.0
    %795 = vmatprep.mubr.f32.mxu0 0.0
    %796 = vmatmul.mubr.f32.gmra.mrb[0].mxu0 %v720
    %v797 = vpop.f32.mrb[0].mxu0
    %v798 = vadd.f32 0.0, %v797
    %v799 = vpop.f32.mrb[0].mxu0
    %800 = vmatprep.mubr.f32.mxu0 0.0
    %801 = vmatmul.mubr.f32.gmra.mrb[0].mxu0 %v723
    %v802 = vpop.f32.mrb[0].mxu0
    %v803 = vadd.f32 0.0, %v802
    %v804 = vpop.f32.mrb[0].mxu0
    %805 = vmatprep.mubr.f32.mxu0 0.0
    %806 = vmatmul.mubr.f32.gmra.mrb[0].mxu0 %v726
    %v807 = vpop.f32.mrb[0].mxu0
    %v808 = vadd.f32 0.0, %v807
    %v809 = vpop.f32.mrb[0].mxu0
    %810 = vmatprep.mubr.f32.mxu0 0.0
    %811 = vmatmul.mubr.f32.gmra.mrb[0].mxu0 %v729
    %v812 = vpop.f32.mrb[0].mxu0
    %v813 = vadd.f32 0.0, %v812
    %v814 = vpop.f32.mrb[0].mxu0
    %815 = vdwg.mxu0
    %v816 = vadd.f32 %v630, %v798
    %v817 = vadd.f32 %v631, %v803
    %v818 = vadd.f32 %v632, %v808
    %v819 = vadd.f32 %v633, %v813
    %v820 = vld [vmem:[#allocation7] sm:$0xff]
    %v821 = vld [vmem:[#allocation7 + $0x8] sm:$0xff]
    %v822 = vld [vmem:[#allocation7 + $0x10] sm:$0xff]
    %v823 = vld [vmem:[#allocation7 + $0x18] sm:$0xff]
    %828 = vrot.lane.b32.xlu0 %v820, 32
    %v829 = vpop.permute.xlu0 %828
    %830 = vrot.lane.b32.xlu0 %v821, 32
    %v831 = vpop.permute.xlu0 %830
    %832 = vrot.lane.b32.xlu0 %v822, 32
    %v833 = vpop.permute.xlu0 %832
    %834 = vrot.lane.b32.xlu0 %v823, 32
    %v835 = vpop.permute.xlu0 %834
    %840 = vrot.lane.b32.xlu0 %v820, 64
    %v841 = vpop.permute.xlu0 %840
    %842 = vrot.lane.b32.xlu0 %v821, 64
    %v843 = vpop.permute.xlu0 %842
    %844 = vrot.lane.b32.xlu0 %v822, 64
    %v845 = vpop.permute.xlu0 %844
    %846 = vrot.lane.b32.xlu0 %v823, 64
    %v847 = vpop.permute.xlu0 %846
    %852 = vrot.lane.b32.xlu0 %v820, 96
    %v853 = vpop.permute.xlu0 %852
    %854 = vrot.lane.b32.xlu0 %v821, 96
    %v855 = vpop.permute.xlu0 %854
    %856 = vrot.lane.b32.xlu0 %v822, 96
    %v857 = vpop.permute.xlu0 %856
    %858 = vrot.lane.b32.xlu0 %v823, 96
    %v859 = vpop.permute.xlu0 %858
    %vm864 = vcmask 261120
    %v865 = vsel %vm864, %v820, %v829
    %v866 = vsel %vm864, %v821, %v831
    %v867 = vsel %vm864, %v822, %v833
    %v868 = vsel %vm864, %v823, %v835
    %vm869 = vcmask 523264
    %v870 = vsel %vm869, %v865, %v841
    %v871 = vsel %vm869, %v866, %v843
    %v872 = vsel %vm869, %v867, %v845
    %v873 = vsel %vm869, %v868, %v847
    %vm874 = vcmask 785408
    %v875 = vsel %vm874, %v870, %v853
    %v876 = vsel %vm874, %v871, %v855
    %v877 = vsel %vm874, %v872, %v857
    %v878 = vsel %vm874, %v873, %v859
    %v879 = vld [vmem:[#allocation9] sm:$0xff]
    %v880 = vld [vmem:[#allocation9 + $0x8] sm:$0xff]
    %v881 = vld [vmem:[#allocation9 + $0x10] sm:$0xff]
    %v882 = vld [vmem:[#allocation9 + $0x18] sm:$0xff]
    %v883 = vld [vmem:[#allocation10] sm:$0xff]
    %v884 = vld [vmem:[#allocation10 + $0x8] sm:$0xff]
    %v885 = vld [vmem:[#allocation10 + $0x10] sm:$0xff]
    %v886 = vld [vmem:[#allocation10 + $0x18] sm:$0xff]
    %v887 = vld [vmem:[#allocation10 + $0x20] sm:$0xff]
    %v888 = vld [vmem:[#allocation10 + $0x28] sm:$0xff]
    %v889 = vld [vmem:[#allocation10 + $0x30] sm:$0xff]
    %v890 = vld [vmem:[#allocation10 + $0x38] sm:$0xff]
    %v891 = vld [vmem:[#allocation10 + $0x40] sm:$0xff]
    %v892 = vld [vmem:[#allocation10 + $0x48] sm:$0xff]
    %v893 = vld [vmem:[#allocation10 + $0x50] sm:$0xff]
    %v894 = vld [vmem:[#allocation10 + $0x58] sm:$0xff]
    %v895 = vld [vmem:[#allocation10 + $0x60] sm:$0xff]
    %v896 = vld [vmem:[#allocation10 + $0x68] sm:$0xff]
    %v897 = vld [vmem:[#allocation10 + $0x70] sm:$0xff]
    %v898 = vld [vmem:[#allocation10 + $0x78] sm:$0xff]
    %v899 = vld [vmem:[%s7] sm:$0x1]
    %v900 = vld [vmem:[%s8] sm:$0x1]
    %v901 = vsel %vm864, %v816, 0.0
    %902 = vadd.xlane.f32.xlu0 %v901
    %v903 = vpop.xlane.xlu0 %902
    %v904 = vsel %vm864, %v817, 0.0
    %905 = vadd.xlane.f32.xlu0 %v904
    %v906 = vpop.xlane.xlu0 %905
    %v907 = vsel %vm864, %v818, 0.0
    %908 = vadd.xlane.f32.xlu0 %v907
    %v909 = vpop.xlane.xlu0 %908
    %v910 = vsel %vm864, %v819, 0.0
    %911 = vadd.xlane.f32.xlu0 %v910
    %v912 = vpop.xlane.xlu0 %911
    %v913 = vrcp.pop 32.0
    %v914 = vmul.f32 %v903, %v913
    %v915 = vmul.f32 %v906, %v913
    %v916 = vmul.f32 %v909, %v913
    %v917 = vmul.f32 %v912, %v913
    %v918 = vsub.f32 %v816, %v914
    %v919 = vsub.f32 %v817, %v915
    %v920 = vsub.f32 %v818, %v916
    %v921 = vsub.f32 %v819, %v917
    %v922 = vmul.f32 %v918, %v918
    %v923 = vmul.f32 %v919, %v919
    %v924 = vmul.f32 %v920, %v920
    %v925 = vmul.f32 %v921, %v921
    %v926 = vsel %vm864, %v922, 0.0
    %927 = vadd.xlane.f32.xlu0 %v926
    %v928 = vpop.xlane.xlu0 %927
    %v929 = vsel %vm864, %v923, 0.0
    %930 = vadd.xlane.f32.xlu0 %v929
    %v931 = vpop.xlane.xlu0 %930
    %v932 = vsel %vm864, %v924, 0.0
    %933 = vadd.xlane.f32.xlu0 %v932
    %v934 = vpop.xlane.xlu0 %933
    %v935 = vsel %vm864, %v925, 0.0
    %936 = vadd.xlane.f32.xlu0 %v935
    %v937 = vpop.xlane.xlu0 %936
    %v938 = vmul.f32 %v928, %v913
    %v939 = vmul.f32 %v931, %v913
    %v940 = vmul.f32 %v934, %v913
    %v941 = vmul.f32 %v937, %v913
    %v942 = vadd.f32 %v938, 1e-05
    %v943 = vadd.f32 %v939, 1e-05
    %v944 = vadd.f32 %v940, 1e-05
    %v945 = vadd.f32 %v941, 1e-05
    %v946 = vrsqrt.pop %v942
    %v947 = vrsqrt.pop %v943
    %v948 = vrsqrt.pop %v944
    %v949 = vrsqrt.pop %v945
    %v950 = vmul.f32 %v918, %v946
    %v951 = vmul.f32 %v919, %v947
    %v952 = vmul.f32 %v920, %v948
    %v953 = vmul.f32 %v921, %v949
    %v955 = vlaneseq
    %v956 = vshrl.u32 %v955, 7
    %v957 = vsub.s32 0, %v956
    %v958 = vrot.slane %v899, %v957
    %v960 = vmul.f32 %v950, %v958
    %v961 = vmul.f32 %v951, %v958
    %v962 = vmul.f32 %v952, %v958
    %v963 = vmul.f32 %v953, %v958
    %v965 = vlaneseq
    %v966 = vshrl.u32 %v965, 7
    %v967 = vsub.s32 0, %v966
    %v968 = vrot.slane %v900, %v967
    %v970 = vadd.f32 %v960, %v968
    %v971 = vadd.f32 %v961, %v968
    %v972 = vadd.f32 %v962, %v968
    %v973 = vadd.f32 %v963, %v968
    %v974 = vld [vmem:[#allocation12] sm:$0xff]
    %v975 = vld [vmem:[#allocation12 + $0x8] sm:$0xff]
    %v976 = vld [vmem:[#allocation12 + $0x10] sm:$0xff]
    %v977 = vld [vmem:[#allocation12 + $0x18] sm:$0xff]
    %v978 = vld [vmem:[#allocation13] sm:$0x1]
    %v980 = vlaneseq
    %v981 = vshrl.u32 %v980, 7
    %v982 = vsub.s32 0, %v981
    %v983 = vrot.slane %v978, %v982
    %v986 = vsel %vm864, %v970, 0
    %v989 = vsel %vm864, %v971, 0
    %v992 = vsel %vm864, %v972, 0
    %v995 = vsel %vm864, %v973, 0
    %997 = vmatprep.subr.mxu0 0.0
    %998 = vmatpush1.msra.mxu0 %v974
    %999 = vmatprep.subr.mxu0 0.0
    %1000 = vmatpush1.msra.mxu0 %v975
    %1001 = vmatprep.subr.mxu0 0.0
    %1002 = vmatpush1.msra.mxu0 %v976
    %1003 = vmatprep.subr.mxu0 0.0
    %1004 = vmatpush1.msra.mxu0 %v977
    %1005 = vmatprep.subr.mxu0 0.0
    %1006 = vmatpush1.msra.mxu0 0.0
    %1007 = vmatprep.subr.mxu0 0.0
    %1008 = vmatpush1.msra.mxu0 0.0
    %1009 = vmatprep.subr.mxu0 0.0
    %1010 = vmatpush1.msra.mxu0 0.0
    %1011 = vmatprep.subr.mxu0 0.0
    %1012 = vmatpush1.msra.mxu0 0.0
    %1013 = vmatprep.subr.mxu0 0.0
    %1014 = vmatpush1.msra.mxu0 0.0
    %1015 = vmatprep.subr.mxu0 0.0
    %1016 = vmatpush1.msra.mxu0 0.0
    %1017 = vmatprep.subr.mxu0 0.0
    %1018 = vmatpush1.msra.mxu0 0.0
    %1019 = vmatprep.subr.mxu0 0.0
    %1020 = vmatpush1.msra.mxu0 0.0
    %1021 = vmatprep.subr.mxu0 0.0
    %1022 = vmatpush1.msra.mxu0 0.0
    %1023 = vmatprep.subr.mxu0 0.0
    %1024 = vmatpush1.msra.mxu0 0.0
    %1025 = vmatprep.subr.mxu0 0.0
    %1026 = vmatpush1.msra.mxu0 0.0
    %1027 = vmatprep.subr.mxu0 0.0
    %1028 = vmatpush1.msra.mxu0 0.0
    %1029 = vmatprep.subr.mxu0 0.0
    %1030 = vmatpush1.msra.mxu0 0.0
    %1031 = vmatprep.subr.mxu0 0.0
    %1032 = vmatpush1.msra.mxu0 0.0
    %1033 = vmatprep.subr.mxu0 0.0
    %1034 = vmatpush1.msra.mxu0 0.0
    %1035 = vmatprep.subr.mxu0 0.0
    %1036 = vmatpush1.msra.mxu0 0.0
    %1037 = vmatprep.subr.mxu0 0.0
    %1038 = vmatpush1.msra.mxu0 0.0
    %1039 = vmatprep.subr.mxu0 0.0
    %1040 = vmatpush1.msra.mxu0 0.0
    %1041 = vmatprep.subr.mxu0 0.0
    %1042 = vmatpush1.msra.mxu0 0.0
    %1043 = vmatprep.subr.mxu0 0.0
    %1044 = vmatpush1.msra.mxu0 0.0
    %1045 = vmatprep.subr.mxu0 0.0
    %1046 = vmatpush1.msra.mxu0 0.0
    %1047 = vmatprep.subr.mxu0 0.0
    %1048 = vmatpush1.msra.mxu0 0.0
    %1049 = vmatprep.subr.mxu0 0.0
    %1050 = vmatpush1.msra.mxu0 0.0
    %1051 = vmatprep.subr.mxu0 0.0
    %1052 = vmatpush1.msra.mxu0 0.0
    %1053 = vmatprep.subr.mxu0 0.0
    %1054 = vmatpush1.msra.mxu0 0.0
    %1055 = vmatprep.subr.mxu0 0.0
    %1056 = vmatpush1.msra.mxu0 0.0
    %1057 = vmatprep.subr.mxu0 0.0
    %1058 = vmatpush1.msra.mxu0 0.0
    %1059 = vmatprep.subr.mxu0 0.0
    %1060 = vmatpush1.msra.mxu0 0.0
    %1061 = vmatprep.mubr.f32.mxu0 0.0
    %1062 = vmatmul.mubr.f32.gmra.mrb[0].mxu0 %v986
    %v1063 = vpop.f32.mrb[0].mxu0
    %v1064 = vadd.f32 %v983, %v1063
    %v1065 = vpop.f32.mrb[0].mxu0
    %1066 = vmatprep.mubr.f32.mxu0 0.0
    %1067 = vmatmul.mubr.f32.gmra.mrb[0].mxu0 %v989
    %v1068 = vpop.f32.mrb[0].mxu0
    %v1069 = vadd.f32 %v983, %v1068
    %v1070 = vpop.f32.mrb[0].mxu0
    %1071 = vmatprep.mubr.f32.mxu0 0.0
    %1072 = vmatmul.mubr.f32.gmra.mrb[0].mxu0 %v992
    %v1073 = vpop.f32.mrb[0].mxu0
    %v1074 = vadd.f32 %v983, %v1073
    %v1075 = vpop.f32.mrb[0].mxu0
    %1076 = vmatprep.mubr.f32.mxu0 0.0
    %1077 = vmatmul.mubr.f32.gmra.mrb[0].mxu0 %v995
    %v1078 = vpop.f32.mrb[0].mxu0
    %v1079 = vadd.f32 %v983, %v1078
    %v1080 = vpop.f32.mrb[0].mxu0
    %1081 = vdwg.mxu0
    %v1082 = vld [vmem:[#allocation15] sm:$0xff]
    %v1083 = vld [vmem:[#allocation15 + $0x8] sm:$0xff]
    %v1084 = vld [vmem:[#allocation15 + $0x10] sm:$0xff]
    %v1085 = vld [vmem:[#allocation15 + $0x18] sm:$0xff]
    %v1086 = vld [vmem:[%s12] sm:$0x1]
    %v1088 = vlaneseq
    %v1089 = vshrl.u32 %v1088, 7
    %v1090 = vsub.s32 0, %v1089
    %v1091 = vrot.slane %v1086, %v1090
    %1093 = vmatprep.subr.mxu0 0.0
    %1094 = vmatpush1.msra.mxu0 %v1082
    %1095 = vmatprep.subr.mxu0 0.0
    %1096 = vmatpush1.msra.mxu0 %v1083
    %1097 = vmatprep.subr.mxu0 0.0
    %1098 = vmatpush1.msra.mxu0 %v1084
    %1099 = vmatprep.subr.mxu0 0.0
    %1100 = vmatpush1.msra.mxu0 %v1085
    %1101 = vmatprep.subr.mxu0 0.0
    %1102 = vmatpush1.msra.mxu0 0.0
    %1103 = vmatprep.subr.mxu0 0.0
    %1104 = vmatpush1.msra.mxu0 0.0
    %1105 = vmatprep.subr.mxu0 0.0
    %1106 = vmatpush1.msra.mxu0 0.0
    %1107 = vmatprep.subr.mxu0 0.0
    %1108 = vmatpush1.msra.mxu0 0.0
    %1109 = vmatprep.subr.mxu0 0.0
    %1110 = vmatpush1.msra.mxu0 0.0
    %1111 = vmatprep.subr.mxu0 0.0
    %1112 = vmatpush1.msra.mxu0 0.0
    %1113 = vmatprep.subr.mxu0 0.0
    %1114 = vmatpush1.msra.mxu0 0.0
    %1115 = vmatprep.subr.mxu0 0.0
    %1116 = vmatpush1.msra.mxu0 0.0
    %1117 = vmatprep.subr.mxu0 0.0
    %1118 = vmatpush1.msra.mxu0 0.0
    %1119 = vmatprep.subr.mxu0 0.0
    %1120 = vmatpush1.msra.mxu0 0.0
    %1121 = vmatprep.subr.mxu0 0.0
    %1122 = vmatpush1.msra.mxu0 0.0
    %1123 = vmatprep.subr.mxu0 0.0
    %1124 = vmatpush1.msra.mxu0 0.0
    %1125 = vmatprep.subr.mxu0 0.0
    %1126 = vmatpush1.msra.mxu0 0.0
    %1127 = vmatprep.subr.mxu0 0.0
    %1128 = vmatpush1.msra.mxu0 0.0
    %1129 = vmatprep.subr.mxu0 0.0
    %1130 = vmatpush1.msra.mxu0 0.0
    %1131 = vmatprep.subr.mxu0 0.0
    %1132 = vmatpush1.msra.mxu0 0.0
    %1133 = vmatprep.subr.mxu0 0.0
    %1134 = vmatpush1.msra.mxu0 0.0
    %1135 = vmatprep.subr.mxu0 0.0
    %1136 = vmatpush1.msra.mxu0 0.0
    %1137 = vmatprep.subr.mxu0 0.0
    %1138 = vmatpush1.msra.mxu0 0.0
    %1139 = vmatprep.subr.mxu0 0.0
    %1140 = vmatpush1.msra.mxu0 0.0
    %1141 = vmatprep.subr.mxu0 0.0
    %1142 = vmatpush1.msra.mxu0 0.0
    %1143 = vmatprep.subr.mxu0 0.0
    %1144 = vmatpush1.msra.mxu0 0.0
    %1145 = vmatprep.subr.mxu0 0.0
    %1146 = vmatpush1.msra.mxu0 0.0
    %1147 = vmatprep.subr.mxu0 0.0
    %1148 = vmatpush1.msra.mxu0 0.0
    %1149 = vmatprep.subr.mxu0 0.0
    %1150 = vmatpush1.msra.mxu0 0.0
    %1151 = vmatprep.subr.mxu0 0.0
    %1152 = vmatpush1.msra.mxu0 0.0
    %1153 = vmatprep.subr.mxu0 0.0
    %1154 = vmatpush1.msra.mxu0 0.0
    %1155 = vmatprep.subr.mxu0 0.0
    %1156 = vmatpush1.msra.mxu0 0.0
    %1157 = vmatprep.mubr.f32.mxu0 0.0
    %1158 = vmatmul.mubr.f32.gmra.mrb[0].mxu0 %v986
    %v1159 = vpop.f32.mrb[0].mxu0
    %v1160 = vadd.f32 %v1091, %v1159
    %v1161 = vpop.f32.mrb[0].mxu0
    %1162 = vmatprep.mubr.f32.mxu0 0.0
    %1163 = vmatmul.mubr.f32.gmra.mrb[0].mxu0 %v989
    %v1164 = vpop.f32.mrb[0].mxu0
    %v1165 = vadd.f32 %v1091, %v1164
    %v1166 = vpop.f32.mrb[0].mxu0
    %1167 = vmatprep.mubr.f32.mxu0 0.0
    %1168 = vmatmul.mubr.f32.gmra.mrb[0].mxu0 %v992
    %v1169 = vpop.f32.mrb[0].mxu0
    %v1170 = vadd.f32 %v1091, %v1169
    %v1171 = vpop.f32.mrb[0].mxu0
    %1172 = vmatprep.mubr.f32.mxu0 0.0
    %1173 = vmatmul.mubr.f32.gmra.mrb[0].mxu0 %v995
    %v1174 = vpop.f32.mrb[0].mxu0
    %v1175 = vadd.f32 %v1091, %v1174
    %v1176 = vpop.f32.mrb[0].mxu0
    %1177 = vdwg.mxu0
    %v1178 = vld [vmem:[#allocation16] sm:$0xff]
    %v1179 = vld [vmem:[#allocation16 + $0x8] sm:$0xff]
    %v1180 = vld [vmem:[#allocation16 + $0x10] sm:$0xff]
    %v1181 = vld [vmem:[#allocation16 + $0x18] sm:$0xff]
    %v1182 = vld [vmem:[%s14] sm:$0x1]
    %v1184 = vlaneseq
    %v1185 = vshrl.u32 %v1184, 7
    %v1186 = vsub.s32 0, %v1185
    %v1187 = vrot.slane %v1182, %v1186
    %1189 = vmatprep.subr.mxu0 0.0
    %1190 = vmatpush1.msra.mxu0 %v1178
    %1191 = vmatprep.subr.mxu0 0.0
    %1192 = vmatpush1.msra.mxu0 %v1179
    %1193 = vmatprep.subr.mxu0 0.0
    %1194 = vmatpush1.msra.mxu0 %v1180
    %1195 = vmatprep.subr.mxu0 0.0
    %1196 = vmatpush1.msra.mxu0 %v1181
    %1197 = vmatprep.subr.mxu0 0.0
    %1198 = vmatpush1.msra.mxu0 0.0
    %1199 = vmatprep.subr.mxu0 0.0
    %1200 = vmatpush1.msra.mxu0 0.0
    %1201 = vmatprep.subr.mxu0 0.0
    %1202 = vmatpush1.msra.mxu0 0.0
    %1203 = vmatprep.subr.mxu0 0.0
    %1204 = vmatpush1.msra.mxu0 0.0
    %1205 = vmatprep.subr.mxu0 0.0
    %1206 = vmatpush1.msra.mxu0 0.0
    %1207 = vmatprep.subr.mxu0 0.0
    %1208 = vmatpush1.msra.mxu0 0.0
    %1209 = vmatprep.subr.mxu0 0.0
    %1210 = vmatpush1.msra.mxu0 0.0
    %1211 = vmatprep.subr.mxu0 0.0
    %1212 = vmatpush1.msra.mxu0 0.0
    %1213 = vmatprep.subr.mxu0 0.0
    %1214 = vmatpush1.msra.mxu0 0.0
    %1215 = vmatprep.subr.mxu0 0.0
    %1216 = vmatpush1.msra.mxu0 0.0
    %1217 = vmatprep.subr.mxu0 0.0
    %1218 = vmatpush1.msra.mxu0 0.0
    %1219 = vmatprep.subr.mxu0 0.0
    %1220 = vmatpush1.msra.mxu0 0.0
    %1221 = vmatprep.subr.mxu0 0.0
    %1222 = vmatpush1.msra.mxu0 0.0
    %1223 = vmatprep.subr.mxu0 0.0
    %1224 = vmatpush1.msra.mxu0 0.0
    %1225 = vmatprep.subr.mxu0 0.0
    %1226 = vmatpush1.msra.mxu0 0.0
    %1227 = vmatprep.subr.mxu0 0.0
    %1228 = vmatpush1.msra.mxu0 0.0
    %1229 = vmatprep.subr.mxu0 0.0
    %1230 = vmatpush1.msra.mxu0 0.0
    %1231 = vmatprep.subr.mxu0 0.0
    %1232 = vmatpush1.msra.mxu0 0.0
    %1233 = vmatprep.subr.mxu0 0.0
    %1234 = vmatpush1.msra.mxu0 0.0
    %1235 = vmatprep.subr.mxu0 0.0
    %1236 = vmatpush1.msra.mxu0 0.0
    %1237 = vmatprep.subr.mxu0 0.0
    %1238 = vmatpush1.msra.mxu0 0.0
    %1239 = vmatprep.subr.mxu0 0.0
    %1240 = vmatpush1.msra.mxu0 0.0
    %1241 = vmatprep.subr.mxu0 0.0
    %1242 = vmatpush1.msra.mxu0 0.0
    %1243 = vmatprep.subr.mxu0 0.0
    %1244 = vmatpush1.msra.mxu0 0.0
    %1245 = vmatprep.subr.mxu0 0.0
    %1246 = vmatpush1.msra.mxu0 0.0
    %1247 = vmatprep.subr.mxu0 0.0
    %1248 = vmatpush1.msra.mxu0 0.0
    %1249 = vmatprep.subr.mxu0 0.0
    %1250 = vmatpush1.msra.mxu0 0.0
    %1251 = vmatprep.subr.mxu0 0.0
    %1252 = vmatpush1.msra.mxu0 0.0
    %1253 = vmatprep.mubr.f32.mxu0 0.0
    %1254 = vmatmul.mubr.f32.gmra.mrb[0].mxu0 %v986
    %v1255 = vpop.f32.mrb[0].mxu0
    %v1256 = vadd.f32 %v1187, %v1255
    %v1257 = vpop.f32.mrb[0].mxu0
    %1258 = vmatprep.mubr.f32.mxu0 0.0
    %1259 = vmatmul.mubr.f32.gmra.mrb[0].mxu0 %v989
    %v1260 = vpop.f32.mrb[0].mxu0
    %v1261 = vadd.f32 %v1187, %v1260
    %v1262 = vpop.f32.mrb[0].mxu0
    %1263 = vmatprep.mubr.f32.mxu0 0.0
    %1264 = vmatmul.mubr.f32.gmra.mrb[0].mxu0 %v992
    %v1265 = vpop.f32.mrb[0].mxu0
    %v1266 = vadd.f32 %v1187, %v1265
    %v1267 = vpop.f32.mrb[0].mxu0
    %1268 = vmatprep.mubr.f32.mxu0 0.0
    %1269 = vmatmul.mubr.f32.gmra.mrb[0].mxu0 %v995
    %v1270 = vpop.f32.mrb[0].mxu0
    %v1271 = vadd.f32 %v1187, %v1270
    %v1272 = vpop.f32.mrb[0].mxu0
    %1273 = vdwg.mxu0
    %1274 = vxpose.xlu0.b32.start [1/16] %v1160, 128
    %1275 = vxpose.xlu0.b32.cont [2/16] %v1165, 128
    %1276 = vxpose.xlu0.b32.cont [3/16] %v1170, 128
    %1277 = vxpose.xlu0.b32.cont [4/16] %v1175, 128
    %1278 = vxpose.xlu0.b32.cont [5/16] 0.0, 128
    %1279 = vxpose.xlu0.b32.cont [6/16] 0.0, 128
    %1280 = vxpose.xlu0.b32.cont [7/16] 0.0, 128
    %1281 = vxpose.xlu0.b32.cont [8/16] 0.0, 128
    %1282 = vxpose.xlu0.b32.cont [9/16] 0.0, 128
    %1283 = vxpose.xlu0.b32.cont [10/16] 0.0, 128
    %1284 = vxpose.xlu0.b32.cont [11/16] 0.0, 128
    %1285 = vxpose.xlu0.b32.cont [12/16] 0.0, 128
    %1286 = vxpose.xlu0.b32.cont [13/16] 0.0, 128
    %1287 = vxpose.xlu0.b32.cont [14/16] 0.0, 128
    %1288 = vxpose.xlu0.b32.cont [15/16] 0.0, 128
    %1289 = vxpose.xlu0.b32.end [16/16] 0.0, 128
    %v1290 = vpop.trf.xlu0
    %v1291 = vpop.trf.xlu0
    %v1292 = vpop.trf.xlu0
    %v1293 = vpop.trf.xlu0
    %v1294 = vpop.trf.xlu0
    %v1295 = vpop.trf.xlu0
    %v1296 = vpop.trf.xlu0
    %v1297 = vpop.trf.xlu0
    %v1298 = vpop.trf.xlu0
    %v1299 = vpop.trf.xlu0
    %v1300 = vpop.trf.xlu0
    %v1301 = vpop.trf.xlu0
    %v1302 = vpop.trf.xlu0
    %v1303 = vpop.trf.xlu0
    %v1304 = vpop.trf.xlu0
    %v1305 = vpop.trf.xlu0
    %1310 = vrot.lane.b32.xlu0 %v1290, 32
    %v1311 = vpop.permute.xlu0 %1310
    %1312 = vrot.lane.b32.xlu0 %v1291, 32
    %v1313 = vpop.permute.xlu0 %1312
    %1314 = vrot.lane.b32.xlu0 %v1292, 32
    %v1315 = vpop.permute.xlu0 %1314
    %1316 = vrot.lane.b32.xlu0 %v1293, 32
    %v1317 = vpop.permute.xlu0 %1316
    %1322 = vrot.lane.b32.xlu0 %v1290, 64
    %v1323 = vpop.permute.xlu0 %1322
    %1324 = vrot.lane.b32.xlu0 %v1291, 64
    %v1325 = vpop.permute.xlu0 %1324
    %1326 = vrot.lane.b32.xlu0 %v1292, 64
    %v1327 = vpop.permute.xlu0 %1326
    %1328 = vrot.lane.b32.xlu0 %v1293, 64
    %v1329 = vpop.permute.xlu0 %1328
    %1334 = vrot.lane.b32.xlu0 %v1290, 96
    %v1335 = vpop.permute.xlu0 %1334
    %1336 = vrot.lane.b32.xlu0 %v1291, 96
    %v1337 = vpop.permute.xlu0 %1336
    %1338 = vrot.lane.b32.xlu0 %v1292, 96
    %v1339 = vpop.permute.xlu0 %1338
    %1340 = vrot.lane.b32.xlu0 %v1293, 96
    %v1341 = vpop.permute.xlu0 %1340
    %v1346 = vsel %vm864, %v1290, %v1311
    %v1347 = vsel %vm864, %v1291, %v1313
    %v1348 = vsel %vm864, %v1292, %v1315
    %v1349 = vsel %vm864, %v1293, %v1317
    %v1350 = vsel %vm869, %v1346, %v1323
    %v1351 = vsel %vm869, %v1347, %v1325
    %v1352 = vsel %vm869, %v1348, %v1327
    %v1353 = vsel %vm869, %v1349, %v1329
    %v1354 = vsel %vm874, %v1350, %v1335
    %v1355 = vsel %vm874, %v1351, %v1337
    %v1356 = vsel %vm874, %v1352, %v1339
    %v1357 = vsel %vm874, %v1353, %v1341
    %v1358 = vmul.f32 %v1354, %v879
    %v1359 = vmul.f32 %v1355, %v880
    %v1360 = vmul.f32 %v1356, %v881
    %v1361 = vmul.f32 %v1357, %v882
    %v1363 = vsel %vm864, %v1064, 0
    %v1366 = vsel %vm864, %v1069, 0
    %v1369 = vsel %vm864, %v1074, 0
    %v1372 = vsel %vm864, %v1079, 0
    %1374 = vmatprep.subr.mxu0 0.0
    %1375 = vmatpush1.msra.mxu0 %v1358
    %1376 = vmatprep.subr.mxu0 0.0
    %1377 = vmatpush1.msra.mxu0 %v1359
    %1378 = vmatprep.subr.mxu0 0.0
    %1379 = vmatpush1.msra.mxu0 %v1360
    %1380 = vmatprep.subr.mxu0 0.0
    %1381 = vmatpush1.msra.mxu0 %v1361
    %1382 = vmatprep.subr.mxu0 0.0
    %1383 = vmatpush1.msra.mxu0 0.0
    %1384 = vmatprep.subr.mxu0 0.0
    %1385 = vmatpush1.msra.mxu0 0.0
    %1386 = vmatprep.subr.mxu0 0.0
    %1387 = vmatpush1.msra.mxu0 0.0
    %1388 = vmatprep.subr.mxu0 0.0
    %1389 = vmatpush1.msra.mxu0 0.0
    %1390 = vmatprep.subr.mxu0 0.0
    %1391 = vmatpush1.msra.mxu0 0.0
    %1392 = vmatprep.subr.mxu0 0.0
    %1393 = vmatpush1.msra.mxu0 0.0
    %1394 = vmatprep.subr.mxu0 0.0
    %1395 = vmatpush1.msra.mxu0 0.0
    %1396 = vmatprep.subr.mxu0 0.0
    %1397 = vmatpush1.msra.mxu0 0.0
    %1398 = vmatprep.subr.mxu0 0.0
    %1399 = vmatpush1.msra.mxu0 0.0
    %1400 = vmatprep.subr.mxu0 0.0
    %1401 = vmatpush1.msra.mxu0 0.0
    %1402 = vmatprep.subr.mxu0 0.0
    %1403 = vmatpush1.msra.mxu0 0.0
    %1404 = vmatprep.subr.mxu0 0.0
    %1405 = vmatpush1.msra.mxu0 0.0
    %1406 = vmatprep.subr.mxu0 0.0
    %1407 = vmatpush1.msra.mxu0 0.0
    %1408 = vmatprep.subr.mxu0 0.0
    %1409 = vmatpush1.msra.mxu0 0.0
    %1410 = vmatprep.subr.mxu0 0.0
    %1411 = vmatpush1.msra.mxu0 0.0
    %1412 = vmatprep.subr.mxu0 0.0
    %1413 = vmatpush1.msra.mxu0 0.0
    %1414 = vmatprep.subr.mxu0 0.0
    %1415 = vmatpush1.msra.mxu0 0.0
    %1416 = vmatprep.subr.mxu0 0.0
    %1417 = vmatpush1.msra.mxu0 0.0
    %1418 = vmatprep.subr.mxu0 0.0
    %1419 = vmatpush1.msra.mxu0 0.0
    %1420 = vmatprep.subr.mxu0 0.0
    %1421 = vmatpush1.msra.mxu0 0.0
    %1422 = vmatprep.subr.mxu0 0.0
    %1423 = vmatpush1.msra.mxu0 0.0
    %1424 = vmatprep.subr.mxu0 0.0
    %1425 = vmatpush1.msra.mxu0 0.0
    %1426 = vmatprep.subr.mxu0 0.0
    %1427 = vmatpush1.msra.mxu0 0.0
    %1428 = vmatprep.subr.mxu0 0.0
    %1429 = vmatpush1.msra.mxu0 0.0
    %1430 = vmatprep.subr.mxu0 0.0
    %1431 = vmatpush1.msra.mxu0 0.0
    %1432 = vmatprep.subr.mxu0 0.0
    %1433 = vmatpush1.msra.mxu0 0.0
    %1434 = vmatprep.subr.mxu0 0.0
    %1435 = vmatpush1.msra.mxu0 0.0
    %1436 = vmatprep.subr.mxu0 0.0
    %1437 = vmatpush1.msra.mxu0 0.0
    %1438 = vmatprep.mubr.f32.mxu0 0.0
    %1439 = vmatmul.mubr.f32.gmra.mrb[0].mxu0 %v1363
    %v1440 = vpop.f32.mrb[0].mxu0
    %v1441 = vadd.f32 %v875, %v1440
    %v1442 = vpop.f32.mrb[0].mxu0
    %1443 = vmatprep.mubr.f32.mxu0 0.0
    %1444 = vmatmul.mubr.f32.gmra.mrb[0].mxu0 %v1366
    %v1445 = vpop.f32.mrb[0].mxu0
    %v1446 = vadd.f32 %v876, %v1445
    %v1447 = vpop.f32.mrb[0].mxu0
    %1448 = vmatprep.mubr.f32.mxu0 0.0
    %1449 = vmatmul.mubr.f32.gmra.mrb[0].mxu0 %v1369
    %v1450 = vpop.f32.mrb[0].mxu0
    %v1451 = vadd.f32 %v877, %v1450
    %v1452 = vpop.f32.mrb[0].mxu0
    %1453 = vmatprep.mubr.f32.mxu0 0.0
    %1454 = vmatmul.mubr.f32.gmra.mrb[0].mxu0 %v1372
    %v1455 = vpop.f32.mrb[0].mxu0
    %v1456 = vadd.f32 %v878, %v1455
    %v1457 = vpop.f32.mrb[0].mxu0
    %1458 = vdwg.mxu0
    %1459 = vmax.xlane.f32.xlu0 %v1441
    %v1460 = vpop.xlane.xlu0 %1459
    %1461 = vmax.xlane.f32.xlu0 %v1446
    %v1462 = vpop.xlane.xlu0 %1461
    %1463 = vmax.xlane.f32.xlu0 %v1451
    %v1464 = vpop.xlane.xlu0 %1463
    %1465 = vmax.xlane.f32.xlu0 %v1456
    %v1466 = vpop.xlane.xlu0 %1465
    %v1467 = vsub.f32 %v1441, %v1460
    %v1468 = vsub.f32 %v1446, %v1462
    %v1469 = vsub.f32 %v1451, %v1464
    %v1470 = vsub.f32 %v1456, %v1466
    %v1471 = vmul.f32 %v1467, 1.442695
    %v1472 = vpow.pop %v1471
    %v1473 = vmul.f32 %v1468, 1.442695
    %v1474 = vpow.pop %v1473
    %v1475 = vmul.f32 %v1469, 1.442695
    %v1476 = vpow.pop %v1475
    %v1477 = vmul.f32 %v1470, 1.442695
    %v1478 = vpow.pop %v1477
    %v1479 = vmul.f32 %v1256, %v883
    %v1480 = vmul.f32 %v1261, %v884
    %v1481 = vmul.f32 %v1266, %v885
    %v1482 = vmul.f32 %v1271, %v886
    %v1483 = vmul.f32 %v1256, %v887
    %v1484 = vmul.f32 %v1261, %v888
    %v1485 = vmul.f32 %v1266, %v889
    %v1486 = vmul.f32 %v1271, %v890
    %v1487 = vmul.f32 %v1256, %v891
    %v1488 = vmul.f32 %v1261, %v892
    %v1489 = vmul.f32 %v1266, %v893
    %v1490 = vmul.f32 %v1271, %v894
    %v1491 = vmul.f32 %v1256, %v895
    %v1492 = vmul.f32 %v1261, %v896
    %v1493 = vmul.f32 %v1266, %v897
    %v1494 = vmul.f32 %v1271, %v898
    %1511 = vrot.lane.b32.xlu0 %v883, 32
    %v1512 = vpop.permute.xlu0 %1511
    %1513 = vrot.lane.b32.xlu0 %v884, 32
    %v1514 = vpop.permute.xlu0 %1513
    %1515 = vrot.lane.b32.xlu0 %v885, 32
    %v1516 = vpop.permute.xlu0 %1515
    %1517 = vrot.lane.b32.xlu0 %v886, 32
    %v1518 = vpop.permute.xlu0 %1517
    %1519 = vrot.lane.b32.xlu0 %v887, 32
    %v1520 = vpop.permute.xlu0 %1519
    %1521 = vrot.lane.b32.xlu0 %v888, 32
    %v1522 = vpop.permute.xlu0 %1521
    %1523 = vrot.lane.b32.xlu0 %v889, 32
    %v1524 = vpop.permute.xlu0 %1523
    %1525 = vrot.lane.b32.xlu0 %v890, 32
    %v1526 = vpop.permute.xlu0 %1525
    %1527 = vrot.lane.b32.xlu0 %v891, 32
    %v1528 = vpop.permute.xlu0 %1527
    %1529 = vrot.lane.b32.xlu0 %v892, 32
    %v1530 = vpop.permute.xlu0 %1529
    %1531 = vrot.lane.b32.xlu0 %v893, 32
    %v1532 = vpop.permute.xlu0 %1531
    %1533 = vrot.lane.b32.xlu0 %v894, 32
    %v1534 = vpop.permute.xlu0 %1533
    %1535 = vrot.lane.b32.xlu0 %v895, 32
    %v1536 = vpop.permute.xlu0 %1535
    %1537 = vrot.lane.b32.xlu0 %v896, 32
    %v1538 = vpop.permute.xlu0 %1537
    %1539 = vrot.lane.b32.xlu0 %v897, 32
    %v1540 = vpop.permute.xlu0 %1539
    %1541 = vrot.lane.b32.xlu0 %v898, 32
    %v1542 = vpop.permute.xlu0 %1541
    %v1559 = vsel %vm864, %v1479, %v1512
    %v1560 = vsel %vm864, %v1480, %v1514
    %v1561 = vsel %vm864, %v1481, %v1516
    %v1562 = vsel %vm864, %v1482, %v1518
    %v1563 = vsel %vm864, %v1483, %v1520
    %v1564 = vsel %vm864, %v1484, %v1522
    %v1565 = vsel %vm864, %v1485, %v1524
    %v1566 = vsel %vm864, %v1486, %v1526
    %v1567 = vsel %vm864, %v1487, %v1528
    %v1568 = vsel %vm864, %v1488, %v1530
    %v1569 = vsel %vm864, %v1489, %v1532
    %v1570 = vsel %vm864, %v1490, %v1534
    %v1571 = vsel %vm864, %v1491, %v1536
    %v1572 = vsel %vm864, %v1492, %v1538
    %v1573 = vsel %vm864, %v1493, %v1540
    %v1574 = vsel %vm864, %v1494, %v1542
    %1575 = vmatprep.subr.mxu0 0.0
    %1576 = vmatpush1.msra.mxu0 %v1559
    %1577 = vmatprep.subr.mxu0 0.0
    %1578 = vmatpush1.msra.mxu0 %v1560
    %1579 = vmatprep.subr.mxu0 0.0
    %1580 = vmatpush1.msra.mxu0 %v1561
    %1581 = vmatprep.subr.mxu0 0.0
    %1582 = vmatpush1.msra.mxu0 %v1562
    %1583 = vmatprep.subr.mxu0 0.0
    %1584 = vmatpush1.msra.mxu0 %v1563
    %1585 = vmatprep.subr.mxu0 0.0
    %1586 = vmatpush1.msra.mxu0 %v1564
    %1587 = vmatprep.subr.mxu0 0.0
    %1588 = vmatpush1.msra.mxu0 %v1565
    %1589 = vmatprep.subr.mxu0 0.0
    %1590 = vmatpush1.msra.mxu0 %v1566
    %1591 = vmatprep.subr.mxu0 0.0
    %1592 = vmatpush1.msra.mxu0 %v1567
    %1593 = vmatprep.subr.mxu0 0.0
    %1594 = vmatpush1.msra.mxu0 %v1568
    %1595 = vmatprep.subr.mxu0 0.0
    %1596 = vmatpush1.msra.mxu0 %v1569
    %1597 = vmatprep.subr.mxu0 0.0
    %1598 = vmatpush1.msra.mxu0 %v1570
    %1599 = vmatprep.subr.mxu0 0.0
    %1600 = vmatpush1.msra.mxu0 %v1571
    %1601 = vmatprep.subr.mxu0 0.0
    %1602 = vmatpush1.msra.mxu0 %v1572
    %1603 = vmatprep.subr.mxu0 0.0
    %1604 = vmatpush1.msra.mxu0 %v1573
    %1605 = vmatprep.subr.mxu0 0.0
    %1606 = vmatpush1.msra.mxu0 %v1574
    %1607 = vmatprep.subr.mxu0 0.0
    %1608 = vmatpush1.msra.mxu0 0.0
    %1609 = vmatprep.subr.mxu0 0.0
    %1610 = vmatpush1.msra.mxu0 0.0
    %1611 = vmatprep.subr.mxu0 0.0
    %1612 = vmatpush1.msra.mxu0 0.0
    %1613 = vmatprep.subr.mxu0 0.0
    %1614 = vmatpush1.msra.mxu0 0.0
    %1615 = vmatprep.subr.mxu0 0.0
    %1616 = vmatpush1.msra.mxu0 0.0
    %1617 = vmatprep.subr.mxu0 0.0
    %1618 = vmatpush1.msra.mxu0 0.0
    %1619 = vmatprep.subr.mxu0 0.0
    %1620 = vmatpush1.msra.mxu0 0.0
    %1621 = vmatprep.subr.mxu0 0.0
    %1622 = vmatpush1.msra.mxu0 0.0
    %1623 = vmatprep.subr.mxu0 0.0
    %1624 = vmatpush1.msra.mxu0 0.0
    %1625 = vmatprep.subr.mxu0 0.0
    %1626 = vmatpush1.msra.mxu0 0.0
    %1627 = vmatprep.subr.mxu0 0.0
    %1628 = vmatpush1.msra.mxu0 0.0
    %1629 = vmatprep.subr.mxu0 0.0
    %1630 = vmatpush1.msra.mxu0 0.0
    %1631 = vmatprep.subr.mxu0 0.0
    %1632 = vmatpush1.msra.mxu0 0.0
    %1633 = vmatprep.subr.mxu0 0.0
    %1634 = vmatpush1.msra.mxu0 0.0
    %1635 = vmatprep.subr.mxu0 0.0
    %1636 = vmatpush1.msra.mxu0 0.0
    %1637 = vmatprep.subr.mxu0 0.0
    %1638 = vmatpush1.msra.mxu0 0.0
    %1639 = vmatprep.mubr.f32.mxu0 0.0
    %1640 = vmatmul.mubr.f32.gmra.mrb[0].mxu0 %v1472
    %v1641 = vpop.f32.mrb[0].mxu0
    %v1642 = vadd.f32 0.0, %v1641
    %v1643 = vpop.f32.mrb[0].mxu0
    %1644 = vmatprep.mubr.f32.mxu0 0.0
    %1645 = vmatmul.mubr.f32.gmra.mrb[0].mxu0 %v1474
    %v1646 = vpop.f32.mrb[0].mxu0
    %v1647 = vadd.f32 0.0, %v1646
    %v1648 = vpop.f32.mrb[0].mxu0
    %1649 = vmatprep.mubr.f32.mxu0 0.0
    %1650 = vmatmul.mubr.f32.gmra.mrb[0].mxu0 %v1476
    %v1651 = vpop.f32.mrb[0].mxu0
    %v1652 = vadd.f32 0.0, %v1651
    %v1653 = vpop.f32.mrb[0].mxu0
    %1654 = vmatprep.mubr.f32.mxu0 0.0
    %1655 = vmatmul.mubr.f32.gmra.mrb[0].mxu0 %v1478
    %v1656 = vpop.f32.mrb[0].mxu0
    %v1657 = vadd.f32 0.0, %v1656
    %v1658 = vpop.f32.mrb[0].mxu0
    %1659 = vdwg.mxu0
    %v1660 = vmax.f32 %v1642, 1e-30
    %v1661 = vmax.f32 %v1647, 1e-30
    %v1662 = vmax.f32 %v1652, 1e-30
    %v1663 = vmax.f32 %v1657, 1e-30
    %1668 = vrot.lane.b32.xlu0 %v1660, 96
    %v1669 = vpop.permute.xlu0 %1668
    %1670 = vrot.lane.b32.xlu0 %v1661, 96
    %v1671 = vpop.permute.xlu0 %1670
    %1672 = vrot.lane.b32.xlu0 %v1662, 96
    %v1673 = vpop.permute.xlu0 %1672
    %1674 = vrot.lane.b32.xlu0 %v1663, 96
    %v1675 = vpop.permute.xlu0 %1674
    %v1680 = vrcp.pop %v1669
    %v1681 = vmul.f32 %v1642, %v1680
    %v1682 = vrcp.pop %v1671
    %v1683 = vmul.f32 %v1647, %v1682
    %v1684 = vrcp.pop %v1673
    %v1685 = vmul.f32 %v1652, %v1684
    %v1686 = vrcp.pop %v1675
    %v1687 = vmul.f32 %v1657, %v1686
    %v1688 = vld [vmem:[#allocation18] sm:$0xff]
    %v1689 = vld [vmem:[#allocation18 + $0x8] sm:$0xff]
    %v1690 = vld [vmem:[#allocation18 + $0x10] sm:$0xff]
    %v1691 = vld [vmem:[#allocation18 + $0x18] sm:$0xff]
    %v1692 = vld [vmem:[%s16] sm:$0x1]
    %v1694 = vlaneseq
    %v1695 = vshrl.u32 %v1694, 7
    %v1696 = vsub.s32 0, %v1695
    %v1697 = vrot.slane %v1692, %v1696
    %v1700 = vsel %vm864, %v1681, 0
    %v1703 = vsel %vm864, %v1683, 0
    %v1706 = vsel %vm864, %v1685, 0
    %v1709 = vsel %vm864, %v1687, 0
    %1711 = vmatprep.subr.mxu0 0.0
    %1712 = vmatpush1.msra.mxu0 %v1688
    %1713 = vmatprep.subr.mxu0 0.0
    %1714 = vmatpush1.msra.mxu0 %v1689
    %1715 = vmatprep.subr.mxu0 0.0
    %1716 = vmatpush1.msra.mxu0 %v1690
    %1717 = vmatprep.subr.mxu0 0.0
    %1718 = vmatpush1.msra.mxu0 %v1691
    %1719 = vmatprep.subr.mxu0 0.0
    %1720 = vmatpush1.msra.mxu0 0.0
    %1721 = vmatprep.subr.mxu0 0.0
    %1722 = vmatpush1.msra.mxu0 0.0
    %1723 = vmatprep.subr.mxu0 0.0
    %1724 = vmatpush1.msra.mxu0 0.0
    %1725 = vmatprep.subr.mxu0 0.0
    %1726 = vmatpush1.msra.mxu0 0.0
    %1727 = vmatprep.subr.mxu0 0.0
    %1728 = vmatpush1.msra.mxu0 0.0
    %1729 = vmatprep.subr.mxu0 0.0
    %1730 = vmatpush1.msra.mxu0 0.0
    %1731 = vmatprep.subr.mxu0 0.0
    %1732 = vmatpush1.msra.mxu0 0.0
    %1733 = vmatprep.subr.mxu0 0.0
    %1734 = vmatpush1.msra.mxu0 0.0
    %1735 = vmatprep.subr.mxu0 0.0
    %1736 = vmatpush1.msra.mxu0 0.0
    %1737 = vmatprep.subr.mxu0 0.0
    %1738 = vmatpush1.msra.mxu0 0.0
    %1739 = vmatprep.subr.mxu0 0.0
    %1740 = vmatpush1.msra.mxu0 0.0
    %1741 = vmatprep.subr.mxu0 0.0
    %1742 = vmatpush1.msra.mxu0 0.0
    %1743 = vmatprep.subr.mxu0 0.0
    %1744 = vmatpush1.msra.mxu0 0.0
    %1745 = vmatprep.subr.mxu0 0.0
    %1746 = vmatpush1.msra.mxu0 0.0
    %1747 = vmatprep.subr.mxu0 0.0
    %1748 = vmatpush1.msra.mxu0 0.0
    %1749 = vmatprep.subr.mxu0 0.0
    %1750 = vmatpush1.msra.mxu0 0.0
    %1751 = vmatprep.subr.mxu0 0.0
    %1752 = vmatpush1.msra.mxu0 0.0
    %1753 = vmatprep.subr.mxu0 0.0
    %1754 = vmatpush1.msra.mxu0 0.0
    %1755 = vmatprep.subr.mxu0 0.0
    %1756 = vmatpush1.msra.mxu0 0.0
    %1757 = vmatprep.subr.mxu0 0.0
    %1758 = vmatpush1.msra.mxu0 0.0
    %1759 = vmatprep.subr.mxu0 0.0
    %1760 = vmatpush1.msra.mxu0 0.0
    %1761 = vmatprep.subr.mxu0 0.0
    %1762 = vmatpush1.msra.mxu0 0.0
    %1763 = vmatprep.subr.mxu0 0.0
    %1764 = vmatpush1.msra.mxu0 0.0
    %1765 = vmatprep.subr.mxu0 0.0
    %1766 = vmatpush1.msra.mxu0 0.0
    %1767 = vmatprep.subr.mxu0 0.0
    %1768 = vmatpush1.msra.mxu0 0.0
    %1769 = vmatprep.subr.mxu0 0.0
    %1770 = vmatpush1.msra.mxu0 0.0
    %1771 = vmatprep.subr.mxu0 0.0
    %1772 = vmatpush1.msra.mxu0 0.0
    %1773 = vmatprep.subr.mxu0 0.0
    %1774 = vmatpush1.msra.mxu0 0.0
    %1775 = vmatprep.mubr.f32.mxu0 0.0
    %1776 = vmatmul.mubr.f32.gmra.mrb[0].mxu0 %v1700
    %v1777 = vpop.f32.mrb[0].mxu0
    %v1778 = vadd.f32 %v1697, %v1777
    %v1779 = vpop.f32.mrb[0].mxu0
    %1780 = vmatprep.mubr.f32.mxu0 0.0
    %1781 = vmatmul.mubr.f32.gmra.mrb[0].mxu0 %v1703
    %v1782 = vpop.f32.mrb[0].mxu0
    %v1783 = vadd.f32 %v1697, %v1782
    %v1784 = vpop.f32.mrb[0].mxu0
    %1785 = vmatprep.mubr.f32.mxu0 0.0
    %1786 = vmatmul.mubr.f32.gmra.mrb[0].mxu0 %v1706
    %v1787 = vpop.f32.mrb[0].mxu0
    %v1788 = vadd.f32 %v1697, %v1787
    %v1789 = vpop.f32.mrb[0].mxu0
    %1790 = vmatprep.mubr.f32.mxu0 0.0
    %1791 = vmatmul.mubr.f32.gmra.mrb[0].mxu0 %v1709
    %v1792 = vpop.f32.mrb[0].mxu0
    %v1793 = vadd.f32 %v1697, %v1792
    %v1794 = vpop.f32.mrb[0].mxu0
    %1795 = vdwg.mxu0
    %v1796 = vadd.f32 %v816, %v1778
    %v1797 = vadd.f32 %v817, %v1783
    %v1798 = vadd.f32 %v818, %v1788
    %v1799 = vadd.f32 %v819, %v1793
    %v1800 = vld [vmem:[%s17] sm:$0x1]
    %v1801 = vld [vmem:[%s18] sm:$0x1]
    %v1802 = vsel %vm864, %v1796, 0.0
    %1803 = vadd.xlane.f32.xlu0 %v1802
    %v1804 = vpop.xlane.xlu0 %1803
    %v1805 = vsel %vm864, %v1797, 0.0
    %1806 = vadd.xlane.f32.xlu0 %v1805
    %v1807 = vpop.xlane.xlu0 %1806
    %v1808 = vsel %vm864, %v1798, 0.0
    %1809 = vadd.xlane.f32.xlu0 %v1808
    %v1810 = vpop.xlane.xlu0 %1809
    %v1811 = vsel %vm864, %v1799, 0.0
    %1812 = vadd.xlane.f32.xlu0 %v1811
    %v1813 = vpop.xlane.xlu0 %1812
    %v1814 = vmul.f32 %v1804, %v913
    %v1815 = vmul.f32 %v1807, %v913
    %v1816 = vmul.f32 %v1810, %v913
    %v1817 = vmul.f32 %v1813, %v913
    %v1818 = vsub.f32 %v1796, %v1814
    %v1819 = vsub.f32 %v1797, %v1815
    %v1820 = vsub.f32 %v1798, %v1816
    %v1821 = vsub.f32 %v1799, %v1817
    %v1822 = vmul.f32 %v1818, %v1818
    %v1823 = vmul.f32 %v1819, %v1819
    %v1824 = vmul.f32 %v1820, %v1820
    %v1825 = vmul.f32 %v1821, %v1821
    %v1826 = vsel %vm864, %v1822, 0.0
    %1827 = vadd.xlane.f32.xlu0 %v1826
    %v1828 = vpop.xlane.xlu0 %1827
    %v1829 = vsel %vm864, %v1823, 0.0
    %1830 = vadd.xlane.f32.xlu0 %v1829
    %v1831 = vpop.xlane.xlu0 %1830
    %v1832 = vsel %vm864, %v1824, 0.0
    %1833 = vadd.xlane.f32.xlu0 %v1832
    %v1834 = vpop.xlane.xlu0 %1833
    %v1835 = vsel %vm864, %v1825, 0.0
    %1836 = vadd.xlane.f32.xlu0 %v1835
    %v1837 = vpop.xlane.xlu0 %1836
    %v1838 = vmul.f32 %v1828, %v913
    %v1839 = vmul.f32 %v1831, %v913
    %v1840 = vmul.f32 %v1834, %v913
    %v1841 = vmul.f32 %v1837, %v913
    %v1842 = vadd.f32 %v1838, 1e-05
    %v1843 = vadd.f32 %v1839, 1e-05
    %v1844 = vadd.f32 %v1840, 1e-05
    %v1845 = vadd.f32 %v1841, 1e-05
    %v1846 = vrsqrt.pop %v1842
    %v1847 = vrsqrt.pop %v1843
    %v1848 = vrsqrt.pop %v1844
    %v1849 = vrsqrt.pop %v1845
    %v1850 = vmul.f32 %v1818, %v1846
    %v1851 = vmul.f32 %v1819, %v1847
    %v1852 = vmul.f32 %v1820, %v1848
    %v1853 = vmul.f32 %v1821, %v1849
    %v1855 = vlaneseq
    %v1856 = vshrl.u32 %v1855, 7
    %v1857 = vsub.s32 0, %v1856
    %v1858 = vrot.slane %v1800, %v1857
    %v1860 = vmul.f32 %v1850, %v1858
    %v1861 = vmul.f32 %v1851, %v1858
    %v1862 = vmul.f32 %v1852, %v1858
    %v1863 = vmul.f32 %v1853, %v1858
    %v1865 = vlaneseq
    %v1866 = vshrl.u32 %v1865, 7
    %v1867 = vsub.s32 0, %v1866
    %v1868 = vrot.slane %v1801, %v1867
    %v1870 = vadd.f32 %v1860, %v1868
    %v1871 = vadd.f32 %v1861, %v1868
    %v1872 = vadd.f32 %v1862, %v1868
    %v1873 = vadd.f32 %v1863, %v1868
    %v1874 = vld [vmem:[%s19] sm:$0xff]
    %v1875 = vld [vmem:[%s19 + $0x8] sm:$0xff]
    %v1876 = vld [vmem:[%s19 + $0x10] sm:$0xff]
    %v1877 = vld [vmem:[%s19 + $0x18] sm:$0xff]
    %v1878 = vld [vmem:[%s20] sm:$0x1]
    %v1880 = vlaneseq
    %v1881 = vshrl.u32 %v1880, 7
    %v1882 = vsub.s32 0, %v1881
    %v1883 = vrot.slane %v1878, %v1882
    %v1886 = vsel %vm864, %v1870, 0
    %v1889 = vsel %vm864, %v1871, 0
    %v1892 = vsel %vm864, %v1872, 0
    %v1895 = vsel %vm864, %v1873, 0
    %1897 = vmatprep.subr.mxu0 0.0
    %1898 = vmatpush1.msra.mxu0 %v1874
    %1899 = vmatprep.subr.mxu0 0.0
    %1900 = vmatpush1.msra.mxu0 %v1875
    %1901 = vmatprep.subr.mxu0 0.0
    %1902 = vmatpush1.msra.mxu0 %v1876
    %1903 = vmatprep.subr.mxu0 0.0
    %1904 = vmatpush1.msra.mxu0 %v1877
    %1905 = vmatprep.subr.mxu0 0.0
    %1906 = vmatpush1.msra.mxu0 0.0
    %1907 = vmatprep.subr.mxu0 0.0
    %1908 = vmatpush1.msra.mxu0 0.0
    %1909 = vmatprep.subr.mxu0 0.0
    %1910 = vmatpush1.msra.mxu0 0.0
    %1911 = vmatprep.subr.mxu0 0.0
    %1912 = vmatpush1.msra.mxu0 0.0
    %1913 = vmatprep.subr.mxu0 0.0
    %1914 = vmatpush1.msra.mxu0 0.0
    %1915 = vmatprep.subr.mxu0 0.0
    %1916 = vmatpush1.msra.mxu0 0.0
    %1917 = vmatprep.subr.mxu0 0.0
    %1918 = vmatpush1.msra.mxu0 0.0
    %1919 = vmatprep.subr.mxu0 0.0
    %1920 = vmatpush1.msra.mxu0 0.0
    %1921 = vmatprep.subr.mxu0 0.0
    %1922 = vmatpush1.msra.mxu0 0.0
    %1923 = vmatprep.subr.mxu0 0.0
    %1924 = vmatpush1.msra.mxu0 0.0
    %1925 = vmatprep.subr.mxu0 0.0
    %1926 = vmatpush1.msra.mxu0 0.0
    %1927 = vmatprep.subr.mxu0 0.0
    %1928 = vmatpush1.msra.mxu0 0.0
    %1929 = vmatprep.subr.mxu0 0.0
    %1930 = vmatpush1.msra.mxu0 0.0
    %1931 = vmatprep.subr.mxu0 0.0
    %1932 = vmatpush1.msra.mxu0 0.0
    %1933 = vmatprep.subr.mxu0 0.0
    %1934 = vmatpush1.msra.mxu0 0.0
    %1935 = vmatprep.subr.mxu0 0.0
    %1936 = vmatpush1.msra.mxu0 0.0
    %1937 = vmatprep.subr.mxu0 0.0
    %1938 = vmatpush1.msra.mxu0 0.0
    %1939 = vmatprep.subr.mxu0 0.0
    %1940 = vmatpush1.msra.mxu0 0.0
    %1941 = vmatprep.subr.mxu0 0.0
    %1942 = vmatpush1.msra.mxu0 0.0
    %1943 = vmatprep.subr.mxu0 0.0
    %1944 = vmatpush1.msra.mxu0 0.0
    %1945 = vmatprep.subr.mxu0 0.0
    %1946 = vmatpush1.msra.mxu0 0.0
    %1947 = vmatprep.subr.mxu0 0.0
    %1948 = vmatpush1.msra.mxu0 0.0
    %1949 = vmatprep.subr.mxu0 0.0
    %1950 = vmatpush1.msra.mxu0 0.0
    %1951 = vmatprep.subr.mxu0 0.0
    %1952 = vmatpush1.msra.mxu0 0.0
    %1953 = vmatprep.subr.mxu0 0.0
    %1954 = vmatpush1.msra.mxu0 0.0
    %1955 = vmatprep.subr.mxu0 0.0
    %1956 = vmatpush1.msra.mxu0 0.0
    %1957 = vmatprep.subr.mxu0 0.0
    %1958 = vmatpush1.msra.mxu0 0.0
    %1959 = vmatprep.subr.mxu0 0.0
    %1960 = vmatpush1.msra.mxu0 0.0
    %1961 = vmatprep.mubr.f32.mxu0 0.0
    %1962 = vmatmul.mubr.f32.gmra.mrb[0].mxu0 %v1886
    %v1963 = vpop.f32.mrb[0].mxu0
    %v1964 = vadd.f32 %v1883, %v1963
    %v1965 = vpop.f32.mrb[0].mxu0
    %1966 = vmatprep.mubr.f32.mxu0 0.0
    %1967 = vmatmul.mubr.f32.gmra.mrb[0].mxu0 %v1889
    %v1968 = vpop.f32.mrb[0].mxu0
    %v1969 = vadd.f32 %v1883, %v1968
    %v1970 = vpop.f32.mrb[0].mxu0
    %1971 = vmatprep.mubr.f32.mxu0 0.0
    %1972 = vmatmul.mubr.f32.gmra.mrb[0].mxu0 %v1892
    %v1973 = vpop.f32.mrb[0].mxu0
    %v1974 = vadd.f32 %v1883, %v1973
    %v1975 = vpop.f32.mrb[0].mxu0
    %1976 = vmatprep.mubr.f32.mxu0 0.0
    %1977 = vmatmul.mubr.f32.gmra.mrb[0].mxu0 %v1895
    %v1978 = vpop.f32.mrb[0].mxu0
    %v1979 = vadd.f32 %v1883, %v1978
    %v1980 = vpop.f32.mrb[0].mxu0
    %1981 = vdwg.mxu0
    %v1982 = vmax.f32 %v1964, 0.0
    %v1983 = vmax.f32 %v1969, 0.0
    %v1984 = vmax.f32 %v1974, 0.0
    %v1985 = vmax.f32 %v1979, 0.0
    %v1986 = vld [vmem:[#allocation19] sm:$0xff]
    %v1987 = vld [vmem:[#allocation19 + $0x8] sm:$0xff]
    %v1988 = vld [vmem:[#allocation19 + $0x10] sm:$0xff]
    %v1989 = vld [vmem:[#allocation19 + $0x18] sm:$0xff]
    %v1990 = vld [vmem:[#allocation19 + $0x20] sm:$0xff]
    %v1991 = vld [vmem:[#allocation19 + $0x28] sm:$0xff]
    %v1992 = vld [vmem:[#allocation19 + $0x30] sm:$0xff]
    %v1993 = vld [vmem:[#allocation19 + $0x38] sm:$0xff]
    %v1994 = vld [vmem:[%s22] sm:$0x1]
    %v1996 = vlaneseq
    %v1997 = vshrl.u32 %v1996, 7
    %v1998 = vsub.s32 0, %v1997
    %v1999 = vrot.slane %v1994, %v1998
    %v2002 = vsel %vm869, %v1982, 0
    %v2005 = vsel %vm869, %v1983, 0
    %v2008 = vsel %vm869, %v1984, 0
    %v2011 = vsel %vm869, %v1985, 0
    %2013 = vmatprep.subr.mxu0 0.0
    %2014 = vmatpush1.msra.mxu0 %v1986
    %2015 = vmatprep.subr.mxu0 0.0
    %2016 = vmatpush1.msra.mxu0 %v1987
    %2017 = vmatprep.subr.mxu0 0.0
    %2018 = vmatpush1.msra.mxu0 %v1988
    %2019 = vmatprep.subr.mxu0 0.0
    %2020 = vmatpush1.msra.mxu0 %v1989
    %2021 = vmatprep.subr.mxu0 0.0
    %2022 = vmatpush1.msra.mxu0 %v1990
    %2023 = vmatprep.subr.mxu0 0.0
    %2024 = vmatpush1.msra.mxu0 %v1991
    %2025 = vmatprep.subr.mxu0 0.0
    %2026 = vmatpush1.msra.mxu0 %v1992
    %2027 = vmatprep.subr.mxu0 0.0
    %2028 = vmatpush1.msra.mxu0 %v1993
    %2029 = vmatprep.subr.mxu0 0.0
    %2030 = vmatpush1.msra.mxu0 0.0
    %2031 = vmatprep.subr.mxu0 0.0
    %2032 = vmatpush1.msra.mxu0 0.0
    %2033 = vmatprep.subr.mxu0 0.0
    %2034 = vmatpush1.msra.mxu0 0.0
    %2035 = vmatprep.subr.mxu0 0.0
    %2036 = vmatpush1.msra.mxu0 0.0
    %2037 = vmatprep.subr.mxu0 0.0
    %2038 = vmatpush1.msra.mxu0 0.0
    %2039 = vmatprep.subr.mxu0 0.0
    %2040 = vmatpush1.msra.mxu0 0.0
    %2041 = vmatprep.subr.mxu0 0.0
    %2042 = vmatpush1.msra.mxu0 0.0
    %2043 = vmatprep.subr.mxu0 0.0
    %2044 = vmatpush1.msra.mxu0 0.0
    %2045 = vmatprep.subr.mxu0 0.0
    %2046 = vmatpush1.msra.mxu0 0.0
    %2047 = vmatprep.subr.mxu0 0.0
    %2048 = vmatpush1.msra.mxu0 0.0
    %2049 = vmatprep.subr.mxu0 0.0
    %2050 = vmatpush1.msra.mxu0 0.0
    %2051 = vmatprep.subr.mxu0 0.0
    %2052 = vmatpush1.msra.mxu0 0.0
    %2053 = vmatprep.subr.mxu0 0.0
    %2054 = vmatpush1.msra.mxu0 0.0
    %2055 = vmatprep.subr.mxu0 0.0
    %2056 = vmatpush1.msra.mxu0 0.0
    %2057 = vmatprep.subr.mxu0 0.0
    %2058 = vmatpush1.msra.mxu0 0.0
    %2059 = vmatprep.subr.mxu0 0.0
    %2060 = vmatpush1.msra.mxu0 0.0
    %2061 = vmatprep.subr.mxu0 0.0
    %2062 = vmatpush1.msra.mxu0 0.0
    %2063 = vmatprep.subr.mxu0 0.0
    %2064 = vmatpush1.msra.mxu0 0.0
    %2065 = vmatprep.subr.mxu0 0.0
    %2066 = vmatpush1.msra.mxu0 0.0
    %2067 = vmatprep.subr.mxu0 0.0
    %2068 = vmatpush1.msra.mxu0 0.0
    %2069 = vmatprep.subr.mxu0 0.0
    %2070 = vmatpush1.msra.mxu0 0.0
    %2071 = vmatprep.subr.mxu0 0.0
    %2072 = vmatpush1.msra.mxu0 0.0
    %2073 = vmatprep.subr.mxu0 0.0
    %2074 = vmatpush1.msra.mxu0 0.0
    %2075 = vmatprep.subr.mxu0 0.0
    %2076 = vmatpush1.msra.mxu0 0.0
    %2077 = vmatprep.mubr.f32.mxu0 0.0
    %2078 = vmatmul.mubr.f32.gmra.mrb[0].mxu0 %v2002
    %v2079 = vpop.f32.mrb[0].mxu0
    %v2080 = vadd.f32 %v1999, %v2079
    %v2081 = vpop.f32.mrb[0].mxu0
    %2082 = vmatprep.mubr.f32.mxu0 0.0
    %2083 = vmatmul.mubr.f32.gmra.mrb[0].mxu0 %v2005
    %v2084 = vpop.f32.mrb[0].mxu0
    %v2085 = vadd.f32 %v1999, %v2084
    %v2086 = vpop.f32.mrb[0].mxu0
    %2087 = vmatprep.mubr.f32.mxu0 0.0
    %2088 = vmatmul.mubr.f32.gmra.mrb[0].mxu0 %v2008
    %v2089 = vpop.f32.mrb[0].mxu0
    %v2090 = vadd.f32 %v1999, %v2089
    %v2091 = vpop.f32.mrb[0].mxu0
    %2092 = vmatprep.mubr.f32.mxu0 0.0
    %2093 = vmatmul.mubr.f32.gmra.mrb[0].mxu0 %v2011
    %v2094 = vpop.f32.mrb[0].mxu0
    %v2095 = vadd.f32 %v1999, %v2094
    %v2096 = vpop.f32.mrb[0].mxu0
    %2097 = vdwg.mxu0
    %v2098 = vadd.f32 %v1796, %v2080
    %v2099 = vadd.f32 %v1797, %v2085
    %v2100 = vadd.f32 %v1798, %v2090
    %v2101 = vadd.f32 %v1799, %v2095
    %s2102 = scalar_lea.vmem %s7, 1
    %v2103 = vld [vmem:[%s2102] sm:$0x1]
    %s2104 = scalar_lea.vmem %s8, 1
    %v2105 = vld [vmem:[%s2104] sm:$0x1]
    %v2106 = vsel %vm864, %v2098, 0.0
    %2107 = vadd.xlane.f32.xlu0 %v2106
    %v2108 = vpop.xlane.xlu0 %2107
    %v2109 = vsel %vm864, %v2099, 0.0
    %2110 = vadd.xlane.f32.xlu0 %v2109
    %v2111 = vpop.xlane.xlu0 %2110
    %v2112 = vsel %vm864, %v2100, 0.0
    %2113 = vadd.xlane.f32.xlu0 %v2112
    %v2114 = vpop.xlane.xlu0 %2113
    %v2115 = vsel %vm864, %v2101, 0.0
    %2116 = vadd.xlane.f32.xlu0 %v2115
    %v2117 = vpop.xlane.xlu0 %2116
    %v2118 = vmul.f32 %v2108, %v913
    %v2119 = vmul.f32 %v2111, %v913
    %v2120 = vmul.f32 %v2114, %v913
    %v2121 = vmul.f32 %v2117, %v913
    %v2122 = vsub.f32 %v2098, %v2118
    %v2123 = vsub.f32 %v2099, %v2119
    %v2124 = vsub.f32 %v2100, %v2120
    %v2125 = vsub.f32 %v2101, %v2121
    %v2126 = vmul.f32 %v2122, %v2122
    %v2127 = vmul.f32 %v2123, %v2123
    %v2128 = vmul.f32 %v2124, %v2124
    %v2129 = vmul.f32 %v2125, %v2125
    %v2130 = vsel %vm864, %v2126, 0.0
    %2131 = vadd.xlane.f32.xlu0 %v2130
    %v2132 = vpop.xlane.xlu0 %2131
    %v2133 = vsel %vm864, %v2127, 0.0
    %2134 = vadd.xlane.f32.xlu0 %v2133
    %v2135 = vpop.xlane.xlu0 %2134
    %v2136 = vsel %vm864, %v2128, 0.0
    %2137 = vadd.xlane.f32.xlu0 %v2136
    %v2138 = vpop.xlane.xlu0 %2137
    %v2139 = vsel %vm864, %v2129, 0.0
    %2140 = vadd.xlane.f32.xlu0 %v2139
    %v2141 = vpop.xlane.xlu0 %2140
    %v2142 = vmul.f32 %v2132, %v913
    %v2143 = vmul.f32 %v2135, %v913
    %v2144 = vmul.f32 %v2138, %v913
    %v2145 = vmul.f32 %v2141, %v913
    %v2146 = vadd.f32 %v2142, 1e-05
    %v2147 = vadd.f32 %v2143, 1e-05
    %v2148 = vadd.f32 %v2144, 1e-05
    %v2149 = vadd.f32 %v2145, 1e-05
    %v2150 = vrsqrt.pop %v2146
    %v2151 = vrsqrt.pop %v2147
    %v2152 = vrsqrt.pop %v2148
    %v2153 = vrsqrt.pop %v2149
    %v2154 = vmul.f32 %v2122, %v2150
    %v2155 = vmul.f32 %v2123, %v2151
    %v2156 = vmul.f32 %v2124, %v2152
    %v2157 = vmul.f32 %v2125, %v2153
    %v2159 = vlaneseq
    %v2160 = vshrl.u32 %v2159, 7
    %v2161 = vsub.s32 0, %v2160
    %v2162 = vrot.slane %v2103, %v2161
    %v2164 = vmul.f32 %v2154, %v2162
    %v2165 = vmul.f32 %v2155, %v2162
    %v2166 = vmul.f32 %v2156, %v2162
    %v2167 = vmul.f32 %v2157, %v2162
    %v2169 = vlaneseq
    %v2170 = vshrl.u32 %v2169, 7
    %v2171 = vsub.s32 0, %v2170
    %v2172 = vrot.slane %v2105, %v2171
    %v2174 = vadd.f32 %v2164, %v2172
    %v2175 = vadd.f32 %v2165, %v2172
    %v2176 = vadd.f32 %v2166, %v2172
    %v2177 = vadd.f32 %v2167, %v2172
    %s2178 = scalar_lea.vmem [#allocation12], 32
    %v2179 = vld [vmem:[%s2178] sm:$0xff]
    %v2180 = vld [vmem:[%s2178 + $0x8] sm:$0xff]
    %v2181 = vld [vmem:[%s2178 + $0x10] sm:$0xff]
    %v2182 = vld [vmem:[%s2178 + $0x18] sm:$0xff]
    %s2183 = scalar_lea.vmem [#allocation13], 1
    %v2184 = vld [vmem:[%s2183] sm:$0x1]
    %v2186 = vlaneseq
    %v2187 = vshrl.u32 %v2186, 7
    %v2188 = vsub.s32 0, %v2187
    %v2189 = vrot.slane %v2184, %v2188
    %v2192 = vsel %vm864, %v2174, 0
    %v2195 = vsel %vm864, %v2175, 0
    %v2198 = vsel %vm864, %v2176, 0
    %v2201 = vsel %vm864, %v2177, 0
    %2203 = vmatprep.subr.mxu0 0.0
    %2204 = vmatpush1.msra.mxu0 %v2179
    %2205 = vmatprep.subr.mxu0 0.0
    %2206 = vmatpush1.msra.mxu0 %v2180
    %2207 = vmatprep.subr.mxu0 0.0
    %2208 = vmatpush1.msra.mxu0 %v2181
    %2209 = vmatprep.subr.mxu0 0.0
    %2210 = vmatpush1.msra.mxu0 %v2182
    %2211 = vmatprep.subr.mxu0 0.0
    %2212 = vmatpush1.msra.mxu0 0.0
    %2213 = vmatprep.subr.mxu0 0.0
    %2214 = vmatpush1.msra.mxu0 0.0
    %2215 = vmatprep.subr.mxu0 0.0
    %2216 = vmatpush1.msra.mxu0 0.0
    %2217 = vmatprep.subr.mxu0 0.0
    %2218 = vmatpush1.msra.mxu0 0.0
    %2219 = vmatprep.subr.mxu0 0.0
    %2220 = vmatpush1.msra.mxu0 0.0
    %2221 = vmatprep.subr.mxu0 0.0
    %2222 = vmatpush1.msra.mxu0 0.0
    %2223 = vmatprep.subr.mxu0 0.0
    %2224 = vmatpush1.msra.mxu0 0.0
    %2225 = vmatprep.subr.mxu0 0.0
    %2226 = vmatpush1.msra.mxu0 0.0
    %2227 = vmatprep.subr.mxu0 0.0
    %2228 = vmatpush1.msra.mxu0 0.0
    %2229 = vmatprep.subr.mxu0 0.0
    %2230 = vmatpush1.msra.mxu0 0.0
    %2231 = vmatprep.subr.mxu0 0.0
    %2232 = vmatpush1.msra.mxu0 0.0
    %2233 = vmatprep.subr.mxu0 0.0
    %2234 = vmatpush1.msra.mxu0 0.0
    %2235 = vmatprep.subr.mxu0 0.0
    %2236 = vmatpush1.msra.mxu0 0.0
    %2237 = vmatprep.subr.mxu0 0.0
    %2238 = vmatpush1.msra.mxu0 0.0
    %2239 = vmatprep.subr.mxu0 0.0
    %2240 = vmatpush1.msra.mxu0 0.0
    %2241 = vmatprep.subr.mxu0 0.0
    %2242 = vmatpush1.msra.mxu0 0.0
    %2243 = vmatprep.subr.mxu0 0.0
    %2244 = vmatpush1.msra.mxu0 0.0
    %2245 = vmatprep.subr.mxu0 0.0
    %2246 = vmatpush1.msra.mxu0 0.0
    %2247 = vmatprep.subr.mxu0 0.0
    %2248 = vmatpush1.msra.mxu0 0.0
    %2249 = vmatprep.subr.mxu0 0.0
    %2250 = vmatpush1.msra.mxu0 0.0
    %2251 = vmatprep.subr.mxu0 0.0
    %2252 = vmatpush1.msra.mxu0 0.0
    %2253 = vmatprep.subr.mxu0 0.0
    %2254 = vmatpush1.msra.mxu0 0.0
    %2255 = vmatprep.subr.mxu0 0.0
    %2256 = vmatpush1.msra.mxu0 0.0
    %2257 = vmatprep.subr.mxu0 0.0
    %2258 = vmatpush1.msra.mxu0 0.0
    %2259 = vmatprep.subr.mxu0 0.0
    %2260 = vmatpush1.msra.mxu0 0.0
    %2261 = vmatprep.subr.mxu0 0.0
    %2262 = vmatpush1.msra.mxu0 0.0
    %2263 = vmatprep.subr.mxu0 0.0
    %2264 = vmatpush1.msra.mxu0 0.0
    %2265 = vmatprep.subr.mxu0 0.0
    %2266 = vmatpush1.msra.mxu0 0.0
    %2267 = vmatprep.mubr.f32.mxu0 0.0
    %2268 = vmatmul.mubr.f32.gmra.mrb[0].mxu0 %v2192
    %v2269 = vpop.f32.mrb[0].mxu0
    %v2270 = vadd.f32 %v2189, %v2269
    %v2271 = vpop.f32.mrb[0].mxu0
    %2272 = vmatprep.mubr.f32.mxu0 0.0
    %2273 = vmatmul.mubr.f32.gmra.mrb[0].mxu0 %v2195
    %v2274 = vpop.f32.mrb[0].mxu0
    %v2275 = vadd.f32 %v2189, %v2274
    %v2276 = vpop.f32.mrb[0].mxu0
    %2277 = vmatprep.mubr.f32.mxu0 0.0
    %2278 = vmatmul.mubr.f32.gmra.mrb[0].mxu0 %v2198
    %v2279 = vpop.f32.mrb[0].mxu0
    %v2280 = vadd.f32 %v2189, %v2279
    %v2281 = vpop.f32.mrb[0].mxu0
    %2282 = vmatprep.mubr.f32.mxu0 0.0
    %2283 = vmatmul.mubr.f32.gmra.mrb[0].mxu0 %v2201
    %v2284 = vpop.f32.mrb[0].mxu0
    %v2285 = vadd.f32 %v2189, %v2284
    %v2286 = vpop.f32.mrb[0].mxu0
    %2287 = vdwg.mxu0
    %s2288 = scalar_lea.vmem [#allocation15], 32
    %v2289 = vld [vmem:[%s2288] sm:$0xff]
    %v2290 = vld [vmem:[%s2288 + $0x8] sm:$0xff]
    %v2291 = vld [vmem:[%s2288 + $0x10] sm:$0xff]
    %v2292 = vld [vmem:[%s2288 + $0x18] sm:$0xff]
    %s2293 = scalar_lea.vmem %s12, 1
    %v2294 = vld [vmem:[%s2293] sm:$0x1]
    %v2296 = vlaneseq
    %v2297 = vshrl.u32 %v2296, 7
    %v2298 = vsub.s32 0, %v2297
    %v2299 = vrot.slane %v2294, %v2298
    %2301 = vmatprep.subr.mxu0 0.0
    %2302 = vmatpush1.msra.mxu0 %v2289
    %2303 = vmatprep.subr.mxu0 0.0
    %2304 = vmatpush1.msra.mxu0 %v2290
    %2305 = vmatprep.subr.mxu0 0.0
    %2306 = vmatpush1.msra.mxu0 %v2291
    %2307 = vmatprep.subr.mxu0 0.0
    %2308 = vmatpush1.msra.mxu0 %v2292
    %2309 = vmatprep.subr.mxu0 0.0
    %2310 = vmatpush1.msra.mxu0 0.0
    %2311 = vmatprep.subr.mxu0 0.0
    %2312 = vmatpush1.msra.mxu0 0.0
    %2313 = vmatprep.subr.mxu0 0.0
    %2314 = vmatpush1.msra.mxu0 0.0
    %2315 = vmatprep.subr.mxu0 0.0
    %2316 = vmatpush1.msra.mxu0 0.0
    %2317 = vmatprep.subr.mxu0 0.0
    %2318 = vmatpush1.msra.mxu0 0.0
    %2319 = vmatprep.subr.mxu0 0.0
    %2320 = vmatpush1.msra.mxu0 0.0
    %2321 = vmatprep.subr.mxu0 0.0
    %2322 = vmatpush1.msra.mxu0 0.0
    %2323 = vmatprep.subr.mxu0 0.0
    %2324 = vmatpush1.msra.mxu0 0.0
    %2325 = vmatprep.subr.mxu0 0.0
    %2326 = vmatpush1.msra.mxu0 0.0
    %2327 = vmatprep.subr.mxu0 0.0
    %2328 = vmatpush1.msra.mxu0 0.0
    %2329 = vmatprep.subr.mxu0 0.0
    %2330 = vmatpush1.msra.mxu0 0.0
    %2331 = vmatprep.subr.mxu0 0.0
    %2332 = vmatpush1.msra.mxu0 0.0
    %2333 = vmatprep.subr.mxu0 0.0
    %2334 = vmatpush1.msra.mxu0 0.0
    %2335 = vmatprep.subr.mxu0 0.0
    %2336 = vmatpush1.msra.mxu0 0.0
    %2337 = vmatprep.subr.mxu0 0.0
    %2338 = vmatpush1.msra.mxu0 0.0
    %2339 = vmatprep.subr.mxu0 0.0
    %2340 = vmatpush1.msra.mxu0 0.0
    %2341 = vmatprep.subr.mxu0 0.0
    %2342 = vmatpush1.msra.mxu0 0.0
    %2343 = vmatprep.subr.mxu0 0.0
    %2344 = vmatpush1.msra.mxu0 0.0
    %2345 = vmatprep.subr.mxu0 0.0
    %2346 = vmatpush1.msra.mxu0 0.0
    %2347 = vmatprep.subr.mxu0 0.0
    %2348 = vmatpush1.msra.mxu0 0.0
    %2349 = vmatprep.subr.mxu0 0.0
    %2350 = vmatpush1.msra.mxu0 0.0
    %2351 = vmatprep.subr.mxu0 0.0
    %2352 = vmatpush1.msra.mxu0 0.0
    %2353 = vmatprep.subr.mxu0 0.0
    %2354 = vmatpush1.msra.mxu0 0.0
    %2355 = vmatprep.subr.mxu0 0.0
    %2356 = vmatpush1.msra.mxu0 0.0
    %2357 = vmatprep.subr.mxu0 0.0
    %2358 = vmatpush1.msra.mxu0 0.0
    %2359 = vmatprep.subr.mxu0 0.0
    %2360 = vmatpush1.msra.mxu0 0.0
    %2361 = vmatprep.subr.mxu0 0.0
    %2362 = vmatpush1.msra.mxu0 0.0
    %2363 = vmatprep.subr.mxu0 0.0
    %2364 = vmatpush1.msra.mxu0 0.0
    %2365 = vmatprep.mubr.f32.mxu0 0.0
    %2366 = vmatmul.mubr.f32.gmra.mrb[0].mxu0 %v2192
    %v2367 = vpop.f32.mrb[0].mxu0
    %v2368 = vadd.f32 %v2299, %v2367
    %v2369 = vpop.f32.mrb[0].mxu0
    %2370 = vmatprep.mubr.f32.mxu0 0.0
    %2371 = vmatmul.mubr.f32.gmra.mrb[0].mxu0 %v2195
    %v2372 = vpop.f32.mrb[0].mxu0
    %v2373 = vadd.f32 %v2299, %v2372
    %v2374 = vpop.f32.mrb[0].mxu0
    %2375 = vmatprep.mubr.f32.mxu0 0.0
    %2376 = vmatmul.mubr.f32.gmra.mrb[0].mxu0 %v2198
    %v2377 = vpop.f32.mrb[0].mxu0
    %v2378 = vadd.f32 %v2299, %v2377
    %v2379 = vpop.f32.mrb[0].mxu0
    %2380 = vmatprep.mubr.f32.mxu0 0.0
    %2381 = vmatmul.mubr.f32.gmra.mrb[0].mxu0 %v2201
    %v2382 = vpop.f32.mrb[0].mxu0
    %v2383 = vadd.f32 %v2299, %v2382
    %v2384 = vpop.f32.mrb[0].mxu0
    %2385 = vdwg.mxu0
    %s2386 = scalar_lea.vmem [#allocation16], 32
    %v2387 = vld [vmem:[%s2386] sm:$0xff]
    %v2388 = vld [vmem:[%s2386 + $0x8] sm:$0xff]
    %v2389 = vld [vmem:[%s2386 + $0x10] sm:$0xff]
    %v2390 = vld [vmem:[%s2386 + $0x18] sm:$0xff]
    %s2391 = scalar_lea.vmem %s14, 1
    %v2392 = vld [vmem:[%s2391] sm:$0x1]
    %v2394 = vlaneseq
    %v2395 = vshrl.u32 %v2394, 7
    %v2396 = vsub.s32 0, %v2395
    %v2397 = vrot.slane %v2392, %v2396
    %2399 = vmatprep.subr.mxu0 0.0
    %2400 = vmatpush1.msra.mxu0 %v2387
    %2401 = vmatprep.subr.mxu0 0.0
    %2402 = vmatpush1.msra.mxu0 %v2388
    %2403 = vmatprep.subr.mxu0 0.0
    %2404 = vmatpush1.msra.mxu0 %v2389
    %2405 = vmatprep.subr.mxu0 0.0
    %2406 = vmatpush1.msra.mxu0 %v2390
    %2407 = vmatprep.subr.mxu0 0.0
    %2408 = vmatpush1.msra.mxu0 0.0
    %2409 = vmatprep.subr.mxu0 0.0
    %2410 = vmatpush1.msra.mxu0 0.0
    %2411 = vmatprep.subr.mxu0 0.0
    %2412 = vmatpush1.msra.mxu0 0.0
    %2413 = vmatprep.subr.mxu0 0.0
    %2414 = vmatpush1.msra.mxu0 0.0
    %2415 = vmatprep.subr.mxu0 0.0
    %2416 = vmatpush1.msra.mxu0 0.0
    %2417 = vmatprep.subr.mxu0 0.0
    %2418 = vmatpush1.msra.mxu0 0.0
    %2419 = vmatprep.subr.mxu0 0.0
    %2420 = vmatpush1.msra.mxu0 0.0
    %2421 = vmatprep.subr.mxu0 0.0
    %2422 = vmatpush1.msra.mxu0 0.0
    %2423 = vmatprep.subr.mxu0 0.0
    %2424 = vmatpush1.msra.mxu0 0.0
    %2425 = vmatprep.subr.mxu0 0.0
    %2426 = vmatpush1.msra.mxu0 0.0
    %2427 = vmatprep.subr.mxu0 0.0
    %2428 = vmatpush1.msra.mxu0 0.0
    %2429 = vmatprep.subr.mxu0 0.0
    %2430 = vmatpush1.msra.mxu0 0.0
    %2431 = vmatprep.subr.mxu0 0.0
    %2432 = vmatpush1.msra.mxu0 0.0
    %2433 = vmatprep.subr.mxu0 0.0
    %2434 = vmatpush1.msra.mxu0 0.0
    %2435 = vmatprep.subr.mxu0 0.0
    %2436 = vmatpush1.msra.mxu0 0.0
    %2437 = vmatprep.subr.mxu0 0.0
    %2438 = vmatpush1.msra.mxu0 0.0
    %2439 = vmatprep.subr.mxu0 0.0
    %2440 = vmatpush1.msra.mxu0 0.0
    %2441 = vmatprep.subr.mxu0 0.0
    %2442 = vmatpush1.msra.mxu0 0.0
    %2443 = vmatprep.subr.mxu0 0.0
    %2444 = vmatpush1.msra.mxu0 0.0
    %2445 = vmatprep.subr.mxu0 0.0
    %2446 = vmatpush1.msra.mxu0 0.0
    %2447 = vmatprep.subr.mxu0 0.0
    %2448 = vmatpush1.msra.mxu0 0.0
    %2449 = vmatprep.subr.mxu0 0.0
    %2450 = vmatpush1.msra.mxu0 0.0
    %2451 = vmatprep.subr.mxu0 0.0
    %2452 = vmatpush1.msra.mxu0 0.0
    %2453 = vmatprep.subr.mxu0 0.0
    %2454 = vmatpush1.msra.mxu0 0.0
    %2455 = vmatprep.subr.mxu0 0.0
    %2456 = vmatpush1.msra.mxu0 0.0
    %2457 = vmatprep.subr.mxu0 0.0
    %2458 = vmatpush1.msra.mxu0 0.0
    %2459 = vmatprep.subr.mxu0 0.0
    %2460 = vmatpush1.msra.mxu0 0.0
    %2461 = vmatprep.subr.mxu0 0.0
    %2462 = vmatpush1.msra.mxu0 0.0
    %2463 = vmatprep.mubr.f32.mxu0 0.0
    %2464 = vmatmul.mubr.f32.gmra.mrb[0].mxu0 %v2192
    %v2465 = vpop.f32.mrb[0].mxu0
    %v2466 = vadd.f32 %v2397, %v2465
    %v2467 = vpop.f32.mrb[0].mxu0
    %2468 = vmatprep.mubr.f32.mxu0 0.0
    %2469 = vmatmul.mubr.f32.gmra.mrb[0].mxu0 %v2195
    %v2470 = vpop.f32.mrb[0].mxu0
    %v2471 = vadd.f32 %v2397, %v2470
    %v2472 = vpop.f32.mrb[0].mxu0
    %2473 = vmatprep.mubr.f32.mxu0 0.0
    %2474 = vmatmul.mubr.f32.gmra.mrb[0].mxu0 %v2198
    %v2475 = vpop.f32.mrb[0].mxu0
    %v2476 = vadd.f32 %v2397, %v2475
    %v2477 = vpop.f32.mrb[0].mxu0
    %2478 = vmatprep.mubr.f32.mxu0 0.0
    %2479 = vmatmul.mubr.f32.gmra.mrb[0].mxu0 %v2201
    %v2480 = vpop.f32.mrb[0].mxu0
    %v2481 = vadd.f32 %v2397, %v2480
    %v2482 = vpop.f32.mrb[0].mxu0
    %2483 = vdwg.mxu0
    %2484 = vxpose.xlu0.b32.start [1/16] %v2368, 128
    %2485 = vxpose.xlu0.b32.cont [2/16] %v2373, 128
    %2486 = vxpose.xlu0.b32.cont [3/16] %v2378, 128
    %2487 = vxpose.xlu0.b32.cont [4/16] %v2383, 128
    %2488 = vxpose.xlu0.b32.cont [5/16] 0.0, 128
    %2489 = vxpose.xlu0.b32.cont [6/16] 0.0, 128
    %2490 = vxpose.xlu0.b32.cont [7/16] 0.0, 128
    %2491 = vxpose.xlu0.b32.cont [8/16] 0.0, 128
    %2492 = vxpose.xlu0.b32.cont [9/16] 0.0, 128
    %2493 = vxpose.xlu0.b32.cont [10/16] 0.0, 128
    %2494 = vxpose.xlu0.b32.cont [11/16] 0.0, 128
    %2495 = vxpose.xlu0.b32.cont [12/16] 0.0, 128
    %2496 = vxpose.xlu0.b32.cont [13/16] 0.0, 128
    %2497 = vxpose.xlu0.b32.cont [14/16] 0.0, 128
    %2498 = vxpose.xlu0.b32.cont [15/16] 0.0, 128
    %2499 = vxpose.xlu0.b32.end [16/16] 0.0, 128
    %v2500 = vpop.trf.xlu0
    %v2501 = vpop.trf.xlu0
    %v2502 = vpop.trf.xlu0
    %v2503 = vpop.trf.xlu0
    %v2504 = vpop.trf.xlu0
    %v2505 = vpop.trf.xlu0
    %v2506 = vpop.trf.xlu0
    %v2507 = vpop.trf.xlu0
    %v2508 = vpop.trf.xlu0
    %v2509 = vpop.trf.xlu0
    %v2510 = vpop.trf.xlu0
    %v2511 = vpop.trf.xlu0
    %v2512 = vpop.trf.xlu0
    %v2513 = vpop.trf.xlu0
    %v2514 = vpop.trf.xlu0
    %v2515 = vpop.trf.xlu0
    %2520 = vrot.lane.b32.xlu0 %v2500, 32
    %v2521 = vpop.permute.xlu0 %2520
    %2522 = vrot.lane.b32.xlu0 %v2501, 32
    %v2523 = vpop.permute.xlu0 %2522
    %2524 = vrot.lane.b32.xlu0 %v2502, 32
    %v2525 = vpop.permute.xlu0 %2524
    %2526 = vrot.lane.b32.xlu0 %v2503, 32
    %v2527 = vpop.permute.xlu0 %2526
    %2532 = vrot.lane.b32.xlu0 %v2500, 64
    %v2533 = vpop.permute.xlu0 %2532
    %2534 = vrot.lane.b32.xlu0 %v2501, 64
    %v2535 = vpop.permute.xlu0 %2534
    %2536 = vrot.lane.b32.xlu0 %v2502, 64
    %v2537 = vpop.permute.xlu0 %2536
    %2538 = vrot.lane.b32.xlu0 %v2503, 64
    %v2539 = vpop.permute.xlu0 %2538
    %2544 = vrot.lane.b32.xlu0 %v2500, 96
    %v2545 = vpop.permute.xlu0 %2544
    %2546 = vrot.lane.b32.xlu0 %v2501, 96
    %v2547 = vpop.permute.xlu0 %2546
    %2548 = vrot.lane.b32.xlu0 %v2502, 96
    %v2549 = vpop.permute.xlu0 %2548
    %2550 = vrot.lane.b32.xlu0 %v2503, 96
    %v2551 = vpop.permute.xlu0 %2550
    %v2556 = vsel %vm864, %v2500, %v2521
    %v2557 = vsel %vm864, %v2501, %v2523
    %v2558 = vsel %vm864, %v2502, %v2525
    %v2559 = vsel %vm864, %v2503, %v2527
    %v2560 = vsel %vm869, %v2556, %v2533
    %v2561 = vsel %vm869, %v2557, %v2535
    %v2562 = vsel %vm869, %v2558, %v2537
    %v2563 = vsel %vm869, %v2559, %v2539
    %v2564 = vsel %vm874, %v2560, %v2545
    %v2565 = vsel %vm874, %v2561, %v2547
    %v2566 = vsel %vm874, %v2562, %v2549
    %v2567 = vsel %vm874, %v2563, %v2551
    %v2568 = vmul.f32 %v2564, %v879
    %v2569 = vmul.f32 %v2565, %v880
    %v2570 = vmul.f32 %v2566, %v881
    %v2571 = vmul.f32 %v2567, %v882
    %v2573 = vsel %vm864, %v2270, 0
    %v2576 = vsel %vm864, %v2275, 0
    %v2579 = vsel %vm864, %v2280, 0
    %v2582 = vsel %vm864, %v2285, 0
    %2584 = vmatprep.subr.mxu0 0.0
    %2585 = vmatpush1.msra.mxu0 %v2568
    %2586 = vmatprep.subr.mxu0 0.0
    %2587 = vmatpush1.msra.mxu0 %v2569
    %2588 = vmatprep.subr.mxu0 0.0
    %2589 = vmatpush1.msra.mxu0 %v2570
    %2590 = vmatprep.subr.mxu0 0.0
    %2591 = vmatpush1.msra.mxu0 %v2571
    %2592 = vmatprep.subr.mxu0 0.0
    %2593 = vmatpush1.msra.mxu0 0.0
    %2594 = vmatprep.subr.mxu0 0.0
    %2595 = vmatpush1.msra.mxu0 0.0
    %2596 = vmatprep.subr.mxu0 0.0
    %2597 = vmatpush1.msra.mxu0 0.0
    %2598 = vmatprep.subr.mxu0 0.0
    %2599 = vmatpush1.msra.mxu0 0.0
    %2600 = vmatprep.subr.mxu0 0.0
    %2601 = vmatpush1.msra.mxu0 0.0
    %2602 = vmatprep.subr.mxu0 0.0
    %2603 = vmatpush1.msra.mxu0 0.0
    %2604 = vmatprep.subr.mxu0 0.0
    %2605 = vmatpush1.msra.mxu0 0.0
    %2606 = vmatprep.subr.mxu0 0.0
    %2607 = vmatpush1.msra.mxu0 0.0
    %2608 = vmatprep.subr.mxu0 0.0
    %2609 = vmatpush1.msra.mxu0 0.0
    %2610 = vmatprep.subr.mxu0 0.0
    %2611 = vmatpush1.msra.mxu0 0.0
    %2612 = vmatprep.subr.mxu0 0.0
    %2613 = vmatpush1.msra.mxu0 0.0
    %2614 = vmatprep.subr.mxu0 0.0
    %2615 = vmatpush1.msra.mxu0 0.0
    %2616 = vmatprep.subr.mxu0 0.0
    %2617 = vmatpush1.msra.mxu0 0.0
    %2618 = vmatprep.subr.mxu0 0.0
    %2619 = vmatpush1.msra.mxu0 0.0
    %2620 = vmatprep.subr.mxu0 0.0
    %2621 = vmatpush1.msra.mxu0 0.0
    %2622 = vmatprep.subr.mxu0 0.0
    %2623 = vmatpush1.msra.mxu0 0.0
    %2624 = vmatprep.subr.mxu0 0.0
    %2625 = vmatpush1.msra.mxu0 0.0
    %2626 = vmatprep.subr.mxu0 0.0
    %2627 = vmatpush1.msra.mxu0 0.0
    %2628 = vmatprep.subr.mxu0 0.0
    %2629 = vmatpush1.msra.mxu0 0.0
    %2630 = vmatprep.subr.mxu0 0.0
    %2631 = vmatpush1.msra.mxu0 0.0
    %2632 = vmatprep.subr.mxu0 0.0
    %2633 = vmatpush1.msra.mxu0 0.0
    %2634 = vmatprep.subr.mxu0 0.0
    %2635 = vmatpush1.msra.mxu0 0.0
    %2636 = vmatprep.subr.mxu0 0.0
    %2637 = vmatpush1.msra.mxu0 0.0
    %2638 = vmatprep.subr.mxu0 0.0
    %2639 = vmatpush1.msra.mxu0 0.0
    %2640 = vmatprep.subr.mxu0 0.0
    %2641 = vmatpush1.msra.mxu0 0.0
    %2642 = vmatprep.subr.mxu0 0.0
    %2643 = vmatpush1.msra.mxu0 0.0
    %2644 = vmatprep.subr.mxu0 0.0
    %2645 = vmatpush1.msra.mxu0 0.0
    %2646 = vmatprep.subr.mxu0 0.0
    %2647 = vmatpush1.msra.mxu0 0.0
    %2648 = vmatprep.mubr.f32.mxu0 0.0
    %2649 = vmatmul.mubr.f32.gmra.mrb[0].mxu0 %v2573
    %v2650 = vpop.f32.mrb[0].mxu0
    %v2651 = vadd.f32 %v875, %v2650
    %v2652 = vpop.f32.mrb[0].mxu0
    %2653 = vmatprep.mubr.f32.mxu0 0.0
    %2654 = vmatmul.mubr.f32.gmra.mrb[0].mxu0 %v2576
    %v2655 = vpop.f32.mrb[0].mxu0
    %v2656 = vadd.f32 %v876, %v2655
    %v2657 = vpop.f32.mrb[0].mxu0
    %2658 = vmatprep.mubr.f32.mxu0 0.0
    %2659 = vmatmul.mubr.f32.gmra.mrb[0].mxu0 %v2579
    %v2660 = vpop.f32.mrb[0].mxu0
    %v2661 = vadd.f32 %v877, %v2660
    %v2662 = vpop.f32.mrb[0].mxu0
    %2663 = vmatprep.mubr.f32.mxu0 0.0
    %2664 = vmatmul.mubr.f32.gmra.mrb[0].mxu0 %v2582
    %v2665 = vpop.f32.mrb[0].mxu0
    %v2666 = vadd.f32 %v878, %v2665
    %v2667 = vpop.f32.mrb[0].mxu0
    %2668 = vdwg.mxu0
    %2669 = vmax.xlane.f32.xlu0 %v2651
    %v2670 = vpop.xlane.xlu0 %2669
    %2671 = vmax.xlane.f32.xlu0 %v2656
    %v2672 = vpop.xlane.xlu0 %2671
    %2673 = vmax.xlane.f32.xlu0 %v2661
    %v2674 = vpop.xlane.xlu0 %2673
    %2675 = vmax.xlane.f32.xlu0 %v2666
    %v2676 = vpop.xlane.xlu0 %2675
    %v2677 = vsub.f32 %v2651, %v2670
    %v2678 = vsub.f32 %v2656, %v2672
    %v2679 = vsub.f32 %v2661, %v2674
    %v2680 = vsub.f32 %v2666, %v2676
    %v2681 = vmul.f32 %v2677, 1.442695
    %v2682 = vpow.pop %v2681
    %v2683 = vmul.f32 %v2678, 1.442695
    %v2684 = vpow.pop %v2683
    %v2685 = vmul.f32 %v2679, 1.442695
    %v2686 = vpow.pop %v2685
    %v2687 = vmul.f32 %v2680, 1.442695
    %v2688 = vpow.pop %v2687
    %v2689 = vmul.f32 %v2466, %v883
    %v2690 = vmul.f32 %v2471, %v884
    %v2691 = vmul.f32 %v2476, %v885
    %v2692 = vmul.f32 %v2481, %v886
    %v2693 = vmul.f32 %v2466, %v887
    %v2694 = vmul.f32 %v2471, %v888
    %v2695 = vmul.f32 %v2476, %v889
    %v2696 = vmul.f32 %v2481, %v890
    %v2697 = vmul.f32 %v2466, %v891
    %v2698 = vmul.f32 %v2471, %v892
    %v2699 = vmul.f32 %v2476, %v893
    %v2700 = vmul.f32 %v2481, %v894
    %v2701 = vmul.f32 %v2466, %v895
    %v2702 = vmul.f32 %v2471, %v896
    %v2703 = vmul.f32 %v2476, %v897
    %v2704 = vmul.f32 %v2481, %v898
    %v2705 = vsel %vm864, %v2689, %v1512
    %v2706 = vsel %vm864, %v2690, %v1514
    %v2707 = vsel %vm864, %v2691, %v1516
    %v2708 = vsel %vm864, %v2692, %v1518
    %v2709 = vsel %vm864, %v2693, %v1520
    %v2710 = vsel %vm864, %v2694, %v1522
    %v2711 = vsel %vm864, %v2695, %v1524
    %v2712 = vsel %vm864, %v2696, %v1526
    %v2713 = vsel %vm864, %v2697, %v1528
    %v2714 = vsel %vm864, %v2698, %v1530
    %v2715 = vsel %vm864, %v2699, %v1532
    %v2716 = vsel %vm864, %v2700, %v1534
    %v2717 = vsel %vm864, %v2701, %v1536
    %v2718 = vsel %vm864, %v2702, %v1538
    %v2719 = vsel %vm864, %v2703, %v1540
    %v2720 = vsel %vm864, %v2704, %v1542
    %2721 = vmatprep.subr.mxu0 0.0
    %2722 = vmatpush1.msra.mxu0 %v2705
    %2723 = vmatprep.subr.mxu0 0.0
    %2724 = vmatpush1.msra.mxu0 %v2706
    %2725 = vmatprep.subr.mxu0 0.0
    %2726 = vmatpush1.msra.mxu0 %v2707
    %2727 = vmatprep.subr.mxu0 0.0
    %2728 = vmatpush1.msra.mxu0 %v2708
    %2729 = vmatprep.subr.mxu0 0.0
    %2730 = vmatpush1.msra.mxu0 %v2709
    %2731 = vmatprep.subr.mxu0 0.0
    %2732 = vmatpush1.msra.mxu0 %v2710
    %2733 = vmatprep.subr.mxu0 0.0
    %2734 = vmatpush1.msra.mxu0 %v2711
    %2735 = vmatprep.subr.mxu0 0.0
    %2736 = vmatpush1.msra.mxu0 %v2712
    %2737 = vmatprep.subr.mxu0 0.0
    %2738 = vmatpush1.msra.mxu0 %v2713
    %2739 = vmatprep.subr.mxu0 0.0
    %2740 = vmatpush1.msra.mxu0 %v2714
    %2741 = vmatprep.subr.mxu0 0.0
    %2742 = vmatpush1.msra.mxu0 %v2715
    %2743 = vmatprep.subr.mxu0 0.0
    %2744 = vmatpush1.msra.mxu0 %v2716
    %2745 = vmatprep.subr.mxu0 0.0
    %2746 = vmatpush1.msra.mxu0 %v2717
    %2747 = vmatprep.subr.mxu0 0.0
    %2748 = vmatpush1.msra.mxu0 %v2718
    %2749 = vmatprep.subr.mxu0 0.0
    %2750 = vmatpush1.msra.mxu0 %v2719
    %2751 = vmatprep.subr.mxu0 0.0
    %2752 = vmatpush1.msra.mxu0 %v2720
    %2753 = vmatprep.subr.mxu0 0.0
    %2754 = vmatpush1.msra.mxu0 0.0
    %2755 = vmatprep.subr.mxu0 0.0
    %2756 = vmatpush1.msra.mxu0 0.0
    %2757 = vmatprep.subr.mxu0 0.0
    %2758 = vmatpush1.msra.mxu0 0.0
    %2759 = vmatprep.subr.mxu0 0.0
    %2760 = vmatpush1.msra.mxu0 0.0
    %2761 = vmatprep.subr.mxu0 0.0
    %2762 = vmatpush1.msra.mxu0 0.0
    %2763 = vmatprep.subr.mxu0 0.0
    %2764 = vmatpush1.msra.mxu0 0.0
    %2765 = vmatprep.subr.mxu0 0.0
    %2766 = vmatpush1.msra.mxu0 0.0
    %2767 = vmatprep.subr.mxu0 0.0
    %2768 = vmatpush1.msra.mxu0 0.0
    %2769 = vmatprep.subr.mxu0 0.0
    %2770 = vmatpush1.msra.mxu0 0.0
    %2771 = vmatprep.subr.mxu0 0.0
    %2772 = vmatpush1.msra.mxu0 0.0
    %2773 = vmatprep.subr.mxu0 0.0
    %2774 = vmatpush1.msra.mxu0 0.0
    %2775 = vmatprep.subr.mxu0 0.0
    %2776 = vmatpush1.msra.mxu0 0.0
    %2777 = vmatprep.subr.mxu0 0.0
    %2778 = vmatpush1.msra.mxu0 0.0
    %2779 = vmatprep.subr.mxu0 0.0
    %2780 = vmatpush1.msra.mxu0 0.0
    %2781 = vmatprep.subr.mxu0 0.0
    %2782 = vmatpush1.msra.mxu0 0.0
    %2783 = vmatprep.subr.mxu0 0.0
    %2784 = vmatpush1.msra.mxu0 0.0
    %2785 = vmatprep.mubr.f32.mxu0 0.0
    %2786 = vmatmul.mubr.f32.gmra.mrb[0].mxu0 %v2682
    %v2787 = vpop.f32.mrb[0].mxu0
    %v2788 = vadd.f32 0.0, %v2787
    %v2789 = vpop.f32.mrb[0].mxu0
    %2790 = vmatprep.mubr.f32.mxu0 0.0
    %2791 = vmatmul.mubr.f32.gmra.mrb[0].mxu0 %v2684
    %v2792 = vpop.f32.mrb[0].mxu0
    %v2793 = vadd.f32 0.0, %v2792
    %v2794 = vpop.f32.mrb[0].mxu0
    %2795 = vmatprep.mubr.f32.mxu0 0.0
    %2796 = vmatmul.mubr.f32.gmra.mrb[0].mxu0 %v2686
    %v2797 = vpop.f32.mrb[0].mxu0
    %v2798 = vadd.f32 0.0, %v2797
    %v2799 = vpop.f32.mrb[0].mxu0
    %2800 = vmatprep.mubr.f32.mxu0 0.0
    %2801 = vmatmul.mubr.f32.gmra.mrb[0].mxu0 %v2688
    %v2802 = vpop.f32.mrb[0].mxu0
    %v2803 = vadd.f32 0.0, %v2802
    %v2804 = vpop.f32.mrb[0].mxu0
    %2805 = vdwg.mxu0
    %v2806 = vmax.f32 %v2788, 1e-30
    %v2807 = vmax.f32 %v2793, 1e-30
    %v2808 = vmax.f32 %v2798, 1e-30
    %v2809 = vmax.f32 %v2803, 1e-30
    %2814 = vrot.lane.b32.xlu0 %v2806, 96
    %v2815 = vpop.permute.xlu0 %2814
    %2816 = vrot.lane.b32.xlu0 %v2807, 96
    %v2817 = vpop.permute.xlu0 %2816
    %2818 = vrot.lane.b32.xlu0 %v2808, 96
    %v2819 = vpop.permute.xlu0 %2818
    %2820 = vrot.lane.b32.xlu0 %v2809, 96
    %v2821 = vpop.permute.xlu0 %2820
    %v2826 = vrcp.pop %v2815
    %v2827 = vmul.f32 %v2788, %v2826
    %v2828 = vrcp.pop %v2817
    %v2829 = vmul.f32 %v2793, %v2828
    %v2830 = vrcp.pop %v2819
    %v2831 = vmul.f32 %v2798, %v2830
    %v2832 = vrcp.pop %v2821
    %v2833 = vmul.f32 %v2803, %v2832
    %s2834 = scalar_lea.vmem [#allocation18], 32
    %v2835 = vld [vmem:[%s2834] sm:$0xff]
    %v2836 = vld [vmem:[%s2834 + $0x8] sm:$0xff]
    %v2837 = vld [vmem:[%s2834 + $0x10] sm:$0xff]
    %v2838 = vld [vmem:[%s2834 + $0x18] sm:$0xff]
    %s2839 = scalar_lea.vmem %s16, 1
    %v2840 = vld [vmem:[%s2839] sm:$0x1]
    %v2842 = vlaneseq
    %v2843 = vshrl.u32 %v2842, 7
    %v2844 = vsub.s32 0, %v2843
    %v2845 = vrot.slane %v2840, %v2844
    %v2848 = vsel %vm864, %v2827, 0
    %v2851 = vsel %vm864, %v2829, 0
    %v2854 = vsel %vm864, %v2831, 0
    %v2857 = vsel %vm864, %v2833, 0
    %2859 = vmatprep.subr.mxu0 0.0
    %2860 = vmatpush1.msra.mxu0 %v2835
    %2861 = vmatprep.subr.mxu0 0.0
    %2862 = vmatpush1.msra.mxu0 %v2836
    %2863 = vmatprep.subr.mxu0 0.0
    %2864 = vmatpush1.msra.mxu0 %v2837
    %2865 = vmatprep.subr.mxu0 0.0
    %2866 = vmatpush1.msra.mxu0 %v2838
    %2867 = vmatprep.subr.mxu0 0.0
    %2868 = vmatpush1.msra.mxu0 0.0
    %2869 = vmatprep.subr.mxu0 0.0
    %2870 = vmatpush1.msra.mxu0 0.0
    %2871 = vmatprep.subr.mxu0 0.0
    %2872 = vmatpush1.msra.mxu0 0.0
    %2873 = vmatprep.subr.mxu0 0.0
    %2874 = vmatpush1.msra.mxu0 0.0
    %2875 = vmatprep.subr.mxu0 0.0
    %2876 = vmatpush1.msra.mxu0 0.0
    %2877 = vmatprep.subr.mxu0 0.0
    %2878 = vmatpush1.msra.mxu0 0.0
    %2879 = vmatprep.subr.mxu0 0.0
    %2880 = vmatpush1.msra.mxu0 0.0
    %2881 = vmatprep.subr.mxu0 0.0
    %2882 = vmatpush1.msra.mxu0 0.0
    %2883 = vmatprep.subr.mxu0 0.0
    %2884 = vmatpush1.msra.mxu0 0.0
    %2885 = vmatprep.subr.mxu0 0.0
    %2886 = vmatpush1.msra.mxu0 0.0
    %2887 = vmatprep.subr.mxu0 0.0
    %2888 = vmatpush1.msra.mxu0 0.0
    %2889 = vmatprep.subr.mxu0 0.0
    %2890 = vmatpush1.msra.mxu0 0.0
    %2891 = vmatprep.subr.mxu0 0.0
    %2892 = vmatpush1.msra.mxu0 0.0
    %2893 = vmatprep.subr.mxu0 0.0
    %2894 = vmatpush1.msra.mxu0 0.0
    %2895 = vmatprep.subr.mxu0 0.0
    %2896 = vmatpush1.msra.mxu0 0.0
    %2897 = vmatprep.subr.mxu0 0.0
    %2898 = vmatpush1.msra.mxu0 0.0
    %2899 = vmatprep.subr.mxu0 0.0
    %2900 = vmatpush1.msra.mxu0 0.0
    %2901 = vmatprep.subr.mxu0 0.0
    %2902 = vmatpush1.msra.mxu0 0.0
    %2903 = vmatprep.subr.mxu0 0.0
    %2904 = vmatpush1.msra.mxu0 0.0
    %2905 = vmatprep.subr.mxu0 0.0
    %2906 = vmatpush1.msra.mxu0 0.0
    %2907 = vmatprep.subr.mxu0 0.0
    %2908 = vmatpush1.msra.mxu0 0.0
    %2909 = vmatprep.subr.mxu0 0.0
    %2910 = vmatpush1.msra.mxu0 0.0
    %2911 = vmatprep.subr.mxu0 0.0
    %2912 = vmatpush1.msra.mxu0 0.0
    %2913 = vmatprep.subr.mxu0 0.0
    %2914 = vmatpush1.msra.mxu0 0.0
    %2915 = vmatprep.subr.mxu0 0.0
    %2916 = vmatpush1.msra.mxu0 0.0
    %2917 = vmatprep.subr.mxu0 0.0
    %2918 = vmatpush1.msra.mxu0 0.0
    %2919 = vmatprep.subr.mxu0 0.0
    %2920 = vmatpush1.msra.mxu0 0.0
    %2921 = vmatprep.subr.mxu0 0.0
    %2922 = vmatpush1.msra.mxu0 0.0
    %2923 = vmatprep.mubr.f32.mxu0 0.0
    %2924 = vmatmul.mubr.f32.gmra.mrb[0].mxu0 %v2848
    %v2925 = vpop.f32.mrb[0].mxu0
    %v2926 = vadd.f32 %v2845, %v2925
    %v2927 = vpop.f32.mrb[0].mxu0
    %2928 = vmatprep.mubr.f32.mxu0 0.0
    %2929 = vmatmul.mubr.f32.gmra.mrb[0].mxu0 %v2851
    %v2930 = vpop.f32.mrb[0].mxu0
    %v2931 = vadd.f32 %v2845, %v2930
    %v2932 = vpop.f32.mrb[0].mxu0
    %2933 = vmatprep.mubr.f32.mxu0 0.0
    %2934 = vmatmul.mubr.f32.gmra.mrb[0].mxu0 %v2854
    %v2935 = vpop.f32.mrb[0].mxu0
    %v2936 = vadd.f32 %v2845, %v2935
    %v2937 = vpop.f32.mrb[0].mxu0
    %2938 = vmatprep.mubr.f32.mxu0 0.0
    %2939 = vmatmul.mubr.f32.gmra.mrb[0].mxu0 %v2857
    %v2940 = vpop.f32.mrb[0].mxu0
    %v2941 = vadd.f32 %v2845, %v2940
    %v2942 = vpop.f32.mrb[0].mxu0
    %2943 = vdwg.mxu0
    %v2944 = vadd.f32 %v2098, %v2926
    %v2945 = vadd.f32 %v2099, %v2931
    %v2946 = vadd.f32 %v2100, %v2936
    %v2947 = vadd.f32 %v2101, %v2941
    %s2948 = scalar_lea.vmem %s17, 1
    %v2949 = vld [vmem:[%s2948] sm:$0x1]
    %s2950 = scalar_lea.vmem %s18, 1
    %v2951 = vld [vmem:[%s2950] sm:$0x1]
    %v2952 = vsel %vm864, %v2944, 0.0
    %2953 = vadd.xlane.f32.xlu0 %v2952
    %v2954 = vpop.xlane.xlu0 %2953
    %v2955 = vsel %vm864, %v2945, 0.0
    %2956 = vadd.xlane.f32.xlu0 %v2955
    %v2957 = vpop.xlane.xlu0 %2956
    %v2958 = vsel %vm864, %v2946, 0.0
    %2959 = vadd.xlane.f32.xlu0 %v2958
    %v2960 = vpop.xlane.xlu0 %2959
    %v2961 = vsel %vm864, %v2947, 0.0
    %2962 = vadd.xlane.f32.xlu0 %v2961
    %v2963 = vpop.xlane.xlu0 %2962
    %v2964 = vmul.f32 %v2954, %v913
    %v2965 = vmul.f32 %v2957, %v913
    %v2966 = vmul.f32 %v2960, %v913
    %v2967 = vmul.f32 %v2963, %v913
    %v2968 = vsub.f32 %v2944, %v2964
    %v2969 = vsub.f32 %v2945, %v2965
    %v2970 = vsub.f32 %v2946, %v2966
    %v2971 = vsub.f32 %v2947, %v2967
    %v2972 = vmul.f32 %v2968, %v2968
    %v2973 = vmul.f32 %v2969, %v2969
    %v2974 = vmul.f32 %v2970, %v2970
    %v2975 = vmul.f32 %v2971, %v2971
    %v2976 = vsel %vm864, %v2972, 0.0
    %2977 = vadd.xlane.f32.xlu0 %v2976
    %v2978 = vpop.xlane.xlu0 %2977
    %v2979 = vsel %vm864, %v2973, 0.0
    %2980 = vadd.xlane.f32.xlu0 %v2979
    %v2981 = vpop.xlane.xlu0 %2980
    %v2982 = vsel %vm864, %v2974, 0.0
    %2983 = vadd.xlane.f32.xlu0 %v2982
    %v2984 = vpop.xlane.xlu0 %2983
    %v2985 = vsel %vm864, %v2975, 0.0
    %2986 = vadd.xlane.f32.xlu0 %v2985
    %v2987 = vpop.xlane.xlu0 %2986
    %v2988 = vmul.f32 %v2978, %v913
    %v2989 = vmul.f32 %v2981, %v913
    %v2990 = vmul.f32 %v2984, %v913
    %v2991 = vmul.f32 %v2987, %v913
    %v2992 = vadd.f32 %v2988, 1e-05
    %v2993 = vadd.f32 %v2989, 1e-05
    %v2994 = vadd.f32 %v2990, 1e-05
    %v2995 = vadd.f32 %v2991, 1e-05
    %v2996 = vrsqrt.pop %v2992
    %v2997 = vrsqrt.pop %v2993
    %v2998 = vrsqrt.pop %v2994
    %v2999 = vrsqrt.pop %v2995
    %v3000 = vmul.f32 %v2968, %v2996
    %v3001 = vmul.f32 %v2969, %v2997
    %v3002 = vmul.f32 %v2970, %v2998
    %v3003 = vmul.f32 %v2971, %v2999
    %v3005 = vlaneseq
    %v3006 = vshrl.u32 %v3005, 7
    %v3007 = vsub.s32 0, %v3006
    %v3008 = vrot.slane %v2949, %v3007
    %v3010 = vmul.f32 %v3000, %v3008
    %v3011 = vmul.f32 %v3001, %v3008
    %v3012 = vmul.f32 %v3002, %v3008
    %v3013 = vmul.f32 %v3003, %v3008
    %v3015 = vlaneseq
    %v3016 = vshrl.u32 %v3015, 7
    %v3017 = vsub.s32 0, %v3016
    %v3018 = vrot.slane %v2951, %v3017
    %v3020 = vadd.f32 %v3010, %v3018
    %v3021 = vadd.f32 %v3011, %v3018
    %v3022 = vadd.f32 %v3012, %v3018
    %v3023 = vadd.f32 %v3013, %v3018
    %s3024 = scalar_lea.vmem %s19, 32
    %v3025 = vld [vmem:[%s3024] sm:$0xff]
    %v3026 = vld [vmem:[%s3024 + $0x8] sm:$0xff]
    %v3027 = vld [vmem:[%s3024 + $0x10] sm:$0xff]
    %v3028 = vld [vmem:[%s3024 + $0x18] sm:$0xff]
    %s3029 = scalar_lea.vmem %s20, 1
    %v3030 = vld [vmem:[%s3029] sm:$0x1]
    %v3032 = vlaneseq
    %v3033 = vshrl.u32 %v3032, 7
    %v3034 = vsub.s32 0, %v3033
    %v3035 = vrot.slane %v3030, %v3034
    %v3038 = vsel %vm864, %v3020, 0
    %v3041 = vsel %vm864, %v3021, 0
    %v3044 = vsel %vm864, %v3022, 0
    %v3047 = vsel %vm864, %v3023, 0
    %3049 = vmatprep.subr.mxu0 0.0
    %3050 = vmatpush1.msra.mxu0 %v3025
    %3051 = vmatprep.subr.mxu0 0.0
    %3052 = vmatpush1.msra.mxu0 %v3026
    %3053 = vmatprep.subr.mxu0 0.0
    %3054 = vmatpush1.msra.mxu0 %v3027
    %3055 = vmatprep.subr.mxu0 0.0
    %3056 = vmatpush1.msra.mxu0 %v3028
    %3057 = vmatprep.subr.mxu0 0.0
    %3058 = vmatpush1.msra.mxu0 0.0
    %3059 = vmatprep.subr.mxu0 0.0
    %3060 = vmatpush1.msra.mxu0 0.0
    %3061 = vmatprep.subr.mxu0 0.0
    %3062 = vmatpush1.msra.mxu0 0.0
    %3063 = vmatprep.subr.mxu0 0.0
    %3064 = vmatpush1.msra.mxu0 0.0
    %3065 = vmatprep.subr.mxu0 0.0
    %3066 = vmatpush1.msra.mxu0 0.0
    %3067 = vmatprep.subr.mxu0 0.0
    %3068 = vmatpush1.msra.mxu0 0.0
    %3069 = vmatprep.subr.mxu0 0.0
    %3070 = vmatpush1.msra.mxu0 0.0
    %3071 = vmatprep.subr.mxu0 0.0
    %3072 = vmatpush1.msra.mxu0 0.0
    %3073 = vmatprep.subr.mxu0 0.0
    %3074 = vmatpush1.msra.mxu0 0.0
    %3075 = vmatprep.subr.mxu0 0.0
    %3076 = vmatpush1.msra.mxu0 0.0
    %3077 = vmatprep.subr.mxu0 0.0
    %3078 = vmatpush1.msra.mxu0 0.0
    %3079 = vmatprep.subr.mxu0 0.0
    %3080 = vmatpush1.msra.mxu0 0.0
    %3081 = vmatprep.subr.mxu0 0.0
    %3082 = vmatpush1.msra.mxu0 0.0
    %3083 = vmatprep.subr.mxu0 0.0
    %3084 = vmatpush1.msra.mxu0 0.0
    %3085 = vmatprep.subr.mxu0 0.0
    %3086 = vmatpush1.msra.mxu0 0.0
    %3087 = vmatprep.subr.mxu0 0.0
    %3088 = vmatpush1.msra.mxu0 0.0
    %3089 = vmatprep.subr.mxu0 0.0
    %3090 = vmatpush1.msra.mxu0 0.0
    %3091 = vmatprep.subr.mxu0 0.0
    %3092 = vmatpush1.msra.mxu0 0.0
    %3093 = vmatprep.subr.mxu0 0.0
    %3094 = vmatpush1.msra.mxu0 0.0
    %3095 = vmatprep.subr.mxu0 0.0
    %3096 = vmatpush1.msra.mxu0 0.0
    %3097 = vmatprep.subr.mxu0 0.0
    %3098 = vmatpush1.msra.mxu0 0.0
    %3099 = vmatprep.subr.mxu0 0.0
    %3100 = vmatpush1.msra.mxu0 0.0
    %3101 = vmatprep.subr.mxu0 0.0
    %3102 = vmatpush1.msra.mxu0 0.0
    %3103 = vmatprep.subr.mxu0 0.0
    %3104 = vmatpush1.msra.mxu0 0.0
    %3105 = vmatprep.subr.mxu0 0.0
    %3106 = vmatpush1.msra.mxu0 0.0
    %3107 = vmatprep.subr.mxu0 0.0
    %3108 = vmatpush1.msra.mxu0 0.0
    %3109 = vmatprep.subr.mxu0 0.0
    %3110 = vmatpush1.msra.mxu0 0.0
    %3111 = vmatprep.subr.mxu0 0.0
    %3112 = vmatpush1.msra.mxu0 0.0
    %3113 = vmatprep.mubr.f32.mxu0 0.0
    %3114 = vmatmul.mubr.f32.gmra.mrb[0].mxu0 %v3038
    %v3115 = vpop.f32.mrb[0].mxu0
    %v3116 = vadd.f32 %v3035, %v3115
    %v3117 = vpop.f32.mrb[0].mxu0
    %3118 = vmatprep.mubr.f32.mxu0 0.0
    %3119 = vmatmul.mubr.f32.gmra.mrb[0].mxu0 %v3041
    %v3120 = vpop.f32.mrb[0].mxu0
    %v3121 = vadd.f32 %v3035, %v3120
    %v3122 = vpop.f32.mrb[0].mxu0
    %3123 = vmatprep.mubr.f32.mxu0 0.0
    %3124 = vmatmul.mubr.f32.gmra.mrb[0].mxu0 %v3044
    %v3125 = vpop.f32.mrb[0].mxu0
    %v3126 = vadd.f32 %v3035, %v3125
    %v3127 = vpop.f32.mrb[0].mxu0
    %3128 = vmatprep.mubr.f32.mxu0 0.0
    %3129 = vmatmul.mubr.f32.gmra.mrb[0].mxu0 %v3047
    %v3130 = vpop.f32.mrb[0].mxu0
    %v3131 = vadd.f32 %v3035, %v3130
    %v3132 = vpop.f32.mrb[0].mxu0
    %3133 = vdwg.mxu0
    %v3134 = vmax.f32 %v3116, 0.0
    %v3135 = vmax.f32 %v3121, 0.0
    %v3136 = vmax.f32 %v3126, 0.0
    %v3137 = vmax.f32 %v3131, 0.0
    %s3138 = scalar_lea.vmem [#allocation19], 64
    %v3139 = vld [vmem:[%s3138] sm:$0xff]
    %v3140 = vld [vmem:[%s3138 + $0x8] sm:$0xff]
    %v3141 = vld [vmem:[%s3138 + $0x10] sm:$0xff]
    %v3142 = vld [vmem:[%s3138 + $0x18] sm:$0xff]
    %v3143 = vld [vmem:[%s3138 + $0x20] sm:$0xff]
    %v3144 = vld [vmem:[%s3138 + $0x28] sm:$0xff]
    %v3145 = vld [vmem:[%s3138 + $0x30] sm:$0xff]
    %v3146 = vld [vmem:[%s3138 + $0x38] sm:$0xff]
    %s3147 = scalar_lea.vmem %s22, 1
    %v3148 = vld [vmem:[%s3147] sm:$0x1]
    %v3150 = vlaneseq
    %v3151 = vshrl.u32 %v3150, 7
    %v3152 = vsub.s32 0, %v3151
    %v3153 = vrot.slane %v3148, %v3152
    %v3156 = vsel %vm869, %v3134, 0
    %v3159 = vsel %vm869, %v3135, 0
    %v3162 = vsel %vm869, %v3136, 0
    %v3165 = vsel %vm869, %v3137, 0
    %3167 = vmatprep.subr.mxu0 0.0
    %3168 = vmatpush1.msra.mxu0 %v3139
    %3169 = vmatprep.subr.mxu0 0.0
    %3170 = vmatpush1.msra.mxu0 %v3140
    %3171 = vmatprep.subr.mxu0 0.0
    %3172 = vmatpush1.msra.mxu0 %v3141
    %3173 = vmatprep.subr.mxu0 0.0
    %3174 = vmatpush1.msra.mxu0 %v3142
    %3175 = vmatprep.subr.mxu0 0.0
    %3176 = vmatpush1.msra.mxu0 %v3143
    %3177 = vmatprep.subr.mxu0 0.0
    %3178 = vmatpush1.msra.mxu0 %v3144
    %3179 = vmatprep.subr.mxu0 0.0
    %3180 = vmatpush1.msra.mxu0 %v3145
    %3181 = vmatprep.subr.mxu0 0.0
    %3182 = vmatpush1.msra.mxu0 %v3146
    %3183 = vmatprep.subr.mxu0 0.0
    %3184 = vmatpush1.msra.mxu0 0.0
    %3185 = vmatprep.subr.mxu0 0.0
    %3186 = vmatpush1.msra.mxu0 0.0
    %3187 = vmatprep.subr.mxu0 0.0
    %3188 = vmatpush1.msra.mxu0 0.0
    %3189 = vmatprep.subr.mxu0 0.0
    %3190 = vmatpush1.msra.mxu0 0.0
    %3191 = vmatprep.subr.mxu0 0.0
    %3192 = vmatpush1.msra.mxu0 0.0
    %3193 = vmatprep.subr.mxu0 0.0
    %3194 = vmatpush1.msra.mxu0 0.0
    %3195 = vmatprep.subr.mxu0 0.0
    %3196 = vmatpush1.msra.mxu0 0.0
    %3197 = vmatprep.subr.mxu0 0.0
    %3198 = vmatpush1.msra.mxu0 0.0
    %3199 = vmatprep.subr.mxu0 0.0
    %3200 = vmatpush1.msra.mxu0 0.0
    %3201 = vmatprep.subr.mxu0 0.0
    %3202 = vmatpush1.msra.mxu0 0.0
    %3203 = vmatprep.subr.mxu0 0.0
    %3204 = vmatpush1.msra.mxu0 0.0
    %3205 = vmatprep.subr.mxu0 0.0
    %3206 = vmatpush1.msra.mxu0 0.0
    %3207 = vmatprep.subr.mxu0 0.0
    %3208 = vmatpush1.msra.mxu0 0.0
    %3209 = vmatprep.subr.mxu0 0.0
    %3210 = vmatpush1.msra.mxu0 0.0
    %3211 = vmatprep.subr.mxu0 0.0
    %3212 = vmatpush1.msra.mxu0 0.0
    %3213 = vmatprep.subr.mxu0 0.0
    %3214 = vmatpush1.msra.mxu0 0.0
    %3215 = vmatprep.subr.mxu0 0.0
    %3216 = vmatpush1.msra.mxu0 0.0
    %3217 = vmatprep.subr.mxu0 0.0
    %3218 = vmatpush1.msra.mxu0 0.0
    %3219 = vmatprep.subr.mxu0 0.0
    %3220 = vmatpush1.msra.mxu0 0.0
    %3221 = vmatprep.subr.mxu0 0.0
    %3222 = vmatpush1.msra.mxu0 0.0
    %3223 = vmatprep.subr.mxu0 0.0
    %3224 = vmatpush1.msra.mxu0 0.0
    %3225 = vmatprep.subr.mxu0 0.0
    %3226 = vmatpush1.msra.mxu0 0.0
    %3227 = vmatprep.subr.mxu0 0.0
    %3228 = vmatpush1.msra.mxu0 0.0
    %3229 = vmatprep.subr.mxu0 0.0
    %3230 = vmatpush1.msra.mxu0 0.0
    %3231 = vmatprep.mubr.f32.mxu0 0.0
    %3232 = vmatmul.mubr.f32.gmra.mrb[0].mxu0 %v3156
    %v3233 = vpop.f32.mrb[0].mxu0
    %v3234 = vpop.f32.mrb[0].mxu0
    %3235 = vmatprep.mubr.f32.mxu0 0.0
    %3236 = vmatmul.mubr.f32.gmra.mrb[0].mxu0 %v3159
    %v3237 = vpop.f32.mrb[0].mxu0
    %v3238 = vadd.f32 %v3153, %v3237
    %v3239 = vpop.f32.mrb[0].mxu0
    %3240 = vmatprep.mubr.f32.mxu0 0.0
    %3241 = vmatmul.mubr.f32.gmra.mrb[0].mxu0 %v3162
    %v3242 = vpop.f32.mrb[0].mxu0
    %v3243 = vpop.f32.mrb[0].mxu0
    %3244 = vmatprep.mubr.f32.mxu0 0.0
    %3245 = vmatmul.mubr.f32.gmra.mrb[0].mxu0 %v3165
    %v3246 = vpop.f32.mrb[0].mxu0
    %v3247 = vadd.f32 %v3153, %v3246
    %v3248 = vpop.f32.mrb[0].mxu0
    %3249 = vdwg.mxu0
    %v3250 = vadd.f32 %v2945, %v3238
    %v3251 = vadd.f32 %v2947, %v3247
    %v3252 = vld [vmem:[%s23] sm:$0x1]
    %v3253 = vld [vmem:[%s24] sm:$0x1]
    %v3254 = vsel %vm864, %v3250, 0.0
    %3255 = vadd.xlane.f32.xlu0 %v3254
    %v3256 = vpop.xlane.xlu0 %3255
    %v3257 = vsel %vm864, %v3251, 0.0
    %3258 = vadd.xlane.f32.xlu0 %v3257
    %v3259 = vpop.xlane.xlu0 %3258
    %v3260 = vmul.f32 %v3256, %v913
    %v3261 = vmul.f32 %v3259, %v913
    %v3262 = vsub.f32 %v3250, %v3260
    %v3263 = vsub.f32 %v3251, %v3261
    %v3264 = vmul.f32 %v3262, %v3262
    %v3265 = vmul.f32 %v3263, %v3263
    %v3266 = vsel %vm864, %v3264, 0.0
    %3267 = vadd.xlane.f32.xlu0 %v3266
    %v3268 = vpop.xlane.xlu0 %3267
    %v3269 = vsel %vm864, %v3265, 0.0
    %3270 = vadd.xlane.f32.xlu0 %v3269
    %v3271 = vpop.xlane.xlu0 %3270
    %v3272 = vmul.f32 %v3268, %v913
    %v3273 = vmul.f32 %v3271, %v913
    %v3274 = vadd.f32 %v3272, 1e-05
    %v3275 = vadd.f32 %v3273, 1e-05
    %v3276 = vrsqrt.pop %v3274
    %v3277 = vrsqrt.pop %v3275
    %v3278 = vmul.f32 %v3262, %v3276
    %v3279 = vmul.f32 %v3263, %v3277
    %v3281 = vlaneseq
    %v3282 = vshrl.u32 %v3281, 7
    %v3283 = vsub.s32 0, %v3282
    %v3284 = vrot.slane %v3252, %v3283
    %v3286 = vmul.f32 %v3278, %v3284
    %v3287 = vmul.f32 %v3279, %v3284
    %v3289 = vlaneseq
    %v3290 = vshrl.u32 %v3289, 7
    %v3291 = vsub.s32 0, %v3290
    %v3292 = vrot.slane %v3253, %v3291
    %v3294 = vadd.f32 %v3286, %v3292
    %v3295 = vadd.f32 %v3287, %v3292
    %v3296 = vld [vmem:[%s25] sm:$0xff]
    %v3297 = vld [vmem:[%s25 + $0x8] sm:$0xff]
    %v3298 = vld [vmem:[%s25 + $0x10] sm:$0xff]
    %v3299 = vld [vmem:[%s25 + $0x18] sm:$0xff]
    %v3300 = vld [vmem:[%s26] sm:$0x1]
    %v3302 = vlaneseq
    %v3303 = vshrl.u32 %v3302, 7
    %v3304 = vsub.s32 0, %v3303
    %v3305 = vrot.slane %v3300, %v3304
    %v3308 = vsel %vm864, %v3294, 0
    %v3311 = vsel %vm864, %v3295, 0
    %3313 = vmatprep.subr.mxu0 0.0
    %3314 = vmatpush1.msra.mxu0 %v3296
    %3315 = vmatprep.subr.mxu0 0.0
    %3316 = vmatpush1.msra.mxu0 %v3297
    %3317 = vmatprep.subr.mxu0 0.0
    %3318 = vmatpush1.msra.mxu0 %v3298
    %3319 = vmatprep.subr.mxu0 0.0
    %3320 = vmatpush1.msra.mxu0 %v3299
    %3321 = vmatprep.subr.mxu0 0.0
    %3322 = vmatpush1.msra.mxu0 0.0
    %3323 = vmatprep.subr.mxu0 0.0
    %3324 = vmatpush1.msra.mxu0 0.0
    %3325 = vmatprep.subr.mxu0 0.0
    %3326 = vmatpush1.msra.mxu0 0.0
    %3327 = vmatprep.subr.mxu0 0.0
    %3328 = vmatpush1.msra.mxu0 0.0
    %3329 = vmatprep.subr.mxu0 0.0
    %3330 = vmatpush1.msra.mxu0 0.0
    %3331 = vmatprep.subr.mxu0 0.0
    %3332 = vmatpush1.msra.mxu0 0.0
    %3333 = vmatprep.subr.mxu0 0.0
    %3334 = vmatpush1.msra.mxu0 0.0
    %3335 = vmatprep.subr.mxu0 0.0
    %3336 = vmatpush1.msra.mxu0 0.0
    %3337 = vmatprep.subr.mxu0 0.0
    %3338 = vmatpush1.msra.mxu0 0.0
    %3339 = vmatprep.subr.mxu0 0.0
    %3340 = vmatpush1.msra.mxu0 0.0
    %3341 = vmatprep.subr.mxu0 0.0
    %3342 = vmatpush1.msra.mxu0 0.0
    %3343 = vmatprep.subr.mxu0 0.0
    %3344 = vmatpush1.msra.mxu0 0.0
    %3345 = vmatprep.subr.mxu0 0.0
    %3346 = vmatpush1.msra.mxu0 0.0
    %3347 = vmatprep.subr.mxu0 0.0
    %3348 = vmatpush1.msra.mxu0 0.0
    %3349 = vmatprep.subr.mxu0 0.0
    %3350 = vmatpush1.msra.mxu0 0.0
    %3351 = vmatprep.subr.mxu0 0.0
    %3352 = vmatpush1.msra.mxu0 0.0
    %3353 = vmatprep.subr.mxu0 0.0
    %3354 = vmatpush1.msra.mxu0 0.0
    %3355 = vmatprep.subr.mxu0 0.0
    %3356 = vmatpush1.msra.mxu0 0.0
    %3357 = vmatprep.subr.mxu0 0.0
    %3358 = vmatpush1.msra.mxu0 0.0
    %3359 = vmatprep.subr.mxu0 0.0
    %3360 = vmatpush1.msra.mxu0 0.0
    %3361 = vmatprep.subr.mxu0 0.0
    %3362 = vmatpush1.msra.mxu0 0.0
    %3363 = vmatprep.subr.mxu0 0.0
    %3364 = vmatpush1.msra.mxu0 0.0
    %3365 = vmatprep.subr.mxu0 0.0
    %3366 = vmatpush1.msra.mxu0 0.0
    %3367 = vmatprep.subr.mxu0 0.0
    %3368 = vmatpush1.msra.mxu0 0.0
    %3369 = vmatprep.subr.mxu0 0.0
    %3370 = vmatpush1.msra.mxu0 0.0
    %3371 = vmatprep.subr.mxu0 0.0
    %3372 = vmatpush1.msra.mxu0 0.0
    %3373 = vmatprep.subr.mxu0 0.0
    %3374 = vmatpush1.msra.mxu0 0.0
    %3375 = vmatprep.subr.mxu0 0.0
    %3376 = vmatpush1.msra.mxu0 0.0
    %3377 = vmatprep.mubr.f32.mxu0 0.0
    %3378 = vmatmul.mubr.f32.gmra.mrb[0].mxu0 %v3308
    %v3379 = vpop.f32.mrb[0].mxu0
    %v3380 = vadd.f32 %v3305, %v3379
    %v3381 = vpop.f32.mrb[0].mxu0
    %3382 = vmatprep.mubr.f32.mxu0 0.0
    %3383 = vmatmul.mubr.f32.gmra.mrb[0].mxu0 %v3311
    %v3384 = vpop.f32.mrb[0].mxu0
    %v3385 = vadd.f32 %v3305, %v3384
    %v3386 = vpop.f32.mrb[0].mxu0
    %3387 = vdwg.mxu0
    %3388 = vst [vmem:[%s27] sm:$0xff] %v3380
    %3389 = vst [vmem:[%s27 + $0x8] sm:$0xff] %v3385
    // Predicated region
    $region158: #{_lambda_.1} parent=1 // pred_check
      _
    $region159: #{_lambda_.1} parent=1 // pred_check_branch
      %3391 = sbr.rel (0) target = $region161
    $region160: #{_lambda_.1} parent=1 // pred_region
      _
    $region161: #{_lambda_.1} parent=1 // pred_fallthru
      _
    // Predicated region
    $region162: #{_lambda_.1} parent=1 // pred_check
      _
    $region163: #{_lambda_.1} parent=1 // pred_check_branch
      %3393 = sbr.rel (0) target = $region165
    $region164: #{_lambda_.1} parent=1 // pred_region
      _
    $region165: #{_lambda_.1} parent=1 // pred_fallthru
      _
    %3394 = vsyncpa [#allocation3], 1
    %3395 = vsyncpa [#allocation5], 1
    %3396 = vsyncpa [#allocation8], 1
    %3397 = vsyncpa [#allocation11], 1
    %3398 = vsyncpa [#allocation14], 1
    %3399 = vsyncpa [#allocation17], 1
    %3400 = vsyncpa [#allocation20], 1

</llo_original>
